<compile_context>
chip_gen: v6e
topology: v6e:2x2x1
jax: 0.10.0
libtpu: 0.0.40
codegen_flags: <defaults>
</compile_context>

<pallas_src>
import jax
import jax.numpy as jnp
from jax.experimental import pallas as pl
from jax.experimental.pallas import tpu as pltpu

N = 10      # number of hedging time steps (self.N)
H = 10      # hidden width of each MyOwnNeuralNetworkFunction
LANES = 128


def deep_hedging_kernel(w1_ref, b1_ref, w2_ref, b2_ref,
                        prices_ref, infos_ref, payoff_ref, out_ref):
    """Whole hedging recurrence for one (TBR, 128) batch tile on the VPU.

    Batch paths occupy (sublane, lane); weights are SMEM scalars, so every op
    is a full-vreg per-lane FMA / max.  Only two live accumulators (wealth,
    strategy) are carried across the statically unrolled N-step loop.
    """
    wealth = None
    strategy = None
    for j in range(N):                           # static unroll, N = 10
        info = infos_ref[j]                      # (TBR, 128)
        prc = prices_ref[j]                      # (TBR, 128)

        # dense1 (Linear(1,H)) -> ReLU -> dense2 (Linear(H,1)) as an unrolled
        # scalar-weight reduction over H: pure VPU, scalar operands from SMEM.
        acc = jnp.zeros_like(info)
        for h in range(H):
            idx = j * H + h
            hidden = jnp.maximum(info * w1_ref[idx] + b1_ref[idx], 0.0)
            acc = acc + hidden * w2_ref[idx]
        s = acc + b2_ref[j]                      # strategy_helper, (TBR, 128)

        delta = s if j == 0 else s - strategy
        mult = delta * prc
        wealth = -mult if j == 0 else wealth - mult
        strategy = s

    # final mark-to-market + payoff
    out_ref[...] = wealth + strategy * prices_ref[N] + payoff_ref[...]


def deep_hedging(prices, infos, payoff, w1, b1, w2, b2, *, tbr=512):
    """prices (N+1,B_rows,128), infos (N,B_rows,128), payoff (B_rows,128),
    w1/b1/w2 (N,H), b2 (N,).  Returns wealth (B_rows,128), all float32."""
    n_plus_1, b_rows, lanes = prices.shape
    assert n_plus_1 == N + 1 and lanes == LANES
    assert infos.shape == (N, b_rows, LANES)
    assert payoff.shape == (b_rows, LANES)

    tbr = min(tbr, b_rows)
    assert b_rows % tbr == 0, "batch rows must divide evenly into tiles"
    assert tbr % 8 == 0 or tbr == b_rows, "tile rows must be a multiple of 8"
    grid = (b_rows // tbr,)

    smem = pl.BlockSpec(memory_space=pltpu.MemorySpace.SMEM)
    return pl.pallas_call(
        deep_hedging_kernel,
        out_shape=jax.ShapeDtypeStruct((b_rows, LANES), jnp.float32),
        grid=grid,
        in_specs=[
            smem, smem, smem, smem,                                   # weights
            pl.BlockSpec((N + 1, tbr, LANES), lambda i: (0, i, 0)),   # prices
            pl.BlockSpec((N, tbr, LANES), lambda i: (0, i, 0)),       # infos
            pl.BlockSpec((tbr, LANES), lambda i: (i, 0)),             # payoff
        ],
        out_specs=pl.BlockSpec((tbr, LANES), lambda i: (i, 0)),
        compiler_params=pltpu.CompilerParams(
            dimension_semantics=("parallel",)),   # megacore-shard batch tiles
    )(w1.reshape(-1), b1.reshape(-1), w2.reshape(-1), b2.reshape(-1),
      prices, infos, payoff)


def deep_hedging_ref(prices, infos, payoff, w1, b1, w2, b2):
    """Pure-JAX reference mirroring the PyTorch forward exactly."""
    wealth = None
    strategy = None
    for j in range(N):
        info = infos[j]                                              # (B_rows, 128)
        hidden = jnp.maximum(info[..., None] * w1[j] + b1[j], 0.0)   # (B_rows, 128, H)
        s = jnp.sum(hidden * w2[j], axis=-1) + b2[j]                 # (B_rows, 128)
        delta = s if j == 0 else s - strategy
        mult = delta * prices[j]
        wealth = -mult if j == 0 else wealth - mult
        strategy = s
    return wealth + strategy * prices[N] + payoff


if __name__ == "__main__":
    B_ROWS = 16                      # 16 * 128 = 2048 paths (stands in for Ktrain)
    key = jax.random.PRNGKey(0)
    k_prc, k_info, k_pay, k_w1, k_b1, k_w2, k_b2 = jax.random.split(key, 7)

    # Deterministic synthetic market data (analogue of the 0.5 / 0.1 / 1.0 constants).
    prices = 0.5 + 0.1 * jax.random.normal(k_prc, (N + 1, B_ROWS, LANES), jnp.float32)
    infos = 0.1 + 0.05 * jax.random.normal(k_info, (N, B_ROWS, LANES), jnp.float32)
    payoff = 1.0 + 0.1 * jax.random.normal(k_pay, (B_ROWS, LANES), jnp.float32)

    # Deterministic per-step MLP parameters (Linear(1,10) and Linear(10,1) weights
    # collapse to H scalars each per time step).
    w1 = 0.5 * jax.random.normal(k_w1, (N, H), jnp.float32)
    b1 = 0.1 * jax.random.normal(k_b1, (N, H), jnp.float32)
    w2 = 0.5 * jax.random.normal(k_w2, (N, H), jnp.float32)
    b2 = 0.1 * jax.random.normal(k_b2, (N,), jnp.float32)

    out = deep_hedging(prices, infos, payoff, w1, b1, w2, b2, tbr=8)  # grid=(2,)
    out = jax.block_until_ready(out)

    ref = deep_hedging_ref(prices, infos, payoff, w1, b1, w2, b2)
    assert out.shape == (B_ROWS, LANES)
    assert jnp.allclose(out, ref, atol=1e-4, rtol=1e-5), (
        float(jnp.max(jnp.abs(out - ref))))

    print("KERNEL_OK")
</pallas_src>

<mosaic_0001>
module attributes {stable_mosaic.version = 11 : i64} {
  func.func @deep_hedging_kernel(%arg0: i32, %arg1: memref<100xf32, #tpu.memory_space<smem>>, %arg2: memref<100xf32, #tpu.memory_space<smem>>, %arg3: memref<100xf32, #tpu.memory_space<smem>>, %arg4: memref<10xf32, #tpu.memory_space<smem>>, %arg5: memref<11x8x128xf32, #tpu.memory_space<vmem>>, %arg6: memref<10x8x128xf32, #tpu.memory_space<vmem>>, %arg7: memref<8x128xf32, #tpu.memory_space<vmem>>, %arg8: memref<8x128xf32, #tpu.memory_space<vmem>>) attributes {dimension_semantics = [#tpu.dimension_semantics<parallel>], iteration_bounds = array<i64: 2>, scalar_prefetch = 0 : i64, scratch_operands = 0 : i64, tpu.core_type = #tpu.core_type<tc>, window_params = [{transform_indices = @transform_0, window_bounds = array<i64: 100>}, {transform_indices = @transform_1, window_bounds = array<i64: 100>}, {transform_indices = @transform_2, window_bounds = array<i64: 100>}, {transform_indices = @transform_3, window_bounds = array<i64: 10>}, {transform_indices = @transform_4, window_bounds = array<i64: 11, 8, 128>}, {transform_indices = @transform_5, window_bounds = array<i64: 10, 8, 128>}, {transform_indices = @transform_6, window_bounds = array<i64: 8, 128>}, {transform_indices = @transform_7, window_bounds = array<i64: 8, 128>}]} {
    %c0 = arith.constant 0 : index
    %c0_0 = arith.constant 0 : index
    %c0_1 = arith.constant 0 : index
    %0 = vector.load %arg6[%c0, %c0_0, %c0_1] : memref<10x8x128xf32, #tpu.memory_space<vmem>>, vector<1x8x128xf32>
    %1 = vector.shape_cast %0 : vector<1x8x128xf32> to vector<8x128xf32>
    %c0_2 = arith.constant 0 : index
    %c0_3 = arith.constant 0 : index
    %c0_4 = arith.constant 0 : index
    %2 = vector.load %arg5[%c0_2, %c0_3, %c0_4] : memref<11x8x128xf32, #tpu.memory_space<vmem>>, vector<1x8x128xf32>
    %3 = vector.shape_cast %2 : vector<1x8x128xf32> to vector<8x128xf32>
    %cst = arith.constant 0.000000e+00 : f32
    %4 = vector.broadcast %cst : f32 to vector<8x128xf32>
    %c0_5 = arith.constant 0 : index
    %5 = memref.load %arg1[%c0_5] : memref<100xf32, #tpu.memory_space<smem>>
    %6 = vector.broadcast %5 : f32 to vector<8x128xf32>
    %7 = arith.mulf %1, %6 : vector<8x128xf32>
    %c0_6 = arith.constant 0 : index
    %8 = memref.load %arg2[%c0_6] : memref<100xf32, #tpu.memory_space<smem>>
    %9 = vector.broadcast %8 : f32 to vector<8x128xf32>
    %10 = arith.addf %7, %9 : vector<8x128xf32>
    %cst_7 = arith.constant 0.000000e+00 : f32
    %11 = vector.broadcast %cst_7 : f32 to vector<8x128xf32>
    %12 = arith.maximumf %10, %11 : vector<8x128xf32>
    %c0_8 = arith.constant 0 : index
    %13 = memref.load %arg3[%c0_8] : memref<100xf32, #tpu.memory_space<smem>>
    %14 = vector.broadcast %13 : f32 to vector<8x128xf32>
    %15 = arith.mulf %12, %14 : vector<8x128xf32>
    %16 = arith.addf %4, %15 : vector<8x128xf32>
    %c1 = arith.constant 1 : index
    %17 = memref.load %arg1[%c1] : memref<100xf32, #tpu.memory_space<smem>>
    %18 = vector.broadcast %17 : f32 to vector<8x128xf32>
    %19 = arith.mulf %1, %18 : vector<8x128xf32>
    %c1_9 = arith.constant 1 : index
    %20 = memref.load %arg2[%c1_9] : memref<100xf32, #tpu.memory_space<smem>>
    %21 = vector.broadcast %20 : f32 to vector<8x128xf32>
    %22 = arith.addf %19, %21 : vector<8x128xf32>
    %cst_10 = arith.constant 0.000000e+00 : f32
    %23 = vector.broadcast %cst_10 : f32 to vector<8x128xf32>
    %24 = arith.maximumf %22, %23 : vector<8x128xf32>
    %c1_11 = arith.constant 1 : index
    %25 = memref.load %arg3[%c1_11] : memref<100xf32, #tpu.memory_space<smem>>
    %26 = vector.broadcast %25 : f32 to vector<8x128xf32>
    %27 = arith.mulf %24, %26 : vector<8x128xf32>
    %28 = arith.addf %16, %27 : vector<8x128xf32>
    %c2 = arith.constant 2 : index
    %29 = memref.load %arg1[%c2] : memref<100xf32, #tpu.memory_space<smem>>
    %30 = vector.broadcast %29 : f32 to vector<8x128xf32>
    %31 = arith.mulf %1, %30 : vector<8x128xf32>
    %c2_12 = arith.constant 2 : index
    %32 = memref.load %arg2[%c2_12] : memref<100xf32, #tpu.memory_space<smem>>
    %33 = vector.broadcast %32 : f32 to vector<8x128xf32>
    %34 = arith.addf %31, %33 : vector<8x128xf32>
    %cst_13 = arith.constant 0.000000e+00 : f32
    %35 = vector.broadcast %cst_13 : f32 to vector<8x128xf32>
    %36 = arith.maximumf %34, %35 : vector<8x128xf32>
    %c2_14 = arith.constant 2 : index
    %37 = memref.load %arg3[%c2_14] : memref<100xf32, #tpu.memory_space<smem>>
    %38 = vector.broadcast %37 : f32 to vector<8x128xf32>
    %39 = arith.mulf %36, %38 : vector<8x128xf32>
    %40 = arith.addf %28, %39 : vector<8x128xf32>
    %c3 = arith.constant 3 : index
    %41 = memref.load %arg1[%c3] : memref<100xf32, #tpu.memory_space<smem>>
    %42 = vector.broadcast %41 : f32 to vector<8x128xf32>
    %43 = arith.mulf %1, %42 : vector<8x128xf32>
    %c3_15 = arith.constant 3 : index
    %44 = memref.load %arg2[%c3_15] : memref<100xf32, #tpu.memory_space<smem>>
    %45 = vector.broadcast %44 : f32 to vector<8x128xf32>
    %46 = arith.addf %43, %45 : vector<8x128xf32>
    %cst_16 = arith.constant 0.000000e+00 : f32
    %47 = vector.broadcast %cst_16 : f32 to vector<8x128xf32>
    %48 = arith.maximumf %46, %47 : vector<8x128xf32>
    %c3_17 = arith.constant 3 : index
    %49 = memref.load %arg3[%c3_17] : memref<100xf32, #tpu.memory_space<smem>>
    %50 = vector.broadcast %49 : f32 to vector<8x128xf32>
    %51 = arith.mulf %48, %50 : vector<8x128xf32>
    %52 = arith.addf %40, %51 : vector<8x128xf32>
    %c4 = arith.constant 4 : index
    %53 = memref.load %arg1[%c4] : memref<100xf32, #tpu.memory_space<smem>>
    %54 = vector.broadcast %53 : f32 to vector<8x128xf32>
    %55 = arith.mulf %1, %54 : vector<8x128xf32>
    %c4_18 = arith.constant 4 : index
    %56 = memref.load %arg2[%c4_18] : memref<100xf32, #tpu.memory_space<smem>>
    %57 = vector.broadcast %56 : f32 to vector<8x128xf32>
    %58 = arith.addf %55, %57 : vector<8x128xf32>
    %cst_19 = arith.constant 0.000000e+00 : f32
    %59 = vector.broadcast %cst_19 : f32 to vector<8x128xf32>
    %60 = arith.maximumf %58, %59 : vector<8x128xf32>
    %c4_20 = arith.constant 4 : index
    %61 = memref.load %arg3[%c4_20] : memref<100xf32, #tpu.memory_space<smem>>
    %62 = vector.broadcast %61 : f32 to vector<8x128xf32>
    %63 = arith.mulf %60, %62 : vector<8x128xf32>
    %64 = arith.addf %52, %63 : vector<8x128xf32>
    %c5 = arith.constant 5 : index
    %65 = memref.load %arg1[%c5] : memref<100xf32, #tpu.memory_space<smem>>
    %66 = vector.broadcast %65 : f32 to vector<8x128xf32>
    %67 = arith.mulf %1, %66 : vector<8x128xf32>
    %c5_21 = arith.constant 5 : index
    %68 = memref.load %arg2[%c5_21] : memref<100xf32, #tpu.memory_space<smem>>
    %69 = vector.broadcast %68 : f32 to vector<8x128xf32>
    %70 = arith.addf %67, %69 : vector<8x128xf32>
    %cst_22 = arith.constant 0.000000e+00 : f32
    %71 = vector.broadcast %cst_22 : f32 to vector<8x128xf32>
    %72 = arith.maximumf %70, %71 : vector<8x128xf32>
    %c5_23 = arith.constant 5 : index
    %73 = memref.load %arg3[%c5_23] : memref<100xf32, #tpu.memory_space<smem>>
    %74 = vector.broadcast %73 : f32 to vector<8x128xf32>
    %75 = arith.mulf %72, %74 : vector<8x128xf32>
    %76 = arith.addf %64, %75 : vector<8x128xf32>
    %c6 = arith.constant 6 : index
    %77 = memref.load %arg1[%c6] : memref<100xf32, #tpu.memory_space<smem>>
    %78 = vector.broadcast %77 : f32 to vector<8x128xf32>
    %79 = arith.mulf %1, %78 : vector<8x128xf32>
    %c6_24 = arith.constant 6 : index
    %80 = memref.load %arg2[%c6_24] : memref<100xf32, #tpu.memory_space<smem>>
    %81 = vector.broadcast %80 : f32 to vector<8x128xf32>
    %82 = arith.addf %79, %81 : vector<8x128xf32>
    %cst_25 = arith.constant 0.000000e+00 : f32
    %83 = vector.broadcast %cst_25 : f32 to vector<8x128xf32>
    %84 = arith.maximumf %82, %83 : vector<8x128xf32>
    %c6_26 = arith.constant 6 : index
    %85 = memref.load %arg3[%c6_26] : memref<100xf32, #tpu.memory_space<smem>>
    %86 = vector.broadcast %85 : f32 to vector<8x128xf32>
    %87 = arith.mulf %84, %86 : vector<8x128xf32>
    %88 = arith.addf %76, %87 : vector<8x128xf32>
    %c7 = arith.constant 7 : index
    %89 = memref.load %arg1[%c7] : memref<100xf32, #tpu.memory_space<smem>>
    %90 = vector.broadcast %89 : f32 to vector<8x128xf32>
    %91 = arith.mulf %1, %90 : vector<8x128xf32>
    %c7_27 = arith.constant 7 : index
    %92 = memref.load %arg2[%c7_27] : memref<100xf32, #tpu.memory_space<smem>>
    %93 = vector.broadcast %92 : f32 to vector<8x128xf32>
    %94 = arith.addf %91, %93 : vector<8x128xf32>
    %cst_28 = arith.constant 0.000000e+00 : f32
    %95 = vector.broadcast %cst_28 : f32 to vector<8x128xf32>
    %96 = arith.maximumf %94, %95 : vector<8x128xf32>
    %c7_29 = arith.constant 7 : index
    %97 = memref.load %arg3[%c7_29] : memref<100xf32, #tpu.memory_space<smem>>
    %98 = vector.broadcast %97 : f32 to vector<8x128xf32>
    %99 = arith.mulf %96, %98 : vector<8x128xf32>
    %100 = arith.addf %88, %99 : vector<8x128xf32>
    %c8 = arith.constant 8 : index
    %101 = memref.load %arg1[%c8] : memref<100xf32, #tpu.memory_space<smem>>
    %102 = vector.broadcast %101 : f32 to vector<8x128xf32>
    %103 = arith.mulf %1, %102 : vector<8x128xf32>
    %c8_30 = arith.constant 8 : index
    %104 = memref.load %arg2[%c8_30] : memref<100xf32, #tpu.memory_space<smem>>
    %105 = vector.broadcast %104 : f32 to vector<8x128xf32>
    %106 = arith.addf %103, %105 : vector<8x128xf32>
    %cst_31 = arith.constant 0.000000e+00 : f32
    %107 = vector.broadcast %cst_31 : f32 to vector<8x128xf32>
    %108 = arith.maximumf %106, %107 : vector<8x128xf32>
    %c8_32 = arith.constant 8 : index
    %109 = memref.load %arg3[%c8_32] : memref<100xf32, #tpu.memory_space<smem>>
    %110 = vector.broadcast %109 : f32 to vector<8x128xf32>
    %111 = arith.mulf %108, %110 : vector<8x128xf32>
    %112 = arith.addf %100, %111 : vector<8x128xf32>
    %c9 = arith.constant 9 : index
    %113 = memref.load %arg1[%c9] : memref<100xf32, #tpu.memory_space<smem>>
    %114 = vector.broadcast %113 : f32 to vector<8x128xf32>
    %115 = arith.mulf %1, %114 : vector<8x128xf32>
    %c9_33 = arith.constant 9 : index
    %116 = memref.load %arg2[%c9_33] : memref<100xf32, #tpu.memory_space<smem>>
    %117 = vector.broadcast %116 : f32 to vector<8x128xf32>
    %118 = arith.addf %115, %117 : vector<8x128xf32>
    %cst_34 = arith.constant 0.000000e+00 : f32
    %119 = vector.broadcast %cst_34 : f32 to vector<8x128xf32>
    %120 = arith.maximumf %118, %119 : vector<8x128xf32>
    %c9_35 = arith.constant 9 : index
    %121 = memref.load %arg3[%c9_35] : memref<100xf32, #tpu.memory_space<smem>>
    %122 = vector.broadcast %121 : f32 to vector<8x128xf32>
    %123 = arith.mulf %120, %122 : vector<8x128xf32>
    %124 = arith.addf %112, %123 : vector<8x128xf32>
    %c0_36 = arith.constant 0 : index
    %125 = memref.load %arg4[%c0_36] : memref<10xf32, #tpu.memory_space<smem>>
    %126 = vector.broadcast %125 : f32 to vector<8x128xf32>
    %127 = arith.addf %124, %126 : vector<8x128xf32>
    %128 = arith.mulf %127, %3 : vector<8x128xf32>
    %cst_37 = arith.constant 0.000000e+00 : f32
    %129 = vector.broadcast %cst_37 : f32 to vector<8x128xf32>
    %130 = arith.subf %129, %128 : vector<8x128xf32>
    %c1_38 = arith.constant 1 : index
    %c0_39 = arith.constant 0 : index
    %c0_40 = arith.constant 0 : index
    %131 = vector.load %arg6[%c1_38, %c0_39, %c0_40] : memref<10x8x128xf32, #tpu.memory_space<vmem>>, vector<1x8x128xf32>
    %132 = vector.shape_cast %131 : vector<1x8x128xf32> to vector<8x128xf32>
    %c1_41 = arith.constant 1 : index
    %c0_42 = arith.constant 0 : index
    %c0_43 = arith.constant 0 : index
    %133 = vector.load %arg5[%c1_41, %c0_42, %c0_43] : memref<11x8x128xf32, #tpu.memory_space<vmem>>, vector<1x8x128xf32>
    %134 = vector.shape_cast %133 : vector<1x8x128xf32> to vector<8x128xf32>
    %cst_44 = arith.constant 0.000000e+00 : f32
    %135 = vector.broadcast %cst_44 : f32 to vector<8x128xf32>
    %c10 = arith.constant 10 : index
    %136 = memref.load %arg1[%c10] : memref<100xf32, #tpu.memory_space<smem>>
    %137 = vector.broadcast %136 : f32 to vector<8x128xf32>
    %138 = arith.mulf %132, %137 : vector<8x128xf32>
    %c10_45 = arith.constant 10 : index
    %139 = memref.load %arg2[%c10_45] : memref<100xf32, #tpu.memory_space<smem>>
    %140 = vector.broadcast %139 : f32 to vector<8x128xf32>
    %141 = arith.addf %138, %140 : vector<8x128xf32>
    %cst_46 = arith.constant 0.000000e+00 : f32
    %142 = vector.broadcast %cst_46 : f32 to vector<8x128xf32>
    %143 = arith.maximumf %141, %142 : vector<8x128xf32>
    %c10_47 = arith.constant 10 : index
    %144 = memref.load %arg3[%c10_47] : memref<100xf32, #tpu.memory_space<smem>>
    %145 = vector.broadcast %144 : f32 to vector<8x128xf32>
    %146 = arith.mulf %143, %145 : vector<8x128xf32>
    %147 = arith.addf %135, %146 : vector<8x128xf32>
    %c11 = arith.constant 11 : index
    %148 = memref.load %arg1[%c11] : memref<100xf32, #tpu.memory_space<smem>>
    %149 = vector.broadcast %148 : f32 to vector<8x128xf32>
    %150 = arith.mulf %132, %149 : vector<8x128xf32>
    %c11_48 = arith.constant 11 : index
    %151 = memref.load %arg2[%c11_48] : memref<100xf32, #tpu.memory_space<smem>>
    %152 = vector.broadcast %151 : f32 to vector<8x128xf32>
    %153 = arith.addf %150, %152 : vector<8x128xf32>
    %cst_49 = arith.constant 0.000000e+00 : f32
    %154 = vector.broadcast %cst_49 : f32 to vector<8x128xf32>
    %155 = arith.maximumf %153, %154 : vector<8x128xf32>
    %c11_50 = arith.constant 11 : index
    %156 = memref.load %arg3[%c11_50] : memref<100xf32, #tpu.memory_space<smem>>
    %157 = vector.broadcast %156 : f32 to vector<8x128xf32>
    %158 = arith.mulf %155, %157 : vector<8x128xf32>
    %159 = arith.addf %147, %158 : vector<8x128xf32>
    %c12 = arith.constant 12 : index
    %160 = memref.load %arg1[%c12] : memref<100xf32, #tpu.memory_space<smem>>
    %161 = vector.broadcast %160 : f32 to vector<8x128xf32>
    %162 = arith.mulf %132, %161 : vector<8x128xf32>
    %c12_51 = arith.constant 12 : index
    %163 = memref.load %arg2[%c12_51] : memref<100xf32, #tpu.memory_space<smem>>
    %164 = vector.broadcast %163 : f32 to vector<8x128xf32>
    %165 = arith.addf %162, %164 : vector<8x128xf32>
    %cst_52 = arith.constant 0.000000e+00 : f32
    %166 = vector.broadcast %cst_52 : f32 to vector<8x128xf32>
    %167 = arith.maximumf %165, %166 : vector<8x128xf32>
    %c12_53 = arith.constant 12 : index
    %168 = memref.load %arg3[%c12_53] : memref<100xf32, #tpu.memory_space<smem>>
    %169 = vector.broadcast %168 : f32 to vector<8x128xf32>
    %170 = arith.mulf %167, %169 : vector<8x128xf32>
    %171 = arith.addf %159, %170 : vector<8x128xf32>
    %c13 = arith.constant 13 : index
    %172 = memref.load %arg1[%c13] : memref<100xf32, #tpu.memory_space<smem>>
    %173 = vector.broadcast %172 : f32 to vector<8x128xf32>
    %174 = arith.mulf %132, %173 : vector<8x128xf32>
    %c13_54 = arith.constant 13 : index
    %175 = memref.load %arg2[%c13_54] : memref<100xf32, #tpu.memory_space<smem>>
    %176 = vector.broadcast %175 : f32 to vector<8x128xf32>
    %177 = arith.addf %174, %176 : vector<8x128xf32>
    %cst_55 = arith.constant 0.000000e+00 : f32
    %178 = vector.broadcast %cst_55 : f32 to vector<8x128xf32>
    %179 = arith.maximumf %177, %178 : vector<8x128xf32>
    %c13_56 = arith.constant 13 : index
    %180 = memref.load %arg3[%c13_56] : memref<100xf32, #tpu.memory_space<smem>>
    %181 = vector.broadcast %180 : f32 to vector<8x128xf32>
    %182 = arith.mulf %179, %181 : vector<8x128xf32>
    %183 = arith.addf %171, %182 : vector<8x128xf32>
    %c14 = arith.constant 14 : index
    %184 = memref.load %arg1[%c14] : memref<100xf32, #tpu.memory_space<smem>>
    %185 = vector.broadcast %184 : f32 to vector<8x128xf32>
    %186 = arith.mulf %132, %185 : vector<8x128xf32>
    %c14_57 = arith.constant 14 : index
    %187 = memref.load %arg2[%c14_57] : memref<100xf32, #tpu.memory_space<smem>>
    %188 = vector.broadcast %187 : f32 to vector<8x128xf32>
    %189 = arith.addf %186, %188 : vector<8x128xf32>
    %cst_58 = arith.constant 0.000000e+00 : f32
    %190 = vector.broadcast %cst_58 : f32 to vector<8x128xf32>
    %191 = arith.maximumf %189, %190 : vector<8x128xf32>
    %c14_59 = arith.constant 14 : index
    %192 = memref.load %arg3[%c14_59] : memref<100xf32, #tpu.memory_space<smem>>
    %193 = vector.broadcast %192 : f32 to vector<8x128xf32>
    %194 = arith.mulf %191, %193 : vector<8x128xf32>
    %195 = arith.addf %183, %194 : vector<8x128xf32>
    %c15 = arith.constant 15 : index
    %196 = memref.load %arg1[%c15] : memref<100xf32, #tpu.memory_space<smem>>
    %197 = vector.broadcast %196 : f32 to vector<8x128xf32>
    %198 = arith.mulf %132, %197 : vector<8x128xf32>
    %c15_60 = arith.constant 15 : index
    %199 = memref.load %arg2[%c15_60] : memref<100xf32, #tpu.memory_space<smem>>
    %200 = vector.broadcast %199 : f32 to vector<8x128xf32>
    %201 = arith.addf %198, %200 : vector<8x128xf32>
    %cst_61 = arith.constant 0.000000e+00 : f32
    %202 = vector.broadcast %cst_61 : f32 to vector<8x128xf32>
    %203 = arith.maximumf %201, %202 : vector<8x128xf32>
    %c15_62 = arith.constant 15 : index
    %204 = memref.load %arg3[%c15_62] : memref<100xf32, #tpu.memory_space<smem>>
    %205 = vector.broadcast %204 : f32 to vector<8x128xf32>
    %206 = arith.mulf %203, %205 : vector<8x128xf32>
    %207 = arith.addf %195, %206 : vector<8x128xf32>
    %c16 = arith.constant 16 : index
    %208 = memref.load %arg1[%c16] : memref<100xf32, #tpu.memory_space<smem>>
    %209 = vector.broadcast %208 : f32 to vector<8x128xf32>
    %210 = arith.mulf %132, %209 : vector<8x128xf32>
    %c16_63 = arith.constant 16 : index
    %211 = memref.load %arg2[%c16_63] : memref<100xf32, #tpu.memory_space<smem>>
    %212 = vector.broadcast %211 : f32 to vector<8x128xf32>
    %213 = arith.addf %210, %212 : vector<8x128xf32>
    %cst_64 = arith.constant 0.000000e+00 : f32
    %214 = vector.broadcast %cst_64 : f32 to vector<8x128xf32>
    %215 = arith.maximumf %213, %214 : vector<8x128xf32>
    %c16_65 = arith.constant 16 : index
    %216 = memref.load %arg3[%c16_65] : memref<100xf32, #tpu.memory_space<smem>>
    %217 = vector.broadcast %216 : f32 to vector<8x128xf32>
    %218 = arith.mulf %215, %217 : vector<8x128xf32>
    %219 = arith.addf %207, %218 : vector<8x128xf32>
    %c17 = arith.constant 17 : index
    %220 = memref.load %arg1[%c17] : memref<100xf32, #tpu.memory_space<smem>>
    %221 = vector.broadcast %220 : f32 to vector<8x128xf32>
    %222 = arith.mulf %132, %221 : vector<8x128xf32>
    %c17_66 = arith.constant 17 : index
    %223 = memref.load %arg2[%c17_66] : memref<100xf32, #tpu.memory_space<smem>>
    %224 = vector.broadcast %223 : f32 to vector<8x128xf32>
    %225 = arith.addf %222, %224 : vector<8x128xf32>
    %cst_67 = arith.constant 0.000000e+00 : f32
    %226 = vector.broadcast %cst_67 : f32 to vector<8x128xf32>
    %227 = arith.maximumf %225, %226 : vector<8x128xf32>
    %c17_68 = arith.constant 17 : index
    %228 = memref.load %arg3[%c17_68] : memref<100xf32, #tpu.memory_space<smem>>
    %229 = vector.broadcast %228 : f32 to vector<8x128xf32>
    %230 = arith.mulf %227, %229 : vector<8x128xf32>
    %231 = arith.addf %219, %230 : vector<8x128xf32>
    %c18 = arith.constant 18 : index
    %232 = memref.load %arg1[%c18] : memref<100xf32, #tpu.memory_space<smem>>
    %233 = vector.broadcast %232 : f32 to vector<8x128xf32>
    %234 = arith.mulf %132, %233 : vector<8x128xf32>
    %c18_69 = arith.constant 18 : index
    %235 = memref.load %arg2[%c18_69] : memref<100xf32, #tpu.memory_space<smem>>
    %236 = vector.broadcast %235 : f32 to vector<8x128xf32>
    %237 = arith.addf %234, %236 : vector<8x128xf32>
    %cst_70 = arith.constant 0.000000e+00 : f32
    %238 = vector.broadcast %cst_70 : f32 to vector<8x128xf32>
    %239 = arith.maximumf %237, %238 : vector<8x128xf32>
    %c18_71 = arith.constant 18 : index
    %240 = memref.load %arg3[%c18_71] : memref<100xf32, #tpu.memory_space<smem>>
    %241 = vector.broadcast %240 : f32 to vector<8x128xf32>
    %242 = arith.mulf %239, %241 : vector<8x128xf32>
    %243 = arith.addf %231, %242 : vector<8x128xf32>
    %c19 = arith.constant 19 : index
    %244 = memref.load %arg1[%c19] : memref<100xf32, #tpu.memory_space<smem>>
    %245 = vector.broadcast %244 : f32 to vector<8x128xf32>
    %246 = arith.mulf %132, %245 : vector<8x128xf32>
    %c19_72 = arith.constant 19 : index
    %247 = memref.load %arg2[%c19_72] : memref<100xf32, #tpu.memory_space<smem>>
    %248 = vector.broadcast %247 : f32 to vector<8x128xf32>
    %249 = arith.addf %246, %248 : vector<8x128xf32>
    %cst_73 = arith.constant 0.000000e+00 : f32
    %250 = vector.broadcast %cst_73 : f32 to vector<8x128xf32>
    %251 = arith.maximumf %249, %250 : vector<8x128xf32>
    %c19_74 = arith.constant 19 : index
    %252 = memref.load %arg3[%c19_74] : memref<100xf32, #tpu.memory_space<smem>>
    %253 = vector.broadcast %252 : f32 to vector<8x128xf32>
    %254 = arith.mulf %251, %253 : vector<8x128xf32>
    %255 = arith.addf %243, %254 : vector<8x128xf32>
    %c1_75 = arith.constant 1 : index
    %256 = memref.load %arg4[%c1_75] : memref<10xf32, #tpu.memory_space<smem>>
    %257 = vector.broadcast %256 : f32 to vector<8x128xf32>
    %258 = arith.addf %255, %257 : vector<8x128xf32>
    %259 = arith.subf %258, %127 : vector<8x128xf32>
    %260 = arith.mulf %259, %134 : vector<8x128xf32>
    %261 = arith.subf %130, %260 : vector<8x128xf32>
    %c2_76 = arith.constant 2 : index
    %c0_77 = arith.constant 0 : index
    %c0_78 = arith.constant 0 : index
    %262 = vector.load %arg6[%c2_76, %c0_77, %c0_78] : memref<10x8x128xf32, #tpu.memory_space<vmem>>, vector<1x8x128xf32>
    %263 = vector.shape_cast %262 : vector<1x8x128xf32> to vector<8x128xf32>
    %c2_79 = arith.constant 2 : index
    %c0_80 = arith.constant 0 : index
    %c0_81 = arith.constant 0 : index
    %264 = vector.load %arg5[%c2_79, %c0_80, %c0_81] : memref<11x8x128xf32, #tpu.memory_space<vmem>>, vector<1x8x128xf32>
    %265 = vector.shape_cast %264 : vector<1x8x128xf32> to vector<8x128xf32>
    %cst_82 = arith.constant 0.000000e+00 : f32
    %266 = vector.broadcast %cst_82 : f32 to vector<8x128xf32>
    %c20 = arith.constant 20 : index
    %267 = memref.load %arg1[%c20] : memref<100xf32, #tpu.memory_space<smem>>
    %268 = vector.broadcast %267 : f32 to vector<8x128xf32>
    %269 = arith.mulf %263, %268 : vector<8x128xf32>
    %c20_83 = arith.constant 20 : index
    %270 = memref.load %arg2[%c20_83] : memref<100xf32, #tpu.memory_space<smem>>
    %271 = vector.broadcast %270 : f32 to vector<8x128xf32>
    %272 = arith.addf %269, %271 : vector<8x128xf32>
    %cst_84 = arith.constant 0.000000e+00 : f32
    %273 = vector.broadcast %cst_84 : f32 to vector<8x128xf32>
    %274 = arith.maximumf %272, %273 : vector<8x128xf32>
    %c20_85 = arith.constant 20 : index
    %275 = memref.load %arg3[%c20_85] : memref<100xf32, #tpu.memory_space<smem>>
    %276 = vector.broadcast %275 : f32 to vector<8x128xf32>
    %277 = arith.mulf %274, %276 : vector<8x128xf32>
    %278 = arith.addf %266, %277 : vector<8x128xf32>
    %c21 = arith.constant 21 : index
    %279 = memref.load %arg1[%c21] : memref<100xf32, #tpu.memory_space<smem>>
    %280 = vector.broadcast %279 : f32 to vector<8x128xf32>
    %281 = arith.mulf %263, %280 : vector<8x128xf32>
    %c21_86 = arith.constant 21 : index
    %282 = memref.load %arg2[%c21_86] : memref<100xf32, #tpu.memory_space<smem>>
    %283 = vector.broadcast %282 : f32 to vector<8x128xf32>
    %284 = arith.addf %281, %283 : vector<8x128xf32>
    %cst_87 = arith.constant 0.000000e+00 : f32
    %285 = vector.broadcast %cst_87 : f32 to vector<8x128xf32>
    %286 = arith.maximumf %284, %285 : vector<8x128xf32>
    %c21_88 = arith.constant 21 : index
    %287 = memref.load %arg3[%c21_88] : memref<100xf32, #tpu.memory_space<smem>>
    %288 = vector.broadcast %287 : f32 to vector<8x128xf32>
    %289 = arith.mulf %286, %288 : vector<8x128xf32>
    %290 = arith.addf %278, %289 : vector<8x128xf32>
    %c22 = arith.constant 22 : index
    %291 = memref.load %arg1[%c22] : memref<100xf32, #tpu.memory_space<smem>>
    %292 = vector.broadcast %291 : f32 to vector<8x128xf32>
    %293 = arith.mulf %263, %292 : vector<8x128xf32>
    %c22_89 = arith.constant 22 : index
    %294 = memref.load %arg2[%c22_89] : memref<100xf32, #tpu.memory_space<smem>>
    %295 = vector.broadcast %294 : f32 to vector<8x128xf32>
    %296 = arith.addf %293, %295 : vector<8x128xf32>
    %cst_90 = arith.constant 0.000000e+00 : f32
    %297 = vector.broadcast %cst_90 : f32 to vector<8x128xf32>
    %298 = arith.maximumf %296, %297 : vector<8x128xf32>
    %c22_91 = arith.constant 22 : index
    %299 = memref.load %arg3[%c22_91] : memref<100xf32, #tpu.memory_space<smem>>
    %300 = vector.broadcast %299 : f32 to vector<8x128xf32>
    %301 = arith.mulf %298, %300 : vector<8x128xf32>
    %302 = arith.addf %290, %301 : vector<8x128xf32>
    %c23 = arith.constant 23 : index
    %303 = memref.load %arg1[%c23] : memref<100xf32, #tpu.memory_space<smem>>
    %304 = vector.broadcast %303 : f32 to vector<8x128xf32>
    %305 = arith.mulf %263, %304 : vector<8x128xf32>
    %c23_92 = arith.constant 23 : index
    %306 = memref.load %arg2[%c23_92] : memref<100xf32, #tpu.memory_space<smem>>
    %307 = vector.broadcast %306 : f32 to vector<8x128xf32>
    %308 = arith.addf %305, %307 : vector<8x128xf32>
    %cst_93 = arith.constant 0.000000e+00 : f32
    %309 = vector.broadcast %cst_93 : f32 to vector<8x128xf32>
    %310 = arith.maximumf %308, %309 : vector<8x128xf32>
    %c23_94 = arith.constant 23 : index
    %311 = memref.load %arg3[%c23_94] : memref<100xf32, #tpu.memory_space<smem>>
    %312 = vector.broadcast %311 : f32 to vector<8x128xf32>
    %313 = arith.mulf %310, %312 : vector<8x128xf32>
    %314 = arith.addf %302, %313 : vector<8x128xf32>
    %c24 = arith.constant 24 : index
    %315 = memref.load %arg1[%c24] : memref<100xf32, #tpu.memory_space<smem>>
    %316 = vector.broadcast %315 : f32 to vector<8x128xf32>
    %317 = arith.mulf %263, %316 : vector<8x128xf32>
    %c24_95 = arith.constant 24 : index
    %318 = memref.load %arg2[%c24_95] : memref<100xf32, #tpu.memory_space<smem>>
    %319 = vector.broadcast %318 : f32 to vector<8x128xf32>
    %320 = arith.addf %317, %319 : vector<8x128xf32>
    %cst_96 = arith.constant 0.000000e+00 : f32
    %321 = vector.broadcast %cst_96 : f32 to vector<8x128xf32>
    %322 = arith.maximumf %320, %321 : vector<8x128xf32>
    %c24_97 = arith.constant 24 : index
    %323 = memref.load %arg3[%c24_97] : memref<100xf32, #tpu.memory_space<smem>>
    %324 = vector.broadcast %323 : f32 to vector<8x128xf32>
    %325 = arith.mulf %322, %324 : vector<8x128xf32>
    %326 = arith.addf %314, %325 : vector<8x128xf32>
    %c25 = arith.constant 25 : index
    %327 = memref.load %arg1[%c25] : memref<100xf32, #tpu.memory_space<smem>>
    %328 = vector.broadcast %327 : f32 to vector<8x128xf32>
    %329 = arith.mulf %263, %328 : vector<8x128xf32>
    %c25_98 = arith.constant 25 : index
    %330 = memref.load %arg2[%c25_98] : memref<100xf32, #tpu.memory_space<smem>>
    %331 = vector.broadcast %330 : f32 to vector<8x128xf32>
    %332 = arith.addf %329, %331 : vector<8x128xf32>
    %cst_99 = arith.constant 0.000000e+00 : f32
    %333 = vector.broadcast %cst_99 : f32 to vector<8x128xf32>
    %334 = arith.maximumf %332, %333 : vector<8x128xf32>
    %c25_100 = arith.constant 25 : index
    %335 = memref.load %arg3[%c25_100] : memref<100xf32, #tpu.memory_space<smem>>
    %336 = vector.broadcast %335 : f32 to vector<8x128xf32>
    %337 = arith.mulf %334, %336 : vector<8x128xf32>
    %338 = arith.addf %326, %337 : vector<8x128xf32>
    %c26 = arith.constant 26 : index
    %339 = memref.load %arg1[%c26] : memref<100xf32, #tpu.memory_space<smem>>
    %340 = vector.broadcast %339 : f32 to vector<8x128xf32>
    %341 = arith.mulf %263, %340 : vector<8x128xf32>
    %c26_101 = arith.constant 26 : index
    %342 = memref.load %arg2[%c26_101] : memref<100xf32, #tpu.memory_space<smem>>
    %343 = vector.broadcast %342 : f32 to vector<8x128xf32>
    %344 = arith.addf %341, %343 : vector<8x128xf32>
    %cst_102 = arith.constant 0.000000e+00 : f32
    %345 = vector.broadcast %cst_102 : f32 to vector<8x128xf32>
    %346 = arith.maximumf %344, %345 : vector<8x128xf32>
    %c26_103 = arith.constant 26 : index
    %347 = memref.load %arg3[%c26_103] : memref<100xf32, #tpu.memory_space<smem>>
    %348 = vector.broadcast %347 : f32 to vector<8x128xf32>
    %349 = arith.mulf %346, %348 : vector<8x128xf32>
    %350 = arith.addf %338, %349 : vector<8x128xf32>
    %c27 = arith.constant 27 : index
    %351 = memref.load %arg1[%c27] : memref<100xf32, #tpu.memory_space<smem>>
    %352 = vector.broadcast %351 : f32 to vector<8x128xf32>
    %353 = arith.mulf %263, %352 : vector<8x128xf32>
    %c27_104 = arith.constant 27 : index
    %354 = memref.load %arg2[%c27_104] : memref<100xf32, #tpu.memory_space<smem>>
    %355 = vector.broadcast %354 : f32 to vector<8x128xf32>
    %356 = arith.addf %353, %355 : vector<8x128xf32>
    %cst_105 = arith.constant 0.000000e+00 : f32
    %357 = vector.broadcast %cst_105 : f32 to vector<8x128xf32>
    %358 = arith.maximumf %356, %357 : vector<8x128xf32>
    %c27_106 = arith.constant 27 : index
    %359 = memref.load %arg3[%c27_106] : memref<100xf32, #tpu.memory_space<smem>>
    %360 = vector.broadcast %359 : f32 to vector<8x128xf32>
    %361 = arith.mulf %358, %360 : vector<8x128xf32>
    %362 = arith.addf %350, %361 : vector<8x128xf32>
    %c28 = arith.constant 28 : index
    %363 = memref.load %arg1[%c28] : memref<100xf32, #tpu.memory_space<smem>>
    %364 = vector.broadcast %363 : f32 to vector<8x128xf32>
    %365 = arith.mulf %263, %364 : vector<8x128xf32>
    %c28_107 = arith.constant 28 : index
    %366 = memref.load %arg2[%c28_107] : memref<100xf32, #tpu.memory_space<smem>>
    %367 = vector.broadcast %366 : f32 to vector<8x128xf32>
    %368 = arith.addf %365, %367 : vector<8x128xf32>
    %cst_108 = arith.constant 0.000000e+00 : f32
    %369 = vector.broadcast %cst_108 : f32 to vector<8x128xf32>
    %370 = arith.maximumf %368, %369 : vector<8x128xf32>
    %c28_109 = arith.constant 28 : index
    %371 = memref.load %arg3[%c28_109] : memref<100xf32, #tpu.memory_space<smem>>
    %372 = vector.broadcast %371 : f32 to vector<8x128xf32>
    %373 = arith.mulf %370, %372 : vector<8x128xf32>
    %374 = arith.addf %362, %373 : vector<8x128xf32>
    %c29 = arith.constant 29 : index
    %375 = memref.load %arg1[%c29] : memref<100xf32, #tpu.memory_space<smem>>
    %376 = vector.broadcast %375 : f32 to vector<8x128xf32>
    %377 = arith.mulf %263, %376 : vector<8x128xf32>
    %c29_110 = arith.constant 29 : index
    %378 = memref.load %arg2[%c29_110] : memref<100xf32, #tpu.memory_space<smem>>
    %379 = vector.broadcast %378 : f32 to vector<8x128xf32>
    %380 = arith.addf %377, %379 : vector<8x128xf32>
    %cst_111 = arith.constant 0.000000e+00 : f32
    %381 = vector.broadcast %cst_111 : f32 to vector<8x128xf32>
    %382 = arith.maximumf %380, %381 : vector<8x128xf32>
    %c29_112 = arith.constant 29 : index
    %383 = memref.load %arg3[%c29_112] : memref<100xf32, #tpu.memory_space<smem>>
    %384 = vector.broadcast %383 : f32 to vector<8x128xf32>
    %385 = arith.mulf %382, %384 : vector<8x128xf32>
    %386 = arith.addf %374, %385 : vector<8x128xf32>
    %c2_113 = arith.constant 2 : index
    %387 = memref.load %arg4[%c2_113] : memref<10xf32, #tpu.memory_space<smem>>
    %388 = vector.broadcast %387 : f32 to vector<8x128xf32>
    %389 = arith.addf %386, %388 : vector<8x128xf32>
    %390 = arith.subf %389, %258 : vector<8x128xf32>
    %391 = arith.mulf %390, %265 : vector<8x128xf32>
    %392 = arith.subf %261, %391 : vector<8x128xf32>
    %c3_114 = arith.constant 3 : index
    %c0_115 = arith.constant 0 : index
    %c0_116 = arith.constant 0 : index
    %393 = vector.load %arg6[%c3_114, %c0_115, %c0_116] : memref<10x8x128xf32, #tpu.memory_space<vmem>>, vector<1x8x128xf32>
    %394 = vector.shape_cast %393 : vector<1x8x128xf32> to vector<8x128xf32>
    %c3_117 = arith.constant 3 : index
    %c0_118 = arith.constant 0 : index
    %c0_119 = arith.constant 0 : index
    %395 = vector.load %arg5[%c3_117, %c0_118, %c0_119] : memref<11x8x128xf32, #tpu.memory_space<vmem>>, vector<1x8x128xf32>
    %396 = vector.shape_cast %395 : vector<1x8x128xf32> to vector<8x128xf32>
    %cst_120 = arith.constant 0.000000e+00 : f32
    %397 = vector.broadcast %cst_120 : f32 to vector<8x128xf32>
    %c30 = arith.constant 30 : index
    %398 = memref.load %arg1[%c30] : memref<100xf32, #tpu.memory_space<smem>>
    %399 = vector.broadcast %398 : f32 to vector<8x128xf32>
    %400 = arith.mulf %394, %399 : vector<8x128xf32>
    %c30_121 = arith.constant 30 : index
    %401 = memref.load %arg2[%c30_121] : memref<100xf32, #tpu.memory_space<smem>>
    %402 = vector.broadcast %401 : f32 to vector<8x128xf32>
    %403 = arith.addf %400, %402 : vector<8x128xf32>
    %cst_122 = arith.constant 0.000000e+00 : f32
    %404 = vector.broadcast %cst_122 : f32 to vector<8x128xf32>
    %405 = arith.maximumf %403, %404 : vector<8x128xf32>
    %c30_123 = arith.constant 30 : index
    %406 = memref.load %arg3[%c30_123] : memref<100xf32, #tpu.memory_space<smem>>
    %407 = vector.broadcast %406 : f32 to vector<8x128xf32>
    %408 = arith.mulf %405, %407 : vector<8x128xf32>
    %409 = arith.addf %397, %408 : vector<8x128xf32>
    %c31 = arith.constant 31 : index
    %410 = memref.load %arg1[%c31] : memref<100xf32, #tpu.memory_space<smem>>
    %411 = vector.broadcast %410 : f32 to vector<8x128xf32>
    %412 = arith.mulf %394, %411 : vector<8x128xf32>
    %c31_124 = arith.constant 31 : index
    %413 = memref.load %arg2[%c31_124] : memref<100xf32, #tpu.memory_space<smem>>
    %414 = vector.broadcast %413 : f32 to vector<8x128xf32>
    %415 = arith.addf %412, %414 : vector<8x128xf32>
    %cst_125 = arith.constant 0.000000e+00 : f32
    %416 = vector.broadcast %cst_125 : f32 to vector<8x128xf32>
    %417 = arith.maximumf %415, %416 : vector<8x128xf32>
    %c31_126 = arith.constant 31 : index
    %418 = memref.load %arg3[%c31_126] : memref<100xf32, #tpu.memory_space<smem>>
    %419 = vector.broadcast %418 : f32 to vector<8x128xf32>
    %420 = arith.mulf %417, %419 : vector<8x128xf32>
    %421 = arith.addf %409, %420 : vector<8x128xf32>
    %c32 = arith.constant 32 : index
    %422 = memref.load %arg1[%c32] : memref<100xf32, #tpu.memory_space<smem>>
    %423 = vector.broadcast %422 : f32 to vector<8x128xf32>
    %424 = arith.mulf %394, %423 : vector<8x128xf32>
    %c32_127 = arith.constant 32 : index
    %425 = memref.load %arg2[%c32_127] : memref<100xf32, #tpu.memory_space<smem>>
    %426 = vector.broadcast %425 : f32 to vector<8x128xf32>
    %427 = arith.addf %424, %426 : vector<8x128xf32>
    %cst_128 = arith.constant 0.000000e+00 : f32
    %428 = vector.broadcast %cst_128 : f32 to vector<8x128xf32>
    %429 = arith.maximumf %427, %428 : vector<8x128xf32>
    %c32_129 = arith.constant 32 : index
    %430 = memref.load %arg3[%c32_129] : memref<100xf32, #tpu.memory_space<smem>>
    %431 = vector.broadcast %430 : f32 to vector<8x128xf32>
    %432 = arith.mulf %429, %431 : vector<8x128xf32>
    %433 = arith.addf %421, %432 : vector<8x128xf32>
    %c33 = arith.constant 33 : index
    %434 = memref.load %arg1[%c33] : memref<100xf32, #tpu.memory_space<smem>>
    %435 = vector.broadcast %434 : f32 to vector<8x128xf32>
    %436 = arith.mulf %394, %435 : vector<8x128xf32>
    %c33_130 = arith.constant 33 : index
    %437 = memref.load %arg2[%c33_130] : memref<100xf32, #tpu.memory_space<smem>>
    %438 = vector.broadcast %437 : f32 to vector<8x128xf32>
    %439 = arith.addf %436, %438 : vector<8x128xf32>
    %cst_131 = arith.constant 0.000000e+00 : f32
    %440 = vector.broadcast %cst_131 : f32 to vector<8x128xf32>
    %441 = arith.maximumf %439, %440 : vector<8x128xf32>
    %c33_132 = arith.constant 33 : index
    %442 = memref.load %arg3[%c33_132] : memref<100xf32, #tpu.memory_space<smem>>
    %443 = vector.broadcast %442 : f32 to vector<8x128xf32>
    %444 = arith.mulf %441, %443 : vector<8x128xf32>
    %445 = arith.addf %433, %444 : vector<8x128xf32>
    %c34 = arith.constant 34 : index
    %446 = memref.load %arg1[%c34] : memref<100xf32, #tpu.memory_space<smem>>
    %447 = vector.broadcast %446 : f32 to vector<8x128xf32>
    %448 = arith.mulf %394, %447 : vector<8x128xf32>
    %c34_133 = arith.constant 34 : index
    %449 = memref.load %arg2[%c34_133] : memref<100xf32, #tpu.memory_space<smem>>
    %450 = vector.broadcast %449 : f32 to vector<8x128xf32>
    %451 = arith.addf %448, %450 : vector<8x128xf32>
    %cst_134 = arith.constant 0.000000e+00 : f32
    %452 = vector.broadcast %cst_134 : f32 to vector<8x128xf32>
    %453 = arith.maximumf %451, %452 : vector<8x128xf32>
    %c34_135 = arith.constant 34 : index
    %454 = memref.load %arg3[%c34_135] : memref<100xf32, #tpu.memory_space<smem>>
    %455 = vector.broadcast %454 : f32 to vector<8x128xf32>
    %456 = arith.mulf %453, %455 : vector<8x128xf32>
    %457 = arith.addf %445, %456 : vector<8x128xf32>
    %c35 = arith.constant 35 : index
    %458 = memref.load %arg1[%c35] : memref<100xf32, #tpu.memory_space<smem>>
    %459 = vector.broadcast %458 : f32 to vector<8x128xf32>
    %460 = arith.mulf %394, %459 : vector<8x128xf32>
    %c35_136 = arith.constant 35 : index
    %461 = memref.load %arg2[%c35_136] : memref<100xf32, #tpu.memory_space<smem>>
    %462 = vector.broadcast %461 : f32 to vector<8x128xf32>
    %463 = arith.addf %460, %462 : vector<8x128xf32>
    %cst_137 = arith.constant 0.000000e+00 : f32
    %464 = vector.broadcast %cst_137 : f32 to vector<8x128xf32>
    %465 = arith.maximumf %463, %464 : vector<8x128xf32>
    %c35_138 = arith.constant 35 : index
    %466 = memref.load %arg3[%c35_138] : memref<100xf32, #tpu.memory_space<smem>>
    %467 = vector.broadcast %466 : f32 to vector<8x128xf32>
    %468 = arith.mulf %465, %467 : vector<8x128xf32>
    %469 = arith.addf %457, %468 : vector<8x128xf32>
    %c36 = arith.constant 36 : index
    %470 = memref.load %arg1[%c36] : memref<100xf32, #tpu.memory_space<smem>>
    %471 = vector.broadcast %470 : f32 to vector<8x128xf32>
    %472 = arith.mulf %394, %471 : vector<8x128xf32>
    %c36_139 = arith.constant 36 : index
    %473 = memref.load %arg2[%c36_139] : memref<100xf32, #tpu.memory_space<smem>>
    %474 = vector.broadcast %473 : f32 to vector<8x128xf32>
    %475 = arith.addf %472, %474 : vector<8x128xf32>
    %cst_140 = arith.constant 0.000000e+00 : f32
    %476 = vector.broadcast %cst_140 : f32 to vector<8x128xf32>
    %477 = arith.maximumf %475, %476 : vector<8x128xf32>
    %c36_141 = arith.constant 36 : index
    %478 = memref.load %arg3[%c36_141] : memref<100xf32, #tpu.memory_space<smem>>
    %479 = vector.broadcast %478 : f32 to vector<8x128xf32>
    %480 = arith.mulf %477, %479 : vector<8x128xf32>
    %481 = arith.addf %469, %480 : vector<8x128xf32>
    %c37 = arith.constant 37 : index
    %482 = memref.load %arg1[%c37] : memref<100xf32, #tpu.memory_space<smem>>
    %483 = vector.broadcast %482 : f32 to vector<8x128xf32>
    %484 = arith.mulf %394, %483 : vector<8x128xf32>
    %c37_142 = arith.constant 37 : index
    %485 = memref.load %arg2[%c37_142] : memref<100xf32, #tpu.memory_space<smem>>
    %486 = vector.broadcast %485 : f32 to vector<8x128xf32>
    %487 = arith.addf %484, %486 : vector<8x128xf32>
    %cst_143 = arith.constant 0.000000e+00 : f32
    %488 = vector.broadcast %cst_143 : f32 to vector<8x128xf32>
    %489 = arith.maximumf %487, %488 : vector<8x128xf32>
    %c37_144 = arith.constant 37 : index
    %490 = memref.load %arg3[%c37_144] : memref<100xf32, #tpu.memory_space<smem>>
    %491 = vector.broadcast %490 : f32 to vector<8x128xf32>
    %492 = arith.mulf %489, %491 : vector<8x128xf32>
    %493 = arith.addf %481, %492 : vector<8x128xf32>
    %c38 = arith.constant 38 : index
    %494 = memref.load %arg1[%c38] : memref<100xf32, #tpu.memory_space<smem>>
    %495 = vector.broadcast %494 : f32 to vector<8x128xf32>
    %496 = arith.mulf %394, %495 : vector<8x128xf32>
    %c38_145 = arith.constant 38 : index
    %497 = memref.load %arg2[%c38_145] : memref<100xf32, #tpu.memory_space<smem>>
    %498 = vector.broadcast %497 : f32 to vector<8x128xf32>
    %499 = arith.addf %496, %498 : vector<8x128xf32>
    %cst_146 = arith.constant 0.000000e+00 : f32
    %500 = vector.broadcast %cst_146 : f32 to vector<8x128xf32>
    %501 = arith.maximumf %499, %500 : vector<8x128xf32>
    %c38_147 = arith.constant 38 : index
    %502 = memref.load %arg3[%c38_147] : memref<100xf32, #tpu.memory_space<smem>>
    %503 = vector.broadcast %502 : f32 to vector<8x128xf32>
    %504 = arith.mulf %501, %503 : vector<8x128xf32>
    %505 = arith.addf %493, %504 : vector<8x128xf32>
    %c39 = arith.constant 39 : index
    %506 = memref.load %arg1[%c39] : memref<100xf32, #tpu.memory_space<smem>>
    %507 = vector.broadcast %506 : f32 to vector<8x128xf32>
    %508 = arith.mulf %394, %507 : vector<8x128xf32>
    %c39_148 = arith.constant 39 : index
    %509 = memref.load %arg2[%c39_148] : memref<100xf32, #tpu.memory_space<smem>>
    %510 = vector.broadcast %509 : f32 to vector<8x128xf32>
    %511 = arith.addf %508, %510 : vector<8x128xf32>
    %cst_149 = arith.constant 0.000000e+00 : f32
    %512 = vector.broadcast %cst_149 : f32 to vector<8x128xf32>
    %513 = arith.maximumf %511, %512 : vector<8x128xf32>
    %c39_150 = arith.constant 39 : index
    %514 = memref.load %arg3[%c39_150] : memref<100xf32, #tpu.memory_space<smem>>
    %515 = vector.broadcast %514 : f32 to vector<8x128xf32>
    %516 = arith.mulf %513, %515 : vector<8x128xf32>
    %517 = arith.addf %505, %516 : vector<8x128xf32>
    %c3_151 = arith.constant 3 : index
    %518 = memref.load %arg4[%c3_151] : memref<10xf32, #tpu.memory_space<smem>>
    %519 = vector.broadcast %518 : f32 to vector<8x128xf32>
    %520 = arith.addf %517, %519 : vector<8x128xf32>
    %521 = arith.subf %520, %389 : vector<8x128xf32>
    %522 = arith.mulf %521, %396 : vector<8x128xf32>
    %523 = arith.subf %392, %522 : vector<8x128xf32>
    %c4_152 = arith.constant 4 : index
    %c0_153 = arith.constant 0 : index
    %c0_154 = arith.constant 0 : index
    %524 = vector.load %arg6[%c4_152, %c0_153, %c0_154] : memref<10x8x128xf32, #tpu.memory_space<vmem>>, vector<1x8x128xf32>
    %525 = vector.shape_cast %524 : vector<1x8x128xf32> to vector<8x128xf32>
    %c4_155 = arith.constant 4 : index
    %c0_156 = arith.constant 0 : index
    %c0_157 = arith.constant 0 : index
    %526 = vector.load %arg5[%c4_155, %c0_156, %c0_157] : memref<11x8x128xf32, #tpu.memory_space<vmem>>, vector<1x8x128xf32>
    %527 = vector.shape_cast %526 : vector<1x8x128xf32> to vector<8x128xf32>
    %cst_158 = arith.constant 0.000000e+00 : f32
    %528 = vector.broadcast %cst_158 : f32 to vector<8x128xf32>
    %c40 = arith.constant 40 : index
    %529 = memref.load %arg1[%c40] : memref<100xf32, #tpu.memory_space<smem>>
    %530 = vector.broadcast %529 : f32 to vector<8x128xf32>
    %531 = arith.mulf %525, %530 : vector<8x128xf32>
    %c40_159 = arith.constant 40 : index
    %532 = memref.load %arg2[%c40_159] : memref<100xf32, #tpu.memory_space<smem>>
    %533 = vector.broadcast %532 : f32 to vector<8x128xf32>
    %534 = arith.addf %531, %533 : vector<8x128xf32>
    %cst_160 = arith.constant 0.000000e+00 : f32
    %535 = vector.broadcast %cst_160 : f32 to vector<8x128xf32>
    %536 = arith.maximumf %534, %535 : vector<8x128xf32>
    %c40_161 = arith.constant 40 : index
    %537 = memref.load %arg3[%c40_161] : memref<100xf32, #tpu.memory_space<smem>>
    %538 = vector.broadcast %537 : f32 to vector<8x128xf32>
    %539 = arith.mulf %536, %538 : vector<8x128xf32>
    %540 = arith.addf %528, %539 : vector<8x128xf32>
    %c41 = arith.constant 41 : index
    %541 = memref.load %arg1[%c41] : memref<100xf32, #tpu.memory_space<smem>>
    %542 = vector.broadcast %541 : f32 to vector<8x128xf32>
    %543 = arith.mulf %525, %542 : vector<8x128xf32>
    %c41_162 = arith.constant 41 : index
    %544 = memref.load %arg2[%c41_162] : memref<100xf32, #tpu.memory_space<smem>>
    %545 = vector.broadcast %544 : f32 to vector<8x128xf32>
    %546 = arith.addf %543, %545 : vector<8x128xf32>
    %cst_163 = arith.constant 0.000000e+00 : f32
    %547 = vector.broadcast %cst_163 : f32 to vector<8x128xf32>
    %548 = arith.maximumf %546, %547 : vector<8x128xf32>
    %c41_164 = arith.constant 41 : index
    %549 = memref.load %arg3[%c41_164] : memref<100xf32, #tpu.memory_space<smem>>
    %550 = vector.broadcast %549 : f32 to vector<8x128xf32>
    %551 = arith.mulf %548, %550 : vector<8x128xf32>
    %552 = arith.addf %540, %551 : vector<8x128xf32>
    %c42 = arith.constant 42 : index
    %553 = memref.load %arg1[%c42] : memref<100xf32, #tpu.memory_space<smem>>
    %554 = vector.broadcast %553 : f32 to vector<8x128xf32>
    %555 = arith.mulf %525, %554 : vector<8x128xf32>
    %c42_165 = arith.constant 42 : index
    %556 = memref.load %arg2[%c42_165] : memref<100xf32, #tpu.memory_space<smem>>
    %557 = vector.broadcast %556 : f32 to vector<8x128xf32>
    %558 = arith.addf %555, %557 : vector<8x128xf32>
    %cst_166 = arith.constant 0.000000e+00 : f32
    %559 = vector.broadcast %cst_166 : f32 to vector<8x128xf32>
    %560 = arith.maximumf %558, %559 : vector<8x128xf32>
    %c42_167 = arith.constant 42 : index
    %561 = memref.load %arg3[%c42_167] : memref<100xf32, #tpu.memory_space<smem>>
    %562 = vector.broadcast %561 : f32 to vector<8x128xf32>
    %563 = arith.mulf %560, %562 : vector<8x128xf32>
    %564 = arith.addf %552, %563 : vector<8x128xf32>
    %c43 = arith.constant 43 : index
    %565 = memref.load %arg1[%c43] : memref<100xf32, #tpu.memory_space<smem>>
    %566 = vector.broadcast %565 : f32 to vector<8x128xf32>
    %567 = arith.mulf %525, %566 : vector<8x128xf32>
    %c43_168 = arith.constant 43 : index
    %568 = memref.load %arg2[%c43_168] : memref<100xf32, #tpu.memory_space<smem>>
    %569 = vector.broadcast %568 : f32 to vector<8x128xf32>
    %570 = arith.addf %567, %569 : vector<8x128xf32>
    %cst_169 = arith.constant 0.000000e+00 : f32
    %571 = vector.broadcast %cst_169 : f32 to vector<8x128xf32>
    %572 = arith.maximumf %570, %571 : vector<8x128xf32>
    %c43_170 = arith.constant 43 : index
    %573 = memref.load %arg3[%c43_170] : memref<100xf32, #tpu.memory_space<smem>>
    %574 = vector.broadcast %573 : f32 to vector<8x128xf32>
    %575 = arith.mulf %572, %574 : vector<8x128xf32>
    %576 = arith.addf %564, %575 : vector<8x128xf32>
    %c44 = arith.constant 44 : index
    %577 = memref.load %arg1[%c44] : memref<100xf32, #tpu.memory_space<smem>>
    %578 = vector.broadcast %577 : f32 to vector<8x128xf32>
    %579 = arith.mulf %525, %578 : vector<8x128xf32>
    %c44_171 = arith.constant 44 : index
    %580 = memref.load %arg2[%c44_171] : memref<100xf32, #tpu.memory_space<smem>>
    %581 = vector.broadcast %580 : f32 to vector<8x128xf32>
    %582 = arith.addf %579, %581 : vector<8x128xf32>
    %cst_172 = arith.constant 0.000000e+00 : f32
    %583 = vector.broadcast %cst_172 : f32 to vector<8x128xf32>
    %584 = arith.maximumf %582, %583 : vector<8x128xf32>
    %c44_173 = arith.constant 44 : index
    %585 = memref.load %arg3[%c44_173] : memref<100xf32, #tpu.memory_space<smem>>
    %586 = vector.broadcast %585 : f32 to vector<8x128xf32>
    %587 = arith.mulf %584, %586 : vector<8x128xf32>
    %588 = arith.addf %576, %587 : vector<8x128xf32>
    %c45 = arith.constant 45 : index
    %589 = memref.load %arg1[%c45] : memref<100xf32, #tpu.memory_space<smem>>
    %590 = vector.broadcast %589 : f32 to vector<8x128xf32>
    %591 = arith.mulf %525, %590 : vector<8x128xf32>
    %c45_174 = arith.constant 45 : index
    %592 = memref.load %arg2[%c45_174] : memref<100xf32, #tpu.memory_space<smem>>
    %593 = vector.broadcast %592 : f32 to vector<8x128xf32>
    %594 = arith.addf %591, %593 : vector<8x128xf32>
    %cst_175 = arith.constant 0.000000e+00 : f32
    %595 = vector.broadcast %cst_175 : f32 to vector<8x128xf32>
    %596 = arith.maximumf %594, %595 : vector<8x128xf32>
    %c45_176 = arith.constant 45 : index
    %597 = memref.load %arg3[%c45_176] : memref<100xf32, #tpu.memory_space<smem>>
    %598 = vector.broadcast %597 : f32 to vector<8x128xf32>
    %599 = arith.mulf %596, %598 : vector<8x128xf32>
    %600 = arith.addf %588, %599 : vector<8x128xf32>
    %c46 = arith.constant 46 : index
    %601 = memref.load %arg1[%c46] : memref<100xf32, #tpu.memory_space<smem>>
    %602 = vector.broadcast %601 : f32 to vector<8x128xf32>
    %603 = arith.mulf %525, %602 : vector<8x128xf32>
    %c46_177 = arith.constant 46 : index
    %604 = memref.load %arg2[%c46_177] : memref<100xf32, #tpu.memory_space<smem>>
    %605 = vector.broadcast %604 : f32 to vector<8x128xf32>
    %606 = arith.addf %603, %605 : vector<8x128xf32>
    %cst_178 = arith.constant 0.000000e+00 : f32
    %607 = vector.broadcast %cst_178 : f32 to vector<8x128xf32>
    %608 = arith.maximumf %606, %607 : vector<8x128xf32>
    %c46_179 = arith.constant 46 : index
    %609 = memref.load %arg3[%c46_179] : memref<100xf32, #tpu.memory_space<smem>>
    %610 = vector.broadcast %609 : f32 to vector<8x128xf32>
    %611 = arith.mulf %608, %610 : vector<8x128xf32>
    %612 = arith.addf %600, %611 : vector<8x128xf32>
    %c47 = arith.constant 47 : index
    %613 = memref.load %arg1[%c47] : memref<100xf32, #tpu.memory_space<smem>>
    %614 = vector.broadcast %613 : f32 to vector<8x128xf32>
    %615 = arith.mulf %525, %614 : vector<8x128xf32>
    %c47_180 = arith.constant 47 : index
    %616 = memref.load %arg2[%c47_180] : memref<100xf32, #tpu.memory_space<smem>>
    %617 = vector.broadcast %616 : f32 to vector<8x128xf32>
    %618 = arith.addf %615, %617 : vector<8x128xf32>
    %cst_181 = arith.constant 0.000000e+00 : f32
    %619 = vector.broadcast %cst_181 : f32 to vector<8x128xf32>
    %620 = arith.maximumf %618, %619 : vector<8x128xf32>
    %c47_182 = arith.constant 47 : index
    %621 = memref.load %arg3[%c47_182] : memref<100xf32, #tpu.memory_space<smem>>
    %622 = vector.broadcast %621 : f32 to vector<8x128xf32>
    %623 = arith.mulf %620, %622 : vector<8x128xf32>
    %624 = arith.addf %612, %623 : vector<8x128xf32>
    %c48 = arith.constant 48 : index
    %625 = memref.load %arg1[%c48] : memref<100xf32, #tpu.memory_space<smem>>
    %626 = vector.broadcast %625 : f32 to vector<8x128xf32>
    %627 = arith.mulf %525, %626 : vector<8x128xf32>
    %c48_183 = arith.constant 48 : index
    %628 = memref.load %arg2[%c48_183] : memref<100xf32, #tpu.memory_space<smem>>
    %629 = vector.broadcast %628 : f32 to vector<8x128xf32>
    %630 = arith.addf %627, %629 : vector<8x128xf32>
    %cst_184 = arith.constant 0.000000e+00 : f32
    %631 = vector.broadcast %cst_184 : f32 to vector<8x128xf32>
    %632 = arith.maximumf %630, %631 : vector<8x128xf32>
    %c48_185 = arith.constant 48 : index
    %633 = memref.load %arg3[%c48_185] : memref<100xf32, #tpu.memory_space<smem>>
    %634 = vector.broadcast %633 : f32 to vector<8x128xf32>
    %635 = arith.mulf %632, %634 : vector<8x128xf32>
    %636 = arith.addf %624, %635 : vector<8x128xf32>
    %c49 = arith.constant 49 : index
    %637 = memref.load %arg1[%c49] : memref<100xf32, #tpu.memory_space<smem>>
    %638 = vector.broadcast %637 : f32 to vector<8x128xf32>
    %639 = arith.mulf %525, %638 : vector<8x128xf32>
    %c49_186 = arith.constant 49 : index
    %640 = memref.load %arg2[%c49_186] : memref<100xf32, #tpu.memory_space<smem>>
    %641 = vector.broadcast %640 : f32 to vector<8x128xf32>
    %642 = arith.addf %639, %641 : vector<8x128xf32>
    %cst_187 = arith.constant 0.000000e+00 : f32
    %643 = vector.broadcast %cst_187 : f32 to vector<8x128xf32>
    %644 = arith.maximumf %642, %643 : vector<8x128xf32>
    %c49_188 = arith.constant 49 : index
    %645 = memref.load %arg3[%c49_188] : memref<100xf32, #tpu.memory_space<smem>>
    %646 = vector.broadcast %645 : f32 to vector<8x128xf32>
    %647 = arith.mulf %644, %646 : vector<8x128xf32>
    %648 = arith.addf %636, %647 : vector<8x128xf32>
    %c4_189 = arith.constant 4 : index
    %649 = memref.load %arg4[%c4_189] : memref<10xf32, #tpu.memory_space<smem>>
    %650 = vector.broadcast %649 : f32 to vector<8x128xf32>
    %651 = arith.addf %648, %650 : vector<8x128xf32>
    %652 = arith.subf %651, %520 : vector<8x128xf32>
    %653 = arith.mulf %652, %527 : vector<8x128xf32>
    %654 = arith.subf %523, %653 : vector<8x128xf32>
    %c5_190 = arith.constant 5 : index
    %c0_191 = arith.constant 0 : index
    %c0_192 = arith.constant 0 : index
    %655 = vector.load %arg6[%c5_190, %c0_191, %c0_192] : memref<10x8x128xf32, #tpu.memory_space<vmem>>, vector<1x8x128xf32>
    %656 = vector.shape_cast %655 : vector<1x8x128xf32> to vector<8x128xf32>
    %c5_193 = arith.constant 5 : index
    %c0_194 = arith.constant 0 : index
    %c0_195 = arith.constant 0 : index
    %657 = vector.load %arg5[%c5_193, %c0_194, %c0_195] : memref<11x8x128xf32, #tpu.memory_space<vmem>>, vector<1x8x128xf32>
    %658 = vector.shape_cast %657 : vector<1x8x128xf32> to vector<8x128xf32>
    %cst_196 = arith.constant 0.000000e+00 : f32
    %659 = vector.broadcast %cst_196 : f32 to vector<8x128xf32>
    %c50 = arith.constant 50 : index
    %660 = memref.load %arg1[%c50] : memref<100xf32, #tpu.memory_space<smem>>
    %661 = vector.broadcast %660 : f32 to vector<8x128xf32>
    %662 = arith.mulf %656, %661 : vector<8x128xf32>
    %c50_197 = arith.constant 50 : index
    %663 = memref.load %arg2[%c50_197] : memref<100xf32, #tpu.memory_space<smem>>
    %664 = vector.broadcast %663 : f32 to vector<8x128xf32>
    %665 = arith.addf %662, %664 : vector<8x128xf32>
    %cst_198 = arith.constant 0.000000e+00 : f32
    %666 = vector.broadcast %cst_198 : f32 to vector<8x128xf32>
    %667 = arith.maximumf %665, %666 : vector<8x128xf32>
    %c50_199 = arith.constant 50 : index
    %668 = memref.load %arg3[%c50_199] : memref<100xf32, #tpu.memory_space<smem>>
    %669 = vector.broadcast %668 : f32 to vector<8x128xf32>
    %670 = arith.mulf %667, %669 : vector<8x128xf32>
    %671 = arith.addf %659, %670 : vector<8x128xf32>
    %c51 = arith.constant 51 : index
    %672 = memref.load %arg1[%c51] : memref<100xf32, #tpu.memory_space<smem>>
    %673 = vector.broadcast %672 : f32 to vector<8x128xf32>
    %674 = arith.mulf %656, %673 : vector<8x128xf32>
    %c51_200 = arith.constant 51 : index
    %675 = memref.load %arg2[%c51_200] : memref<100xf32, #tpu.memory_space<smem>>
    %676 = vector.broadcast %675 : f32 to vector<8x128xf32>
    %677 = arith.addf %674, %676 : vector<8x128xf32>
    %cst_201 = arith.constant 0.000000e+00 : f32
    %678 = vector.broadcast %cst_201 : f32 to vector<8x128xf32>
    %679 = arith.maximumf %677, %678 : vector<8x128xf32>
    %c51_202 = arith.constant 51 : index
    %680 = memref.load %arg3[%c51_202] : memref<100xf32, #tpu.memory_space<smem>>
    %681 = vector.broadcast %680 : f32 to vector<8x128xf32>
    %682 = arith.mulf %679, %681 : vector<8x128xf32>
    %683 = arith.addf %671, %682 : vector<8x128xf32>
    %c52 = arith.constant 52 : index
    %684 = memref.load %arg1[%c52] : memref<100xf32, #tpu.memory_space<smem>>
    %685 = vector.broadcast %684 : f32 to vector<8x128xf32>
    %686 = arith.mulf %656, %685 : vector<8x128xf32>
    %c52_203 = arith.constant 52 : index
    %687 = memref.load %arg2[%c52_203] : memref<100xf32, #tpu.memory_space<smem>>
    %688 = vector.broadcast %687 : f32 to vector<8x128xf32>
    %689 = arith.addf %686, %688 : vector<8x128xf32>
    %cst_204 = arith.constant 0.000000e+00 : f32
    %690 = vector.broadcast %cst_204 : f32 to vector<8x128xf32>
    %691 = arith.maximumf %689, %690 : vector<8x128xf32>
    %c52_205 = arith.constant 52 : index
    %692 = memref.load %arg3[%c52_205] : memref<100xf32, #tpu.memory_space<smem>>
    %693 = vector.broadcast %692 : f32 to vector<8x128xf32>
    %694 = arith.mulf %691, %693 : vector<8x128xf32>
    %695 = arith.addf %683, %694 : vector<8x128xf32>
    %c53 = arith.constant 53 : index
    %696 = memref.load %arg1[%c53] : memref<100xf32, #tpu.memory_space<smem>>
    %697 = vector.broadcast %696 : f32 to vector<8x128xf32>
    %698 = arith.mulf %656, %697 : vector<8x128xf32>
    %c53_206 = arith.constant 53 : index
    %699 = memref.load %arg2[%c53_206] : memref<100xf32, #tpu.memory_space<smem>>
    %700 = vector.broadcast %699 : f32 to vector<8x128xf32>
    %701 = arith.addf %698, %700 : vector<8x128xf32>
    %cst_207 = arith.constant 0.000000e+00 : f32
    %702 = vector.broadcast %cst_207 : f32 to vector<8x128xf32>
    %703 = arith.maximumf %701, %702 : vector<8x128xf32>
    %c53_208 = arith.constant 53 : index
    %704 = memref.load %arg3[%c53_208] : memref<100xf32, #tpu.memory_space<smem>>
    %705 = vector.broadcast %704 : f32 to vector<8x128xf32>
    %706 = arith.mulf %703, %705 : vector<8x128xf32>
    %707 = arith.addf %695, %706 : vector<8x128xf32>
    %c54 = arith.constant 54 : index
    %708 = memref.load %arg1[%c54] : memref<100xf32, #tpu.memory_space<smem>>
    %709 = vector.broadcast %708 : f32 to vector<8x128xf32>
    %710 = arith.mulf %656, %709 : vector<8x128xf32>
    %c54_209 = arith.constant 54 : index
    %711 = memref.load %arg2[%c54_209] : memref<100xf32, #tpu.memory_space<smem>>
    %712 = vector.broadcast %711 : f32 to vector<8x128xf32>
    %713 = arith.addf %710, %712 : vector<8x128xf32>
    %cst_210 = arith.constant 0.000000e+00 : f32
    %714 = vector.broadcast %cst_210 : f32 to vector<8x128xf32>
    %715 = arith.maximumf %713, %714 : vector<8x128xf32>
    %c54_211 = arith.constant 54 : index
    %716 = memref.load %arg3[%c54_211] : memref<100xf32, #tpu.memory_space<smem>>
    %717 = vector.broadcast %716 : f32 to vector<8x128xf32>
    %718 = arith.mulf %715, %717 : vector<8x128xf32>
    %719 = arith.addf %707, %718 : vector<8x128xf32>
    %c55 = arith.constant 55 : index
    %720 = memref.load %arg1[%c55] : memref<100xf32, #tpu.memory_space<smem>>
    %721 = vector.broadcast %720 : f32 to vector<8x128xf32>
    %722 = arith.mulf %656, %721 : vector<8x128xf32>
    %c55_212 = arith.constant 55 : index
    %723 = memref.load %arg2[%c55_212] : memref<100xf32, #tpu.memory_space<smem>>
    %724 = vector.broadcast %723 : f32 to vector<8x128xf32>
    %725 = arith.addf %722, %724 : vector<8x128xf32>
    %cst_213 = arith.constant 0.000000e+00 : f32
    %726 = vector.broadcast %cst_213 : f32 to vector<8x128xf32>
    %727 = arith.maximumf %725, %726 : vector<8x128xf32>
    %c55_214 = arith.constant 55 : index
    %728 = memref.load %arg3[%c55_214] : memref<100xf32, #tpu.memory_space<smem>>
    %729 = vector.broadcast %728 : f32 to vector<8x128xf32>
    %730 = arith.mulf %727, %729 : vector<8x128xf32>
    %731 = arith.addf %719, %730 : vector<8x128xf32>
    %c56 = arith.constant 56 : index
    %732 = memref.load %arg1[%c56] : memref<100xf32, #tpu.memory_space<smem>>
    %733 = vector.broadcast %732 : f32 to vector<8x128xf32>
    %734 = arith.mulf %656, %733 : vector<8x128xf32>
    %c56_215 = arith.constant 56 : index
    %735 = memref.load %arg2[%c56_215] : memref<100xf32, #tpu.memory_space<smem>>
    %736 = vector.broadcast %735 : f32 to vector<8x128xf32>
    %737 = arith.addf %734, %736 : vector<8x128xf32>
    %cst_216 = arith.constant 0.000000e+00 : f32
    %738 = vector.broadcast %cst_216 : f32 to vector<8x128xf32>
    %739 = arith.maximumf %737, %738 : vector<8x128xf32>
    %c56_217 = arith.constant 56 : index
    %740 = memref.load %arg3[%c56_217] : memref<100xf32, #tpu.memory_space<smem>>
    %741 = vector.broadcast %740 : f32 to vector<8x128xf32>
    %742 = arith.mulf %739, %741 : vector<8x128xf32>
    %743 = arith.addf %731, %742 : vector<8x128xf32>
    %c57 = arith.constant 57 : index
    %744 = memref.load %arg1[%c57] : memref<100xf32, #tpu.memory_space<smem>>
    %745 = vector.broadcast %744 : f32 to vector<8x128xf32>
    %746 = arith.mulf %656, %745 : vector<8x128xf32>
    %c57_218 = arith.constant 57 : index
    %747 = memref.load %arg2[%c57_218] : memref<100xf32, #tpu.memory_space<smem>>
    %748 = vector.broadcast %747 : f32 to vector<8x128xf32>
    %749 = arith.addf %746, %748 : vector<8x128xf32>
    %cst_219 = arith.constant 0.000000e+00 : f32
    %750 = vector.broadcast %cst_219 : f32 to vector<8x128xf32>
    %751 = arith.maximumf %749, %750 : vector<8x128xf32>
    %c57_220 = arith.constant 57 : index
    %752 = memref.load %arg3[%c57_220] : memref<100xf32, #tpu.memory_space<smem>>
    %753 = vector.broadcast %752 : f32 to vector<8x128xf32>
    %754 = arith.mulf %751, %753 : vector<8x128xf32>
    %755 = arith.addf %743, %754 : vector<8x128xf32>
    %c58 = arith.constant 58 : index
    %756 = memref.load %arg1[%c58] : memref<100xf32, #tpu.memory_space<smem>>
    %757 = vector.broadcast %756 : f32 to vector<8x128xf32>
    %758 = arith.mulf %656, %757 : vector<8x128xf32>
    %c58_221 = arith.constant 58 : index
    %759 = memref.load %arg2[%c58_221] : memref<100xf32, #tpu.memory_space<smem>>
    %760 = vector.broadcast %759 : f32 to vector<8x128xf32>
    %761 = arith.addf %758, %760 : vector<8x128xf32>
    %cst_222 = arith.constant 0.000000e+00 : f32
    %762 = vector.broadcast %cst_222 : f32 to vector<8x128xf32>
    %763 = arith.maximumf %761, %762 : vector<8x128xf32>
    %c58_223 = arith.constant 58 : index
    %764 = memref.load %arg3[%c58_223] : memref<100xf32, #tpu.memory_space<smem>>
    %765 = vector.broadcast %764 : f32 to vector<8x128xf32>
    %766 = arith.mulf %763, %765 : vector<8x128xf32>
    %767 = arith.addf %755, %766 : vector<8x128xf32>
    %c59 = arith.constant 59 : index
    %768 = memref.load %arg1[%c59] : memref<100xf32, #tpu.memory_space<smem>>
    %769 = vector.broadcast %768 : f32 to vector<8x128xf32>
    %770 = arith.mulf %656, %769 : vector<8x128xf32>
    %c59_224 = arith.constant 59 : index
    %771 = memref.load %arg2[%c59_224] : memref<100xf32, #tpu.memory_space<smem>>
    %772 = vector.broadcast %771 : f32 to vector<8x128xf32>
    %773 = arith.addf %770, %772 : vector<8x128xf32>
    %cst_225 = arith.constant 0.000000e+00 : f32
    %774 = vector.broadcast %cst_225 : f32 to vector<8x128xf32>
    %775 = arith.maximumf %773, %774 : vector<8x128xf32>
    %c59_226 = arith.constant 59 : index
    %776 = memref.load %arg3[%c59_226] : memref<100xf32, #tpu.memory_space<smem>>
    %777 = vector.broadcast %776 : f32 to vector<8x128xf32>
    %778 = arith.mulf %775, %777 : vector<8x128xf32>
    %779 = arith.addf %767, %778 : vector<8x128xf32>
    %c5_227 = arith.constant 5 : index
    %780 = memref.load %arg4[%c5_227] : memref<10xf32, #tpu.memory_space<smem>>
    %781 = vector.broadcast %780 : f32 to vector<8x128xf32>
    %782 = arith.addf %779, %781 : vector<8x128xf32>
    %783 = arith.subf %782, %651 : vector<8x128xf32>
    %784 = arith.mulf %783, %658 : vector<8x128xf32>
    %785 = arith.subf %654, %784 : vector<8x128xf32>
    %c6_228 = arith.constant 6 : index
    %c0_229 = arith.constant 0 : index
    %c0_230 = arith.constant 0 : index
    %786 = vector.load %arg6[%c6_228, %c0_229, %c0_230] : memref<10x8x128xf32, #tpu.memory_space<vmem>>, vector<1x8x128xf32>
    %787 = vector.shape_cast %786 : vector<1x8x128xf32> to vector<8x128xf32>
    %c6_231 = arith.constant 6 : index
    %c0_232 = arith.constant 0 : index
    %c0_233 = arith.constant 0 : index
    %788 = vector.load %arg5[%c6_231, %c0_232, %c0_233] : memref<11x8x128xf32, #tpu.memory_space<vmem>>, vector<1x8x128xf32>
    %789 = vector.shape_cast %788 : vector<1x8x128xf32> to vector<8x128xf32>
    %cst_234 = arith.constant 0.000000e+00 : f32
    %790 = vector.broadcast %cst_234 : f32 to vector<8x128xf32>
    %c60 = arith.constant 60 : index
    %791 = memref.load %arg1[%c60] : memref<100xf32, #tpu.memory_space<smem>>
    %792 = vector.broadcast %791 : f32 to vector<8x128xf32>
    %793 = arith.mulf %787, %792 : vector<8x128xf32>
    %c60_235 = arith.constant 60 : index
    %794 = memref.load %arg2[%c60_235] : memref<100xf32, #tpu.memory_space<smem>>
    %795 = vector.broadcast %794 : f32 to vector<8x128xf32>
    %796 = arith.addf %793, %795 : vector<8x128xf32>
    %cst_236 = arith.constant 0.000000e+00 : f32
    %797 = vector.broadcast %cst_236 : f32 to vector<8x128xf32>
    %798 = arith.maximumf %796, %797 : vector<8x128xf32>
    %c60_237 = arith.constant 60 : index
    %799 = memref.load %arg3[%c60_237] : memref<100xf32, #tpu.memory_space<smem>>
    %800 = vector.broadcast %799 : f32 to vector<8x128xf32>
    %801 = arith.mulf %798, %800 : vector<8x128xf32>
    %802 = arith.addf %790, %801 : vector<8x128xf32>
    %c61 = arith.constant 61 : index
    %803 = memref.load %arg1[%c61] : memref<100xf32, #tpu.memory_space<smem>>
    %804 = vector.broadcast %803 : f32 to vector<8x128xf32>
    %805 = arith.mulf %787, %804 : vector<8x128xf32>
    %c61_238 = arith.constant 61 : index
    %806 = memref.load %arg2[%c61_238] : memref<100xf32, #tpu.memory_space<smem>>
    %807 = vector.broadcast %806 : f32 to vector<8x128xf32>
    %808 = arith.addf %805, %807 : vector<8x128xf32>
    %cst_239 = arith.constant 0.000000e+00 : f32
    %809 = vector.broadcast %cst_239 : f32 to vector<8x128xf32>
    %810 = arith.maximumf %808, %809 : vector<8x128xf32>
    %c61_240 = arith.constant 61 : index
    %811 = memref.load %arg3[%c61_240] : memref<100xf32, #tpu.memory_space<smem>>
    %812 = vector.broadcast %811 : f32 to vector<8x128xf32>
    %813 = arith.mulf %810, %812 : vector<8x128xf32>
    %814 = arith.addf %802, %813 : vector<8x128xf32>
    %c62 = arith.constant 62 : index
    %815 = memref.load %arg1[%c62] : memref<100xf32, #tpu.memory_space<smem>>
    %816 = vector.broadcast %815 : f32 to vector<8x128xf32>
    %817 = arith.mulf %787, %816 : vector<8x128xf32>
    %c62_241 = arith.constant 62 : index
    %818 = memref.load %arg2[%c62_241] : memref<100xf32, #tpu.memory_space<smem>>
    %819 = vector.broadcast %818 : f32 to vector<8x128xf32>
    %820 = arith.addf %817, %819 : vector<8x128xf32>
    %cst_242 = arith.constant 0.000000e+00 : f32
    %821 = vector.broadcast %cst_242 : f32 to vector<8x128xf32>
    %822 = arith.maximumf %820, %821 : vector<8x128xf32>
    %c62_243 = arith.constant 62 : index
    %823 = memref.load %arg3[%c62_243] : memref<100xf32, #tpu.memory_space<smem>>
    %824 = vector.broadcast %823 : f32 to vector<8x128xf32>
    %825 = arith.mulf %822, %824 : vector<8x128xf32>
    %826 = arith.addf %814, %825 : vector<8x128xf32>
    %c63 = arith.constant 63 : index
    %827 = memref.load %arg1[%c63] : memref<100xf32, #tpu.memory_space<smem>>
    %828 = vector.broadcast %827 : f32 to vector<8x128xf32>
    %829 = arith.mulf %787, %828 : vector<8x128xf32>
    %c63_244 = arith.constant 63 : index
    %830 = memref.load %arg2[%c63_244] : memref<100xf32, #tpu.memory_space<smem>>
    %831 = vector.broadcast %830 : f32 to vector<8x128xf32>
    %832 = arith.addf %829, %831 : vector<8x128xf32>
    %cst_245 = arith.constant 0.000000e+00 : f32
    %833 = vector.broadcast %cst_245 : f32 to vector<8x128xf32>
    %834 = arith.maximumf %832, %833 : vector<8x128xf32>
    %c63_246 = arith.constant 63 : index
    %835 = memref.load %arg3[%c63_246] : memref<100xf32, #tpu.memory_space<smem>>
    %836 = vector.broadcast %835 : f32 to vector<8x128xf32>
    %837 = arith.mulf %834, %836 : vector<8x128xf32>
    %838 = arith.addf %826, %837 : vector<8x128xf32>
    %c64 = arith.constant 64 : index
    %839 = memref.load %arg1[%c64] : memref<100xf32, #tpu.memory_space<smem>>
    %840 = vector.broadcast %839 : f32 to vector<8x128xf32>
    %841 = arith.mulf %787, %840 : vector<8x128xf32>
    %c64_247 = arith.constant 64 : index
    %842 = memref.load %arg2[%c64_247] : memref<100xf32, #tpu.memory_space<smem>>
    %843 = vector.broadcast %842 : f32 to vector<8x128xf32>
    %844 = arith.addf %841, %843 : vector<8x128xf32>
    %cst_248 = arith.constant 0.000000e+00 : f32
    %845 = vector.broadcast %cst_248 : f32 to vector<8x128xf32>
    %846 = arith.maximumf %844, %845 : vector<8x128xf32>
    %c64_249 = arith.constant 64 : index
    %847 = memref.load %arg3[%c64_249] : memref<100xf32, #tpu.memory_space<smem>>
    %848 = vector.broadcast %847 : f32 to vector<8x128xf32>
    %849 = arith.mulf %846, %848 : vector<8x128xf32>
    %850 = arith.addf %838, %849 : vector<8x128xf32>
    %c65 = arith.constant 65 : index
    %851 = memref.load %arg1[%c65] : memref<100xf32, #tpu.memory_space<smem>>
    %852 = vector.broadcast %851 : f32 to vector<8x128xf32>
    %853 = arith.mulf %787, %852 : vector<8x128xf32>
    %c65_250 = arith.constant 65 : index
    %854 = memref.load %arg2[%c65_250] : memref<100xf32, #tpu.memory_space<smem>>
    %855 = vector.broadcast %854 : f32 to vector<8x128xf32>
    %856 = arith.addf %853, %855 : vector<8x128xf32>
    %cst_251 = arith.constant 0.000000e+00 : f32
    %857 = vector.broadcast %cst_251 : f32 to vector<8x128xf32>
    %858 = arith.maximumf %856, %857 : vector<8x128xf32>
    %c65_252 = arith.constant 65 : index
    %859 = memref.load %arg3[%c65_252] : memref<100xf32, #tpu.memory_space<smem>>
    %860 = vector.broadcast %859 : f32 to vector<8x128xf32>
    %861 = arith.mulf %858, %860 : vector<8x128xf32>
    %862 = arith.addf %850, %861 : vector<8x128xf32>
    %c66 = arith.constant 66 : index
    %863 = memref.load %arg1[%c66] : memref<100xf32, #tpu.memory_space<smem>>
    %864 = vector.broadcast %863 : f32 to vector<8x128xf32>
    %865 = arith.mulf %787, %864 : vector<8x128xf32>
    %c66_253 = arith.constant 66 : index
    %866 = memref.load %arg2[%c66_253] : memref<100xf32, #tpu.memory_space<smem>>
    %867 = vector.broadcast %866 : f32 to vector<8x128xf32>
    %868 = arith.addf %865, %867 : vector<8x128xf32>
    %cst_254 = arith.constant 0.000000e+00 : f32
    %869 = vector.broadcast %cst_254 : f32 to vector<8x128xf32>
    %870 = arith.maximumf %868, %869 : vector<8x128xf32>
    %c66_255 = arith.constant 66 : index
    %871 = memref.load %arg3[%c66_255] : memref<100xf32, #tpu.memory_space<smem>>
    %872 = vector.broadcast %871 : f32 to vector<8x128xf32>
    %873 = arith.mulf %870, %872 : vector<8x128xf32>
    %874 = arith.addf %862, %873 : vector<8x128xf32>
    %c67 = arith.constant 67 : index
    %875 = memref.load %arg1[%c67] : memref<100xf32, #tpu.memory_space<smem>>
    %876 = vector.broadcast %875 : f32 to vector<8x128xf32>
    %877 = arith.mulf %787, %876 : vector<8x128xf32>
    %c67_256 = arith.constant 67 : index
    %878 = memref.load %arg2[%c67_256] : memref<100xf32, #tpu.memory_space<smem>>
    %879 = vector.broadcast %878 : f32 to vector<8x128xf32>
    %880 = arith.addf %877, %879 : vector<8x128xf32>
    %cst_257 = arith.constant 0.000000e+00 : f32
    %881 = vector.broadcast %cst_257 : f32 to vector<8x128xf32>
    %882 = arith.maximumf %880, %881 : vector<8x128xf32>
    %c67_258 = arith.constant 67 : index
    %883 = memref.load %arg3[%c67_258] : memref<100xf32, #tpu.memory_space<smem>>
    %884 = vector.broadcast %883 : f32 to vector<8x128xf32>
    %885 = arith.mulf %882, %884 : vector<8x128xf32>
    %886 = arith.addf %874, %885 : vector<8x128xf32>
    %c68 = arith.constant 68 : index
    %887 = memref.load %arg1[%c68] : memref<100xf32, #tpu.memory_space<smem>>
    %888 = vector.broadcast %887 : f32 to vector<8x128xf32>
    %889 = arith.mulf %787, %888 : vector<8x128xf32>
    %c68_259 = arith.constant 68 : index
    %890 = memref.load %arg2[%c68_259] : memref<100xf32, #tpu.memory_space<smem>>
    %891 = vector.broadcast %890 : f32 to vector<8x128xf32>
    %892 = arith.addf %889, %891 : vector<8x128xf32>
    %cst_260 = arith.constant 0.000000e+00 : f32
    %893 = vector.broadcast %cst_260 : f32 to vector<8x128xf32>
    %894 = arith.maximumf %892, %893 : vector<8x128xf32>
    %c68_261 = arith.constant 68 : index
    %895 = memref.load %arg3[%c68_261] : memref<100xf32, #tpu.memory_space<smem>>
    %896 = vector.broadcast %895 : f32 to vector<8x128xf32>
    %897 = arith.mulf %894, %896 : vector<8x128xf32>
    %898 = arith.addf %886, %897 : vector<8x128xf32>
    %c69 = arith.constant 69 : index
    %899 = memref.load %arg1[%c69] : memref<100xf32, #tpu.memory_space<smem>>
    %900 = vector.broadcast %899 : f32 to vector<8x128xf32>
    %901 = arith.mulf %787, %900 : vector<8x128xf32>
    %c69_262 = arith.constant 69 : index
    %902 = memref.load %arg2[%c69_262] : memref<100xf32, #tpu.memory_space<smem>>
    %903 = vector.broadcast %902 : f32 to vector<8x128xf32>
    %904 = arith.addf %901, %903 : vector<8x128xf32>
    %cst_263 = arith.constant 0.000000e+00 : f32
    %905 = vector.broadcast %cst_263 : f32 to vector<8x128xf32>
    %906 = arith.maximumf %904, %905 : vector<8x128xf32>
    %c69_264 = arith.constant 69 : index
    %907 = memref.load %arg3[%c69_264] : memref<100xf32, #tpu.memory_space<smem>>
    %908 = vector.broadcast %907 : f32 to vector<8x128xf32>
    %909 = arith.mulf %906, %908 : vector<8x128xf32>
    %910 = arith.addf %898, %909 : vector<8x128xf32>
    %c6_265 = arith.constant 6 : index
    %911 = memref.load %arg4[%c6_265] : memref<10xf32, #tpu.memory_space<smem>>
    %912 = vector.broadcast %911 : f32 to vector<8x128xf32>
    %913 = arith.addf %910, %912 : vector<8x128xf32>
    %914 = arith.subf %913, %782 : vector<8x128xf32>
    %915 = arith.mulf %914, %789 : vector<8x128xf32>
    %916 = arith.subf %785, %915 : vector<8x128xf32>
    %c7_266 = arith.constant 7 : index
    %c0_267 = arith.constant 0 : index
    %c0_268 = arith.constant 0 : index
    %917 = vector.load %arg6[%c7_266, %c0_267, %c0_268] : memref<10x8x128xf32, #tpu.memory_space<vmem>>, vector<1x8x128xf32>
    %918 = vector.shape_cast %917 : vector<1x8x128xf32> to vector<8x128xf32>
    %c7_269 = arith.constant 7 : index
    %c0_270 = arith.constant 0 : index
    %c0_271 = arith.constant 0 : index
    %919 = vector.load %arg5[%c7_269, %c0_270, %c0_271] : memref<11x8x128xf32, #tpu.memory_space<vmem>>, vector<1x8x128xf32>
    %920 = vector.shape_cast %919 : vector<1x8x128xf32> to vector<8x128xf32>
    %cst_272 = arith.constant 0.000000e+00 : f32
    %921 = vector.broadcast %cst_272 : f32 to vector<8x128xf32>
    %c70 = arith.constant 70 : index
    %922 = memref.load %arg1[%c70] : memref<100xf32, #tpu.memory_space<smem>>
    %923 = vector.broadcast %922 : f32 to vector<8x128xf32>
    %924 = arith.mulf %918, %923 : vector<8x128xf32>
    %c70_273 = arith.constant 70 : index
    %925 = memref.load %arg2[%c70_273] : memref<100xf32, #tpu.memory_space<smem>>
    %926 = vector.broadcast %925 : f32 to vector<8x128xf32>
    %927 = arith.addf %924, %926 : vector<8x128xf32>
    %cst_274 = arith.constant 0.000000e+00 : f32
    %928 = vector.broadcast %cst_274 : f32 to vector<8x128xf32>
    %929 = arith.maximumf %927, %928 : vector<8x128xf32>
    %c70_275 = arith.constant 70 : index
    %930 = memref.load %arg3[%c70_275] : memref<100xf32, #tpu.memory_space<smem>>
    %931 = vector.broadcast %930 : f32 to vector<8x128xf32>
    %932 = arith.mulf %929, %931 : vector<8x128xf32>
    %933 = arith.addf %921, %932 : vector<8x128xf32>
    %c71 = arith.constant 71 : index
    %934 = memref.load %arg1[%c71] : memref<100xf32, #tpu.memory_space<smem>>
    %935 = vector.broadcast %934 : f32 to vector<8x128xf32>
    %936 = arith.mulf %918, %935 : vector<8x128xf32>
    %c71_276 = arith.constant 71 : index
    %937 = memref.load %arg2[%c71_276] : memref<100xf32, #tpu.memory_space<smem>>
    %938 = vector.broadcast %937 : f32 to vector<8x128xf32>
    %939 = arith.addf %936, %938 : vector<8x128xf32>
    %cst_277 = arith.constant 0.000000e+00 : f32
    %940 = vector.broadcast %cst_277 : f32 to vector<8x128xf32>
    %941 = arith.maximumf %939, %940 : vector<8x128xf32>
    %c71_278 = arith.constant 71 : index
    %942 = memref.load %arg3[%c71_278] : memref<100xf32, #tpu.memory_space<smem>>
    %943 = vector.broadcast %942 : f32 to vector<8x128xf32>
    %944 = arith.mulf %941, %943 : vector<8x128xf32>
    %945 = arith.addf %933, %944 : vector<8x128xf32>
    %c72 = arith.constant 72 : index
    %946 = memref.load %arg1[%c72] : memref<100xf32, #tpu.memory_space<smem>>
    %947 = vector.broadcast %946 : f32 to vector<8x128xf32>
    %948 = arith.mulf %918, %947 : vector<8x128xf32>
    %c72_279 = arith.constant 72 : index
    %949 = memref.load %arg2[%c72_279] : memref<100xf32, #tpu.memory_space<smem>>
    %950 = vector.broadcast %949 : f32 to vector<8x128xf32>
    %951 = arith.addf %948, %950 : vector<8x128xf32>
    %cst_280 = arith.constant 0.000000e+00 : f32
    %952 = vector.broadcast %cst_280 : f32 to vector<8x128xf32>
    %953 = arith.maximumf %951, %952 : vector<8x128xf32>
    %c72_281 = arith.constant 72 : index
    %954 = memref.load %arg3[%c72_281] : memref<100xf32, #tpu.memory_space<smem>>
    %955 = vector.broadcast %954 : f32 to vector<8x128xf32>
    %956 = arith.mulf %953, %955 : vector<8x128xf32>
    %957 = arith.addf %945, %956 : vector<8x128xf32>
    %c73 = arith.constant 73 : index
    %958 = memref.load %arg1[%c73] : memref<100xf32, #tpu.memory_space<smem>>
    %959 = vector.broadcast %958 : f32 to vector<8x128xf32>
    %960 = arith.mulf %918, %959 : vector<8x128xf32>
    %c73_282 = arith.constant 73 : index
    %961 = memref.load %arg2[%c73_282] : memref<100xf32, #tpu.memory_space<smem>>
    %962 = vector.broadcast %961 : f32 to vector<8x128xf32>
    %963 = arith.addf %960, %962 : vector<8x128xf32>
    %cst_283 = arith.constant 0.000000e+00 : f32
    %964 = vector.broadcast %cst_283 : f32 to vector<8x128xf32>
    %965 = arith.maximumf %963, %964 : vector<8x128xf32>
    %c73_284 = arith.constant 73 : index
    %966 = memref.load %arg3[%c73_284] : memref<100xf32, #tpu.memory_space<smem>>
    %967 = vector.broadcast %966 : f32 to vector<8x128xf32>
    %968 = arith.mulf %965, %967 : vector<8x128xf32>
    %969 = arith.addf %957, %968 : vector<8x128xf32>
    %c74 = arith.constant 74 : index
    %970 = memref.load %arg1[%c74] : memref<100xf32, #tpu.memory_space<smem>>
    %971 = vector.broadcast %970 : f32 to vector<8x128xf32>
    %972 = arith.mulf %918, %971 : vector<8x128xf32>
    %c74_285 = arith.constant 74 : index
    %973 = memref.load %arg2[%c74_285] : memref<100xf32, #tpu.memory_space<smem>>
    %974 = vector.broadcast %973 : f32 to vector<8x128xf32>
    %975 = arith.addf %972, %974 : vector<8x128xf32>
    %cst_286 = arith.constant 0.000000e+00 : f32
    %976 = vector.broadcast %cst_286 : f32 to vector<8x128xf32>
    %977 = arith.maximumf %975, %976 : vector<8x128xf32>
    %c74_287 = arith.constant 74 : index
    %978 = memref.load %arg3[%c74_287] : memref<100xf32, #tpu.memory_space<smem>>
    %979 = vector.broadcast %978 : f32 to vector<8x128xf32>
    %980 = arith.mulf %977, %979 : vector<8x128xf32>
    %981 = arith.addf %969, %980 : vector<8x128xf32>
    %c75 = arith.constant 75 : index
    %982 = memref.load %arg1[%c75] : memref<100xf32, #tpu.memory_space<smem>>
    %983 = vector.broadcast %982 : f32 to vector<8x128xf32>
    %984 = arith.mulf %918, %983 : vector<8x128xf32>
    %c75_288 = arith.constant 75 : index
    %985 = memref.load %arg2[%c75_288] : memref<100xf32, #tpu.memory_space<smem>>
    %986 = vector.broadcast %985 : f32 to vector<8x128xf32>
    %987 = arith.addf %984, %986 : vector<8x128xf32>
    %cst_289 = arith.constant 0.000000e+00 : f32
    %988 = vector.broadcast %cst_289 : f32 to vector<8x128xf32>
    %989 = arith.maximumf %987, %988 : vector<8x128xf32>
    %c75_290 = arith.constant 75 : index
    %990 = memref.load %arg3[%c75_290] : memref<100xf32, #tpu.memory_space<smem>>
    %991 = vector.broadcast %990 : f32 to vector<8x128xf32>
    %992 = arith.mulf %989, %991 : vector<8x128xf32>
    %993 = arith.addf %981, %992 : vector<8x128xf32>
    %c76 = arith.constant 76 : index
    %994 = memref.load %arg1[%c76] : memref<100xf32, #tpu.memory_space<smem>>
    %995 = vector.broadcast %994 : f32 to vector<8x128xf32>
    %996 = arith.mulf %918, %995 : vector<8x128xf32>
    %c76_291 = arith.constant 76 : index
    %997 = memref.load %arg2[%c76_291] : memref<100xf32, #tpu.memory_space<smem>>
    %998 = vector.broadcast %997 : f32 to vector<8x128xf32>
    %999 = arith.addf %996, %998 : vector<8x128xf32>
    %cst_292 = arith.constant 0.000000e+00 : f32
    %1000 = vector.broadcast %cst_292 : f32 to vector<8x128xf32>
    %1001 = arith.maximumf %999, %1000 : vector<8x128xf32>
    %c76_293 = arith.constant 76 : index
    %1002 = memref.load %arg3[%c76_293] : memref<100xf32, #tpu.memory_space<smem>>
    %1003 = vector.broadcast %1002 : f32 to vector<8x128xf32>
    %1004 = arith.mulf %1001, %1003 : vector<8x128xf32>
    %1005 = arith.addf %993, %1004 : vector<8x128xf32>
    %c77 = arith.constant 77 : index
    %1006 = memref.load %arg1[%c77] : memref<100xf32, #tpu.memory_space<smem>>
    %1007 = vector.broadcast %1006 : f32 to vector<8x128xf32>
    %1008 = arith.mulf %918, %1007 : vector<8x128xf32>
    %c77_294 = arith.constant 77 : index
    %1009 = memref.load %arg2[%c77_294] : memref<100xf32, #tpu.memory_space<smem>>
    %1010 = vector.broadcast %1009 : f32 to vector<8x128xf32>
    %1011 = arith.addf %1008, %1010 : vector<8x128xf32>
    %cst_295 = arith.constant 0.000000e+00 : f32
    %1012 = vector.broadcast %cst_295 : f32 to vector<8x128xf32>
    %1013 = arith.maximumf %1011, %1012 : vector<8x128xf32>
    %c77_296 = arith.constant 77 : index
    %1014 = memref.load %arg3[%c77_296] : memref<100xf32, #tpu.memory_space<smem>>
    %1015 = vector.broadcast %1014 : f32 to vector<8x128xf32>
    %1016 = arith.mulf %1013, %1015 : vector<8x128xf32>
    %1017 = arith.addf %1005, %1016 : vector<8x128xf32>
    %c78 = arith.constant 78 : index
    %1018 = memref.load %arg1[%c78] : memref<100xf32, #tpu.memory_space<smem>>
    %1019 = vector.broadcast %1018 : f32 to vector<8x128xf32>
    %1020 = arith.mulf %918, %1019 : vector<8x128xf32>
    %c78_297 = arith.constant 78 : index
    %1021 = memref.load %arg2[%c78_297] : memref<100xf32, #tpu.memory_space<smem>>
    %1022 = vector.broadcast %1021 : f32 to vector<8x128xf32>
    %1023 = arith.addf %1020, %1022 : vector<8x128xf32>
    %cst_298 = arith.constant 0.000000e+00 : f32
    %1024 = vector.broadcast %cst_298 : f32 to vector<8x128xf32>
    %1025 = arith.maximumf %1023, %1024 : vector<8x128xf32>
    %c78_299 = arith.constant 78 : index
    %1026 = memref.load %arg3[%c78_299] : memref<100xf32, #tpu.memory_space<smem>>
    %1027 = vector.broadcast %1026 : f32 to vector<8x128xf32>
    %1028 = arith.mulf %1025, %1027 : vector<8x128xf32>
    %1029 = arith.addf %1017, %1028 : vector<8x128xf32>
    %c79 = arith.constant 79 : index
    %1030 = memref.load %arg1[%c79] : memref<100xf32, #tpu.memory_space<smem>>
    %1031 = vector.broadcast %1030 : f32 to vector<8x128xf32>
    %1032 = arith.mulf %918, %1031 : vector<8x128xf32>
    %c79_300 = arith.constant 79 : index
    %1033 = memref.load %arg2[%c79_300] : memref<100xf32, #tpu.memory_space<smem>>
    %1034 = vector.broadcast %1033 : f32 to vector<8x128xf32>
    %1035 = arith.addf %1032, %1034 : vector<8x128xf32>
    %cst_301 = arith.constant 0.000000e+00 : f32
    %1036 = vector.broadcast %cst_301 : f32 to vector<8x128xf32>
    %1037 = arith.maximumf %1035, %1036 : vector<8x128xf32>
    %c79_302 = arith.constant 79 : index
    %1038 = memref.load %arg3[%c79_302] : memref<100xf32, #tpu.memory_space<smem>>
    %1039 = vector.broadcast %1038 : f32 to vector<8x128xf32>
    %1040 = arith.mulf %1037, %1039 : vector<8x128xf32>
    %1041 = arith.addf %1029, %1040 : vector<8x128xf32>
    %c7_303 = arith.constant 7 : index
    %1042 = memref.load %arg4[%c7_303] : memref<10xf32, #tpu.memory_space<smem>>
    %1043 = vector.broadcast %1042 : f32 to vector<8x128xf32>
    %1044 = arith.addf %1041, %1043 : vector<8x128xf32>
    %1045 = arith.subf %1044, %913 : vector<8x128xf32>
    %1046 = arith.mulf %1045, %920 : vector<8x128xf32>
    %1047 = arith.subf %916, %1046 : vector<8x128xf32>
    %c8_304 = arith.constant 8 : index
    %c0_305 = arith.constant 0 : index
    %c0_306 = arith.constant 0 : index
    %1048 = vector.load %arg6[%c8_304, %c0_305, %c0_306] : memref<10x8x128xf32, #tpu.memory_space<vmem>>, vector<1x8x128xf32>
    %1049 = vector.shape_cast %1048 : vector<1x8x128xf32> to vector<8x128xf32>
    %c8_307 = arith.constant 8 : index
    %c0_308 = arith.constant 0 : index
    %c0_309 = arith.constant 0 : index
    %1050 = vector.load %arg5[%c8_307, %c0_308, %c0_309] : memref<11x8x128xf32, #tpu.memory_space<vmem>>, vector<1x8x128xf32>
    %1051 = vector.shape_cast %1050 : vector<1x8x128xf32> to vector<8x128xf32>
    %cst_310 = arith.constant 0.000000e+00 : f32
    %1052 = vector.broadcast %cst_310 : f32 to vector<8x128xf32>
    %c80 = arith.constant 80 : index
    %1053 = memref.load %arg1[%c80] : memref<100xf32, #tpu.memory_space<smem>>
    %1054 = vector.broadcast %1053 : f32 to vector<8x128xf32>
    %1055 = arith.mulf %1049, %1054 : vector<8x128xf32>
    %c80_311 = arith.constant 80 : index
    %1056 = memref.load %arg2[%c80_311] : memref<100xf32, #tpu.memory_space<smem>>
    %1057 = vector.broadcast %1056 : f32 to vector<8x128xf32>
    %1058 = arith.addf %1055, %1057 : vector<8x128xf32>
    %cst_312 = arith.constant 0.000000e+00 : f32
    %1059 = vector.broadcast %cst_312 : f32 to vector<8x128xf32>
    %1060 = arith.maximumf %1058, %1059 : vector<8x128xf32>
    %c80_313 = arith.constant 80 : index
    %1061 = memref.load %arg3[%c80_313] : memref<100xf32, #tpu.memory_space<smem>>
    %1062 = vector.broadcast %1061 : f32 to vector<8x128xf32>
    %1063 = arith.mulf %1060, %1062 : vector<8x128xf32>
    %1064 = arith.addf %1052, %1063 : vector<8x128xf32>
    %c81 = arith.constant 81 : index
    %1065 = memref.load %arg1[%c81] : memref<100xf32, #tpu.memory_space<smem>>
    %1066 = vector.broadcast %1065 : f32 to vector<8x128xf32>
    %1067 = arith.mulf %1049, %1066 : vector<8x128xf32>
    %c81_314 = arith.constant 81 : index
    %1068 = memref.load %arg2[%c81_314] : memref<100xf32, #tpu.memory_space<smem>>
    %1069 = vector.broadcast %1068 : f32 to vector<8x128xf32>
    %1070 = arith.addf %1067, %1069 : vector<8x128xf32>
    %cst_315 = arith.constant 0.000000e+00 : f32
    %1071 = vector.broadcast %cst_315 : f32 to vector<8x128xf32>
    %1072 = arith.maximumf %1070, %1071 : vector<8x128xf32>
    %c81_316 = arith.constant 81 : index
    %1073 = memref.load %arg3[%c81_316] : memref<100xf32, #tpu.memory_space<smem>>
    %1074 = vector.broadcast %1073 : f32 to vector<8x128xf32>
    %1075 = arith.mulf %1072, %1074 : vector<8x128xf32>
    %1076 = arith.addf %1064, %1075 : vector<8x128xf32>
    %c82 = arith.constant 82 : index
    %1077 = memref.load %arg1[%c82] : memref<100xf32, #tpu.memory_space<smem>>
    %1078 = vector.broadcast %1077 : f32 to vector<8x128xf32>
    %1079 = arith.mulf %1049, %1078 : vector<8x128xf32>
    %c82_317 = arith.constant 82 : index
    %1080 = memref.load %arg2[%c82_317] : memref<100xf32, #tpu.memory_space<smem>>
    %1081 = vector.broadcast %1080 : f32 to vector<8x128xf32>
    %1082 = arith.addf %1079, %1081 : vector<8x128xf32>
    %cst_318 = arith.constant 0.000000e+00 : f32
    %1083 = vector.broadcast %cst_318 : f32 to vector<8x128xf32>
    %1084 = arith.maximumf %1082, %1083 : vector<8x128xf32>
    %c82_319 = arith.constant 82 : index
    %1085 = memref.load %arg3[%c82_319] : memref<100xf32, #tpu.memory_space<smem>>
    %1086 = vector.broadcast %1085 : f32 to vector<8x128xf32>
    %1087 = arith.mulf %1084, %1086 : vector<8x128xf32>
    %1088 = arith.addf %1076, %1087 : vector<8x128xf32>
    %c83 = arith.constant 83 : index
    %1089 = memref.load %arg1[%c83] : memref<100xf32, #tpu.memory_space<smem>>
    %1090 = vector.broadcast %1089 : f32 to vector<8x128xf32>
    %1091 = arith.mulf %1049, %1090 : vector<8x128xf32>
    %c83_320 = arith.constant 83 : index
    %1092 = memref.load %arg2[%c83_320] : memref<100xf32, #tpu.memory_space<smem>>
    %1093 = vector.broadcast %1092 : f32 to vector<8x128xf32>
    %1094 = arith.addf %1091, %1093 : vector<8x128xf32>
    %cst_321 = arith.constant 0.000000e+00 : f32
    %1095 = vector.broadcast %cst_321 : f32 to vector<8x128xf32>
    %1096 = arith.maximumf %1094, %1095 : vector<8x128xf32>
    %c83_322 = arith.constant 83 : index
    %1097 = memref.load %arg3[%c83_322] : memref<100xf32, #tpu.memory_space<smem>>
    %1098 = vector.broadcast %1097 : f32 to vector<8x128xf32>
    %1099 = arith.mulf %1096, %1098 : vector<8x128xf32>
    %1100 = arith.addf %1088, %1099 : vector<8x128xf32>
    %c84 = arith.constant 84 : index
    %1101 = memref.load %arg1[%c84] : memref<100xf32, #tpu.memory_space<smem>>
    %1102 = vector.broadcast %1101 : f32 to vector<8x128xf32>
    %1103 = arith.mulf %1049, %1102 : vector<8x128xf32>
    %c84_323 = arith.constant 84 : index
    %1104 = memref.load %arg2[%c84_323] : memref<100xf32, #tpu.memory_space<smem>>
    %1105 = vector.broadcast %1104 : f32 to vector<8x128xf32>
    %1106 = arith.addf %1103, %1105 : vector<8x128xf32>
    %cst_324 = arith.constant 0.000000e+00 : f32
    %1107 = vector.broadcast %cst_324 : f32 to vector<8x128xf32>
    %1108 = arith.maximumf %1106, %1107 : vector<8x128xf32>
    %c84_325 = arith.constant 84 : index
    %1109 = memref.load %arg3[%c84_325] : memref<100xf32, #tpu.memory_space<smem>>
    %1110 = vector.broadcast %1109 : f32 to vector<8x128xf32>
    %1111 = arith.mulf %1108, %1110 : vector<8x128xf32>
    %1112 = arith.addf %1100, %1111 : vector<8x128xf32>
    %c85 = arith.constant 85 : index
    %1113 = memref.load %arg1[%c85] : memref<100xf32, #tpu.memory_space<smem>>
    %1114 = vector.broadcast %1113 : f32 to vector<8x128xf32>
    %1115 = arith.mulf %1049, %1114 : vector<8x128xf32>
    %c85_326 = arith.constant 85 : index
    %1116 = memref.load %arg2[%c85_326] : memref<100xf32, #tpu.memory_space<smem>>
    %1117 = vector.broadcast %1116 : f32 to vector<8x128xf32>
    %1118 = arith.addf %1115, %1117 : vector<8x128xf32>
    %cst_327 = arith.constant 0.000000e+00 : f32
    %1119 = vector.broadcast %cst_327 : f32 to vector<8x128xf32>
    %1120 = arith.maximumf %1118, %1119 : vector<8x128xf32>
    %c85_328 = arith.constant 85 : index
    %1121 = memref.load %arg3[%c85_328] : memref<100xf32, #tpu.memory_space<smem>>
    %1122 = vector.broadcast %1121 : f32 to vector<8x128xf32>
    %1123 = arith.mulf %1120, %1122 : vector<8x128xf32>
    %1124 = arith.addf %1112, %1123 : vector<8x128xf32>
    %c86 = arith.constant 86 : index
    %1125 = memref.load %arg1[%c86] : memref<100xf32, #tpu.memory_space<smem>>
    %1126 = vector.broadcast %1125 : f32 to vector<8x128xf32>
    %1127 = arith.mulf %1049, %1126 : vector<8x128xf32>
    %c86_329 = arith.constant 86 : index
    %1128 = memref.load %arg2[%c86_329] : memref<100xf32, #tpu.memory_space<smem>>
    %1129 = vector.broadcast %1128 : f32 to vector<8x128xf32>
    %1130 = arith.addf %1127, %1129 : vector<8x128xf32>
    %cst_330 = arith.constant 0.000000e+00 : f32
    %1131 = vector.broadcast %cst_330 : f32 to vector<8x128xf32>
    %1132 = arith.maximumf %1130, %1131 : vector<8x128xf32>
    %c86_331 = arith.constant 86 : index
    %1133 = memref.load %arg3[%c86_331] : memref<100xf32, #tpu.memory_space<smem>>
    %1134 = vector.broadcast %1133 : f32 to vector<8x128xf32>
    %1135 = arith.mulf %1132, %1134 : vector<8x128xf32>
    %1136 = arith.addf %1124, %1135 : vector<8x128xf32>
    %c87 = arith.constant 87 : index
    %1137 = memref.load %arg1[%c87] : memref<100xf32, #tpu.memory_space<smem>>
    %1138 = vector.broadcast %1137 : f32 to vector<8x128xf32>
    %1139 = arith.mulf %1049, %1138 : vector<8x128xf32>
    %c87_332 = arith.constant 87 : index
    %1140 = memref.load %arg2[%c87_332] : memref<100xf32, #tpu.memory_space<smem>>
    %1141 = vector.broadcast %1140 : f32 to vector<8x128xf32>
    %1142 = arith.addf %1139, %1141 : vector<8x128xf32>
    %cst_333 = arith.constant 0.000000e+00 : f32
    %1143 = vector.broadcast %cst_333 : f32 to vector<8x128xf32>
    %1144 = arith.maximumf %1142, %1143 : vector<8x128xf32>
    %c87_334 = arith.constant 87 : index
    %1145 = memref.load %arg3[%c87_334] : memref<100xf32, #tpu.memory_space<smem>>
    %1146 = vector.broadcast %1145 : f32 to vector<8x128xf32>
    %1147 = arith.mulf %1144, %1146 : vector<8x128xf32>
    %1148 = arith.addf %1136, %1147 : vector<8x128xf32>
    %c88 = arith.constant 88 : index
    %1149 = memref.load %arg1[%c88] : memref<100xf32, #tpu.memory_space<smem>>
    %1150 = vector.broadcast %1149 : f32 to vector<8x128xf32>
    %1151 = arith.mulf %1049, %1150 : vector<8x128xf32>
    %c88_335 = arith.constant 88 : index
    %1152 = memref.load %arg2[%c88_335] : memref<100xf32, #tpu.memory_space<smem>>
    %1153 = vector.broadcast %1152 : f32 to vector<8x128xf32>
    %1154 = arith.addf %1151, %1153 : vector<8x128xf32>
    %cst_336 = arith.constant 0.000000e+00 : f32
    %1155 = vector.broadcast %cst_336 : f32 to vector<8x128xf32>
    %1156 = arith.maximumf %1154, %1155 : vector<8x128xf32>
    %c88_337 = arith.constant 88 : index
    %1157 = memref.load %arg3[%c88_337] : memref<100xf32, #tpu.memory_space<smem>>
    %1158 = vector.broadcast %1157 : f32 to vector<8x128xf32>
    %1159 = arith.mulf %1156, %1158 : vector<8x128xf32>
    %1160 = arith.addf %1148, %1159 : vector<8x128xf32>
    %c89 = arith.constant 89 : index
    %1161 = memref.load %arg1[%c89] : memref<100xf32, #tpu.memory_space<smem>>
    %1162 = vector.broadcast %1161 : f32 to vector<8x128xf32>
    %1163 = arith.mulf %1049, %1162 : vector<8x128xf32>
    %c89_338 = arith.constant 89 : index
    %1164 = memref.load %arg2[%c89_338] : memref<100xf32, #tpu.memory_space<smem>>
    %1165 = vector.broadcast %1164 : f32 to vector<8x128xf32>
    %1166 = arith.addf %1163, %1165 : vector<8x128xf32>
    %cst_339 = arith.constant 0.000000e+00 : f32
    %1167 = vector.broadcast %cst_339 : f32 to vector<8x128xf32>
    %1168 = arith.maximumf %1166, %1167 : vector<8x128xf32>
    %c89_340 = arith.constant 89 : index
    %1169 = memref.load %arg3[%c89_340] : memref<100xf32, #tpu.memory_space<smem>>
    %1170 = vector.broadcast %1169 : f32 to vector<8x128xf32>
    %1171 = arith.mulf %1168, %1170 : vector<8x128xf32>
    %1172 = arith.addf %1160, %1171 : vector<8x128xf32>
    %c8_341 = arith.constant 8 : index
    %1173 = memref.load %arg4[%c8_341] : memref<10xf32, #tpu.memory_space<smem>>
    %1174 = vector.broadcast %1173 : f32 to vector<8x128xf32>
    %1175 = arith.addf %1172, %1174 : vector<8x128xf32>
    %1176 = arith.subf %1175, %1044 : vector<8x128xf32>
    %1177 = arith.mulf %1176, %1051 : vector<8x128xf32>
    %1178 = arith.subf %1047, %1177 : vector<8x128xf32>
    %c9_342 = arith.constant 9 : index
    %c0_343 = arith.constant 0 : index
    %c0_344 = arith.constant 0 : index
    %1179 = vector.load %arg6[%c9_342, %c0_343, %c0_344] : memref<10x8x128xf32, #tpu.memory_space<vmem>>, vector<1x8x128xf32>
    %1180 = vector.shape_cast %1179 : vector<1x8x128xf32> to vector<8x128xf32>
    %c9_345 = arith.constant 9 : index
    %c0_346 = arith.constant 0 : index
    %c0_347 = arith.constant 0 : index
    %1181 = vector.load %arg5[%c9_345, %c0_346, %c0_347] : memref<11x8x128xf32, #tpu.memory_space<vmem>>, vector<1x8x128xf32>
    %1182 = vector.shape_cast %1181 : vector<1x8x128xf32> to vector<8x128xf32>
    %cst_348 = arith.constant 0.000000e+00 : f32
    %1183 = vector.broadcast %cst_348 : f32 to vector<8x128xf32>
    %c90 = arith.constant 90 : index
    %1184 = memref.load %arg1[%c90] : memref<100xf32, #tpu.memory_space<smem>>
    %1185 = vector.broadcast %1184 : f32 to vector<8x128xf32>
    %1186 = arith.mulf %1180, %1185 : vector<8x128xf32>
    %c90_349 = arith.constant 90 : index
    %1187 = memref.load %arg2[%c90_349] : memref<100xf32, #tpu.memory_space<smem>>
    %1188 = vector.broadcast %1187 : f32 to vector<8x128xf32>
    %1189 = arith.addf %1186, %1188 : vector<8x128xf32>
    %cst_350 = arith.constant 0.000000e+00 : f32
    %1190 = vector.broadcast %cst_350 : f32 to vector<8x128xf32>
    %1191 = arith.maximumf %1189, %1190 : vector<8x128xf32>
    %c90_351 = arith.constant 90 : index
    %1192 = memref.load %arg3[%c90_351] : memref<100xf32, #tpu.memory_space<smem>>
    %1193 = vector.broadcast %1192 : f32 to vector<8x128xf32>
    %1194 = arith.mulf %1191, %1193 : vector<8x128xf32>
    %1195 = arith.addf %1183, %1194 : vector<8x128xf32>
    %c91 = arith.constant 91 : index
    %1196 = memref.load %arg1[%c91] : memref<100xf32, #tpu.memory_space<smem>>
    %1197 = vector.broadcast %1196 : f32 to vector<8x128xf32>
    %1198 = arith.mulf %1180, %1197 : vector<8x128xf32>
    %c91_352 = arith.constant 91 : index
    %1199 = memref.load %arg2[%c91_352] : memref<100xf32, #tpu.memory_space<smem>>
    %1200 = vector.broadcast %1199 : f32 to vector<8x128xf32>
    %1201 = arith.addf %1198, %1200 : vector<8x128xf32>
    %cst_353 = arith.constant 0.000000e+00 : f32
    %1202 = vector.broadcast %cst_353 : f32 to vector<8x128xf32>
    %1203 = arith.maximumf %1201, %1202 : vector<8x128xf32>
    %c91_354 = arith.constant 91 : index
    %1204 = memref.load %arg3[%c91_354] : memref<100xf32, #tpu.memory_space<smem>>
    %1205 = vector.broadcast %1204 : f32 to vector<8x128xf32>
    %1206 = arith.mulf %1203, %1205 : vector<8x128xf32>
    %1207 = arith.addf %1195, %1206 : vector<8x128xf32>
    %c92 = arith.constant 92 : index
    %1208 = memref.load %arg1[%c92] : memref<100xf32, #tpu.memory_space<smem>>
    %1209 = vector.broadcast %1208 : f32 to vector<8x128xf32>
    %1210 = arith.mulf %1180, %1209 : vector<8x128xf32>
    %c92_355 = arith.constant 92 : index
    %1211 = memref.load %arg2[%c92_355] : memref<100xf32, #tpu.memory_space<smem>>
    %1212 = vector.broadcast %1211 : f32 to vector<8x128xf32>
    %1213 = arith.addf %1210, %1212 : vector<8x128xf32>
    %cst_356 = arith.constant 0.000000e+00 : f32
    %1214 = vector.broadcast %cst_356 : f32 to vector<8x128xf32>
    %1215 = arith.maximumf %1213, %1214 : vector<8x128xf32>
    %c92_357 = arith.constant 92 : index
    %1216 = memref.load %arg3[%c92_357] : memref<100xf32, #tpu.memory_space<smem>>
    %1217 = vector.broadcast %1216 : f32 to vector<8x128xf32>
    %1218 = arith.mulf %1215, %1217 : vector<8x128xf32>
    %1219 = arith.addf %1207, %1218 : vector<8x128xf32>
    %c93 = arith.constant 93 : index
    %1220 = memref.load %arg1[%c93] : memref<100xf32, #tpu.memory_space<smem>>
    %1221 = vector.broadcast %1220 : f32 to vector<8x128xf32>
    %1222 = arith.mulf %1180, %1221 : vector<8x128xf32>
    %c93_358 = arith.constant 93 : index
    %1223 = memref.load %arg2[%c93_358] : memref<100xf32, #tpu.memory_space<smem>>
    %1224 = vector.broadcast %1223 : f32 to vector<8x128xf32>
    %1225 = arith.addf %1222, %1224 : vector<8x128xf32>
    %cst_359 = arith.constant 0.000000e+00 : f32
    %1226 = vector.broadcast %cst_359 : f32 to vector<8x128xf32>
    %1227 = arith.maximumf %1225, %1226 : vector<8x128xf32>
    %c93_360 = arith.constant 93 : index
    %1228 = memref.load %arg3[%c93_360] : memref<100xf32, #tpu.memory_space<smem>>
    %1229 = vector.broadcast %1228 : f32 to vector<8x128xf32>
    %1230 = arith.mulf %1227, %1229 : vector<8x128xf32>
    %1231 = arith.addf %1219, %1230 : vector<8x128xf32>
    %c94 = arith.constant 94 : index
    %1232 = memref.load %arg1[%c94] : memref<100xf32, #tpu.memory_space<smem>>
    %1233 = vector.broadcast %1232 : f32 to vector<8x128xf32>
    %1234 = arith.mulf %1180, %1233 : vector<8x128xf32>
    %c94_361 = arith.constant 94 : index
    %1235 = memref.load %arg2[%c94_361] : memref<100xf32, #tpu.memory_space<smem>>
    %1236 = vector.broadcast %1235 : f32 to vector<8x128xf32>
    %1237 = arith.addf %1234, %1236 : vector<8x128xf32>
    %cst_362 = arith.constant 0.000000e+00 : f32
    %1238 = vector.broadcast %cst_362 : f32 to vector<8x128xf32>
    %1239 = arith.maximumf %1237, %1238 : vector<8x128xf32>
    %c94_363 = arith.constant 94 : index
    %1240 = memref.load %arg3[%c94_363] : memref<100xf32, #tpu.memory_space<smem>>
    %1241 = vector.broadcast %1240 : f32 to vector<8x128xf32>
    %1242 = arith.mulf %1239, %1241 : vector<8x128xf32>
    %1243 = arith.addf %1231, %1242 : vector<8x128xf32>
    %c95 = arith.constant 95 : index
    %1244 = memref.load %arg1[%c95] : memref<100xf32, #tpu.memory_space<smem>>
    %1245 = vector.broadcast %1244 : f32 to vector<8x128xf32>
    %1246 = arith.mulf %1180, %1245 : vector<8x128xf32>
    %c95_364 = arith.constant 95 : index
    %1247 = memref.load %arg2[%c95_364] : memref<100xf32, #tpu.memory_space<smem>>
    %1248 = vector.broadcast %1247 : f32 to vector<8x128xf32>
    %1249 = arith.addf %1246, %1248 : vector<8x128xf32>
    %cst_365 = arith.constant 0.000000e+00 : f32
    %1250 = vector.broadcast %cst_365 : f32 to vector<8x128xf32>
    %1251 = arith.maximumf %1249, %1250 : vector<8x128xf32>
    %c95_366 = arith.constant 95 : index
    %1252 = memref.load %arg3[%c95_366] : memref<100xf32, #tpu.memory_space<smem>>
    %1253 = vector.broadcast %1252 : f32 to vector<8x128xf32>
    %1254 = arith.mulf %1251, %1253 : vector<8x128xf32>
    %1255 = arith.addf %1243, %1254 : vector<8x128xf32>
    %c96 = arith.constant 96 : index
    %1256 = memref.load %arg1[%c96] : memref<100xf32, #tpu.memory_space<smem>>
    %1257 = vector.broadcast %1256 : f32 to vector<8x128xf32>
    %1258 = arith.mulf %1180, %1257 : vector<8x128xf32>
    %c96_367 = arith.constant 96 : index
    %1259 = memref.load %arg2[%c96_367] : memref<100xf32, #tpu.memory_space<smem>>
    %1260 = vector.broadcast %1259 : f32 to vector<8x128xf32>
    %1261 = arith.addf %1258, %1260 : vector<8x128xf32>
    %cst_368 = arith.constant 0.000000e+00 : f32
    %1262 = vector.broadcast %cst_368 : f32 to vector<8x128xf32>
    %1263 = arith.maximumf %1261, %1262 : vector<8x128xf32>
    %c96_369 = arith.constant 96 : index
    %1264 = memref.load %arg3[%c96_369] : memref<100xf32, #tpu.memory_space<smem>>
    %1265 = vector.broadcast %1264 : f32 to vector<8x128xf32>
    %1266 = arith.mulf %1263, %1265 : vector<8x128xf32>
    %1267 = arith.addf %1255, %1266 : vector<8x128xf32>
    %c97 = arith.constant 97 : index
    %1268 = memref.load %arg1[%c97] : memref<100xf32, #tpu.memory_space<smem>>
    %1269 = vector.broadcast %1268 : f32 to vector<8x128xf32>
    %1270 = arith.mulf %1180, %1269 : vector<8x128xf32>
    %c97_370 = arith.constant 97 : index
    %1271 = memref.load %arg2[%c97_370] : memref<100xf32, #tpu.memory_space<smem>>
    %1272 = vector.broadcast %1271 : f32 to vector<8x128xf32>
    %1273 = arith.addf %1270, %1272 : vector<8x128xf32>
    %cst_371 = arith.constant 0.000000e+00 : f32
    %1274 = vector.broadcast %cst_371 : f32 to vector<8x128xf32>
    %1275 = arith.maximumf %1273, %1274 : vector<8x128xf32>
    %c97_372 = arith.constant 97 : index
    %1276 = memref.load %arg3[%c97_372] : memref<100xf32, #tpu.memory_space<smem>>
    %1277 = vector.broadcast %1276 : f32 to vector<8x128xf32>
    %1278 = arith.mulf %1275, %1277 : vector<8x128xf32>
    %1279 = arith.addf %1267, %1278 : vector<8x128xf32>
    %c98 = arith.constant 98 : index
    %1280 = memref.load %arg1[%c98] : memref<100xf32, #tpu.memory_space<smem>>
    %1281 = vector.broadcast %1280 : f32 to vector<8x128xf32>
    %1282 = arith.mulf %1180, %1281 : vector<8x128xf32>
    %c98_373 = arith.constant 98 : index
    %1283 = memref.load %arg2[%c98_373] : memref<100xf32, #tpu.memory_space<smem>>
    %1284 = vector.broadcast %1283 : f32 to vector<8x128xf32>
    %1285 = arith.addf %1282, %1284 : vector<8x128xf32>
    %cst_374 = arith.constant 0.000000e+00 : f32
    %1286 = vector.broadcast %cst_374 : f32 to vector<8x128xf32>
    %1287 = arith.maximumf %1285, %1286 : vector<8x128xf32>
    %c98_375 = arith.constant 98 : index
    %1288 = memref.load %arg3[%c98_375] : memref<100xf32, #tpu.memory_space<smem>>
    %1289 = vector.broadcast %1288 : f32 to vector<8x128xf32>
    %1290 = arith.mulf %1287, %1289 : vector<8x128xf32>
    %1291 = arith.addf %1279, %1290 : vector<8x128xf32>
    %c99 = arith.constant 99 : index
    %1292 = memref.load %arg1[%c99] : memref<100xf32, #tpu.memory_space<smem>>
    %1293 = vector.broadcast %1292 : f32 to vector<8x128xf32>
    %1294 = arith.mulf %1180, %1293 : vector<8x128xf32>
    %c99_376 = arith.constant 99 : index
    %1295 = memref.load %arg2[%c99_376] : memref<100xf32, #tpu.memory_space<smem>>
    %1296 = vector.broadcast %1295 : f32 to vector<8x128xf32>
    %1297 = arith.addf %1294, %1296 : vector<8x128xf32>
    %cst_377 = arith.constant 0.000000e+00 : f32
    %1298 = vector.broadcast %cst_377 : f32 to vector<8x128xf32>
    %1299 = arith.maximumf %1297, %1298 : vector<8x128xf32>
    %c99_378 = arith.constant 99 : index
    %1300 = memref.load %arg3[%c99_378] : memref<100xf32, #tpu.memory_space<smem>>
    %1301 = vector.broadcast %1300 : f32 to vector<8x128xf32>
    %1302 = arith.mulf %1299, %1301 : vector<8x128xf32>
    %1303 = arith.addf %1291, %1302 : vector<8x128xf32>
    %c9_379 = arith.constant 9 : index
    %1304 = memref.load %arg4[%c9_379] : memref<10xf32, #tpu.memory_space<smem>>
    %1305 = vector.broadcast %1304 : f32 to vector<8x128xf32>
    %1306 = arith.addf %1303, %1305 : vector<8x128xf32>
    %1307 = arith.subf %1306, %1175 : vector<8x128xf32>
    %1308 = arith.mulf %1307, %1182 : vector<8x128xf32>
    %1309 = arith.subf %1178, %1308 : vector<8x128xf32>
    %c10_380 = arith.constant 10 : index
    %c0_381 = arith.constant 0 : index
    %c0_382 = arith.constant 0 : index
    %1310 = vector.load %arg5[%c10_380, %c0_381, %c0_382] : memref<11x8x128xf32, #tpu.memory_space<vmem>>, vector<1x8x128xf32>
    %1311 = vector.shape_cast %1310 : vector<1x8x128xf32> to vector<8x128xf32>
    %1312 = arith.mulf %1306, %1311 : vector<8x128xf32>
    %1313 = arith.addf %1309, %1312 : vector<8x128xf32>
    %c0_383 = arith.constant 0 : index
    %c0_384 = arith.constant 0 : index
    %1314 = vector.load %arg7[%c0_383, %c0_384] : memref<8x128xf32, #tpu.memory_space<vmem>>, vector<8x128xf32>
    %1315 = arith.addf %1313, %1314 : vector<8x128xf32>
    %c0_385 = arith.constant 0 : index
    %c0_386 = arith.constant 0 : index
    %1316 = vector.load %arg8[%c0_385, %c0_386] : memref<8x128xf32, #tpu.memory_space<vmem>>, vector<8x128xf32>
    tpu.vector_store %arg8[%c0_385, %c0_386], %1315 {strides = array<i32>} : memref<8x128xf32, #tpu.memory_space<vmem>>, vector<8x128xf32>,
    return
  }
  func.func @transform_0(%arg0: i32) -> i32 {
    %c0_i32 = arith.constant 0 : i32
    %c0_i32_0 = arith.constant 0 : i32
    return %c0_i32 : i32
  }
  func.func @transform_1(%arg0: i32) -> i32 {
    %c0_i32 = arith.constant 0 : i32
    %c0_i32_0 = arith.constant 0 : i32
    return %c0_i32 : i32
  }
  func.func @transform_2(%arg0: i32) -> i32 {
    %c0_i32 = arith.constant 0 : i32
    %c0_i32_0 = arith.constant 0 : i32
    return %c0_i32 : i32
  }
  func.func @transform_3(%arg0: i32) -> i32 {
    %c0_i32 = arith.constant 0 : i32
    %c0_i32_0 = arith.constant 0 : i32
    return %c0_i32 : i32
  }
  func.func @transform_4(%arg0: i32) -> (i32, i32, i32) {
    %c0_i32 = arith.constant 0 : i32
    %c0_i32_0 = arith.constant 0 : i32
    %c0_i32_1 = arith.constant 0 : i32
    return %c0_i32, %arg0, %c0_i32_0 : i32, i32, i32
  }
  func.func @transform_5(%arg0: i32) -> (i32, i32, i32) {
    %c0_i32 = arith.constant 0 : i32
    %c0_i32_0 = arith.constant 0 : i32
    %c0_i32_1 = arith.constant 0 : i32
    return %c0_i32, %arg0, %c0_i32_0 : i32, i32, i32
  }
  func.func @transform_6(%arg0: i32) -> (i32, i32) {
    %c0_i32 = arith.constant 0 : i32
    %c0_i32_0 = arith.constant 0 : i32
    return %arg0, %c0_i32 : i32, i32
  }
  func.func @transform_7(%arg0: i32) -> (i32, i32) {
    %c0_i32 = arith.constant 0 : i32
    %c0_i32_0 = arith.constant 0 : i32
    return %arg0, %c0_i32 : i32, i32
  }
}

</mosaic_0001>

<llo_original>
// kernel: tpu_custom_call.1
$region0: #{tpu_custom_call.1}
  #allocation0 [shape = 'u32[]', space=smem, size = 0x4, offset = 0x4, fixed_abs, tag = 'smem constant byte address 0x4 - core index']
  #allocation1 [shape = 'u32[144,128]{1,0:T(1,128)}', space=vmem, size = 0x12000, scoped, tag = 'internal scratch']
  %s0 = inlined_call_operand.hbm [shape: f32[100], index: 0, kind: input, shape index: {}]
  %s1 = inlined_call_operand.vmem [shape: f32[100], index: 1, kind: input, shape index: {}]
  %s2 = inlined_call_operand.vmem [shape: f32[100], index: 2, kind: input, shape index: {}]
  %s3 = inlined_call_operand.vmem [shape: f32[10], index: 3, kind: input, shape index: {}]
  %s4 = inlined_call_operand.hbm [shape: f32[11,16,128], index: 4, kind: input, shape index: {}]
  %s5 = inlined_call_operand.hbm [shape: f32[10,16,128], index: 5, kind: input, shape index: {}]
  %s6 = inlined_call_operand.hbm [shape: f32[16,128], index: 6, kind: input, shape index: {}]
  %s7 = inlined_call_operand.hbm [shape: f32[16,128], index: 7, kind: output, shape index: {}]
  %s8 = sld [smem:[#allocation0]]
  $region89: #{tpu_custom_call.1} parent=0
    _
  %s10 = ssub.s32 1, %s8
  %s11 = scalar_select 0, %s10, %s8
  $region1: #{tpu_custom_call.1} parent=0
    #allocation2 [shape = 'u8[512]{0}', space=smem, size = 0x200, scoped, tag = 'input window, operand 0, single buffered']
    #allocation3 [shape = 's32[2]{0}', space=sflag, size = 0x8, scoped, tag = 'scoped memory for tpu_custom_call.1']
    #allocation4 [shape = 's32[2]{0}', space=sflag, size = 0x8, scoped, tag = 'scoped memory for tpu_custom_call.1']
    #allocation5 [shape = 's32[2]{0}', space=sflag, size = 0x8, scoped, tag = 'scoped memory for tpu_custom_call.1']
    #allocation6 [shape = 's32[2]{0}', space=sflag, size = 0x8, scoped, tag = 'scoped memory for tpu_custom_call.1']
    #allocation7 [shape = 'u8[512]{0}', space=smem, size = 0x200, scoped, tag = 'input window, operand 1, single buffered']
    #allocation8 [shape = 'u8[512]{0}', space=smem, size = 0x200, scoped, tag = 'input window, operand 2, single buffered']
    #allocation9 [shape = 's32[1]{0}', space=sflag, size = 0x4, scoped, tag = 'scoped memory for tpu_custom_call.1']
    #allocation10 [shape = 'u8[512]{0}', space=smem, size = 0x200, scoped, tag = 'input window, operand 3, single buffered']
    #allocation11 [shape = 'u8[90112]{0}', space=vmem, size = 0x16000, scoped, tag = 'input window, operand 4']
    #allocation12 [shape = 'u8[81920]{0}', space=vmem, size = 0x14000, scoped, tag = 'input window, operand 5']
    #allocation13 [shape = 's32[2]{0}', space=sflag, size = 0x8, scoped, tag = 'scoped memory for tpu_custom_call.1']
    #allocation14 [shape = 'u8[8192]{0}', space=vmem, size = 0x2000, scoped, tag = 'input window, operand 6']
    #allocation15 [shape = 'u8[8192]{0}', space=vmem, size = 0x2000, scoped, tag = 'output window, operand 0']
    %12 = vsyncpa [#allocation5], 0
    %13 = vsyncpa [#allocation6], 0
    %14 = vsyncpa [#allocation9], 0
    %15 = vsyncpa [#allocation3], 0
    %s16 = scalar_lea.sflag [#allocation3], 1
    %17 = vsyncpa %s16, 0
    %18 = vsyncpa [#allocation13], 0
    %s19 = scalar_lea.sflag [#allocation13], 1
    %20 = vsyncpa %s19, 0
    %21 = vsyncpa [#allocation4], 0
    %s22 = scalar_lea.sflag [#allocation4], 1
    %23 = vsyncpa %s22, 0
    loop: start=0, step=1, limit=4
    $region2: #{tpu_custom_call.1} parent=1 // loop_pre_header
      _
    $region3: #{tpu_custom_call.1} parent=1 // loop_header
      %s25 = sphi 0, %s29
      %p26 = scmp.ge.s32.totalorder %s25, 4
      %s33 = sphi 0, %s33
      %s35 = sphi 0, %s33
      %s36 = sphi 0, %s35
      %s50 = sphi 0, %s36
      %s54 = sphi 0, %s54
      %s56 = sphi 0, %s54
      %s57 = sphi 0, %s56
      %s71 = sphi 0, %s57
      %s75 = sphi 0, %s75
      %s77 = sphi 0, %s75
      %s78 = sphi 0, %s77
      %s92 = sphi 0, %s78
      %s96 = sphi 0, %s96
      %s98 = sphi 0, %s96
      %s99 = sphi 0, %s98
      %s113 = sphi 0, %s99
      %s119 = sphi 0, %s121
      %s122 = sphi 0, %s119
      %s123 = sphi 0, %s122
      %s139 = sphi 0, %s123
      %s145 = sphi 0, %s147
      %s148 = sphi 0, %s145
      %s149 = sphi 0, %s148
      %s165 = sphi 0, %s149
      %s171 = sphi 0, %s173
      %s174 = sphi 0, %s171
      %s175 = sphi 0, %s174
      %s191 = sphi 0, %s175
      %s197 = sphi 0, %s199
      %s200 = sphi 0, %s197
      %s201 = sphi 0, %s200
      %s217 = sphi 0, %s201
    $region4: #{tpu_custom_call.1} parent=1 // loop_header_branch
      %28 = sbr.rel (%p26) target = $region8
    $region5: #{tpu_custom_call.1} parent=1 // loop_body
      %s30 = ssub.s32 %s25, 1
      %s31 = ssub.s32 %s25, 2
      %s32 = sadd.s32 %s25, 1
      %s34 = sadd.s32 %s33, 1
      %p37 = scmp.eq.s32.totalorder %s25, 1
      %p38 = scmp.ne.s32.totalorder %s33, %s35
      %p39 = scmp.eq.s32.totalorder %s25, 0
      %p40 = por %p38, %p39
      %p41 = scmp.ne.s32.totalorder %s33, %s35
      %p42 = scmp.eq.s32.totalorder %s30, 1
      %p43 = por %p41, %p42
      %p44 = scmp.ne.s32.totalorder %s35, %s36
      %p45 = scmp.eq.s32.totalorder %s30, 0
      %p46 = por %p44, %p45
      %p47 = scmp.ne.s32.totalorder %s35, %s36
      %p48 = scmp.eq.s32.totalorder %s31, 1
      %p49 = por %p47, %p48
      %p51 = scmp.ne.s32.totalorder %s36, %s50
      %p52 = scmp.eq.s32.totalorder %s31, 0
      %p53 = por %p51, %p52
      %s55 = sadd.s32 %s54, 1
      %p58 = scmp.eq.s32.totalorder %s25, 1
      %p59 = scmp.ne.s32.totalorder %s54, %s56
      %p60 = scmp.eq.s32.totalorder %s25, 0
      %p61 = por %p59, %p60
      %p62 = scmp.ne.s32.totalorder %s54, %s56
      %p63 = scmp.eq.s32.totalorder %s30, 1
      %p64 = por %p62, %p63
      %p65 = scmp.ne.s32.totalorder %s56, %s57
      %p66 = scmp.eq.s32.totalorder %s30, 0
      %p67 = por %p65, %p66
      %p68 = scmp.ne.s32.totalorder %s56, %s57
      %p69 = scmp.eq.s32.totalorder %s31, 1
      %p70 = por %p68, %p69
      %p72 = scmp.ne.s32.totalorder %s57, %s71
      %p73 = scmp.eq.s32.totalorder %s31, 0
      %p74 = por %p72, %p73
      %s76 = sadd.s32 %s75, 1
      %p79 = scmp.eq.s32.totalorder %s25, 1
      %p80 = scmp.ne.s32.totalorder %s75, %s77
      %p81 = scmp.eq.s32.totalorder %s25, 0
      %p82 = por %p80, %p81
      %p83 = scmp.ne.s32.totalorder %s75, %s77
      %p84 = scmp.eq.s32.totalorder %s30, 1
      %p85 = por %p83, %p84
      %p86 = scmp.ne.s32.totalorder %s77, %s78
      %p87 = scmp.eq.s32.totalorder %s30, 0
      %p88 = por %p86, %p87
      %p89 = scmp.ne.s32.totalorder %s77, %s78
      %p90 = scmp.eq.s32.totalorder %s31, 1
      %p91 = por %p89, %p90
      %p93 = scmp.ne.s32.totalorder %s78, %s92
      %p94 = scmp.eq.s32.totalorder %s31, 0
      %p95 = por %p93, %p94
      %s97 = sadd.s32 %s96, 1
      %p100 = scmp.eq.s32.totalorder %s25, 1
      %p101 = scmp.ne.s32.totalorder %s96, %s98
      %p102 = scmp.eq.s32.totalorder %s25, 0
      %p103 = por %p101, %p102
      %p104 = scmp.ne.s32.totalorder %s96, %s98
      %p105 = scmp.eq.s32.totalorder %s30, 1
      %p106 = por %p104, %p105
      %p107 = scmp.ne.s32.totalorder %s98, %s99
      %p108 = scmp.eq.s32.totalorder %s30, 0
      %p109 = por %p107, %p108
      %p110 = scmp.ne.s32.totalorder %s98, %s99
      %p111 = scmp.eq.s32.totalorder %s31, 1
      %p112 = por %p110, %p111
      %p114 = scmp.ne.s32.totalorder %s99, %s113
      %p115 = scmp.eq.s32.totalorder %s31, 0
      %p116 = por %p114, %p115
      %s117 = ssub.s32 %s25, %s32
      %p118 = scmp.eq.s32.totalorder %s117, 0
      %s120 = sadd.s32 %s119, 1
      %s121 = scalar_select %p118, %s119, %s120
      %p124 = pneg %p118
      %p125 = scmp.eq.s32.totalorder %s25, 1
      %p126 = por %p124, %p125
      %p127 = scmp.ne.s32.totalorder %s119, %s122
      %p128 = scmp.eq.s32.totalorder %s25, 0
      %p129 = por %p127, %p128
      %p130 = scmp.ne.s32.totalorder %s119, %s122
      %p131 = scmp.eq.s32.totalorder %s30, 1
      %p132 = por %p130, %p131
      %p133 = scmp.ne.s32.totalorder %s122, %s123
      %p134 = scmp.eq.s32.totalorder %s30, 0
      %p135 = por %p133, %p134
      %p136 = scmp.ne.s32.totalorder %s122, %s123
      %p137 = scmp.eq.s32.totalorder %s31, 1
      %p138 = por %p136, %p137
      %p140 = scmp.ne.s32.totalorder %s123, %s139
      %p141 = scmp.eq.s32.totalorder %s31, 0
      %p142 = por %p140, %p141
      %s143 = ssub.s32 %s25, %s32
      %p144 = scmp.eq.s32.totalorder %s143, 0
      %s146 = sadd.s32 %s145, 1
      %s147 = scalar_select %p144, %s145, %s146
      %p150 = pneg %p144
      %p151 = scmp.eq.s32.totalorder %s25, 1
      %p152 = por %p150, %p151
      %p153 = scmp.ne.s32.totalorder %s145, %s148
      %p154 = scmp.eq.s32.totalorder %s25, 0
      %p155 = por %p153, %p154
      %p156 = scmp.ne.s32.totalorder %s145, %s148
      %p157 = scmp.eq.s32.totalorder %s30, 1
      %p158 = por %p156, %p157
      %p159 = scmp.ne.s32.totalorder %s148, %s149
      %p160 = scmp.eq.s32.totalorder %s30, 0
      %p161 = por %p159, %p160
      %p162 = scmp.ne.s32.totalorder %s148, %s149
      %p163 = scmp.eq.s32.totalorder %s31, 1
      %p164 = por %p162, %p163
      %p166 = scmp.ne.s32.totalorder %s149, %s165
      %p167 = scmp.eq.s32.totalorder %s31, 0
      %p168 = por %p166, %p167
      %s169 = ssub.s32 %s25, %s32
      %p170 = scmp.eq.s32.totalorder %s169, 0
      %s172 = sadd.s32 %s171, 1
      %s173 = scalar_select %p170, %s171, %s172
      %p176 = pneg %p170
      %p177 = scmp.eq.s32.totalorder %s25, 1
      %p178 = por %p176, %p177
      %p179 = scmp.ne.s32.totalorder %s171, %s174
      %p180 = scmp.eq.s32.totalorder %s25, 0
      %p181 = por %p179, %p180
      %p182 = scmp.ne.s32.totalorder %s171, %s174
      %p183 = scmp.eq.s32.totalorder %s30, 1
      %p184 = por %p182, %p183
      %p185 = scmp.ne.s32.totalorder %s174, %s175
      %p186 = scmp.eq.s32.totalorder %s30, 0
      %p187 = por %p185, %p186
      %p188 = scmp.ne.s32.totalorder %s174, %s175
      %p189 = scmp.eq.s32.totalorder %s31, 1
      %p190 = por %p188, %p189
      %p192 = scmp.ne.s32.totalorder %s175, %s191
      %p193 = scmp.eq.s32.totalorder %s31, 0
      %p194 = por %p192, %p193
      %s195 = ssub.s32 %s25, %s32
      %p196 = scmp.eq.s32.totalorder %s195, 0
      %s198 = sadd.s32 %s197, 1
      %s199 = scalar_select %p196, %s197, %s198
      %p202 = pneg %p196
      %p203 = scmp.eq.s32.totalorder %s25, 1
      %p204 = por %p202, %p203
      %p205 = scmp.ne.s32.totalorder %s197, %s200
      %p206 = scmp.eq.s32.totalorder %s25, 0
      %p207 = por %p205, %p206
      %p208 = scmp.ne.s32.totalorder %s197, %s200
      %p209 = scmp.eq.s32.totalorder %s30, 1
      %p210 = por %p208, %p209
      %p211 = scmp.ne.s32.totalorder %s200, %s201
      %p212 = scmp.eq.s32.totalorder %s30, 0
      %p213 = por %p211, %p212
      %p214 = scmp.ne.s32.totalorder %s200, %s201
      %p215 = scmp.eq.s32.totalorder %s31, 1
      %p216 = por %p214, %p215
      %p218 = scmp.ne.s32.totalorder %s201, %s217
      %p219 = scmp.eq.s32.totalorder %s31, 0
      %p220 = por %p218, %p219
      %p221 = scmp.le.s32.totalorder 1, %s25
      %p222 = scmp.lt.s32.totalorder %s25, 3
      %p223 = pnand %p221, %p222
      %p224 = pneg %p223
      // Predicated region
      $region9: #{tpu_custom_call.1} parent=5 // pred_check
        _
      $region10: #{tpu_custom_call.1} parent=5 // pred_check_branch
        %226 = sbr.rel (%p223) target = $region12
      $region11: #{tpu_custom_call.1} parent=5 // pred_region
        %s227 = ssub.s32 %s25, 1
        // Predicated region
        $region13: #{tpu_custom_call.1} parent=11 // pred_check
          %p228 = pneg %p46
        $region14: #{tpu_custom_call.1} parent=11 // pred_check_branch
          %230 = sbr.rel (%p228) target = $region16
        $region15: #{tpu_custom_call.1} parent=11 // pred_region
          %s232 = ssub.s32 16, 16
          %233 = vsyncadd [#allocation5], %s232
          %236 = dma.hbm_to_smem %s0, 16, [#allocation2], [#allocation5]
        $region16: #{tpu_custom_call.1} parent=11 // pred_fallthru
          _
        // Predicated region
        $region17: #{tpu_custom_call.1} parent=11 // pred_check
          %p237 = pneg %p67
        $region18: #{tpu_custom_call.1} parent=11 // pred_check_branch
          %239 = sbr.rel (%p237) target = $region20
        $region19: #{tpu_custom_call.1} parent=11 // pred_region
          %s241 = ssub.s32 16, 16
          %242 = vsyncadd [#allocation6], %s241
          %s244 = sshll.u32 %s1, 4
          %s245 = int_to_ptr.vmem [resolvable:$true] %s244
          %247 = dma.vmem_to_smem %s245, 16, [#allocation7], [#allocation6]
        $region20: #{tpu_custom_call.1} parent=11 // pred_fallthru
          _
        // Predicated region
        $region21: #{tpu_custom_call.1} parent=11 // pred_check
          %p248 = pneg %p88
        $region22: #{tpu_custom_call.1} parent=11 // pred_check_branch
          %250 = sbr.rel (%p248) target = $region24
        $region23: #{tpu_custom_call.1} parent=11 // pred_region
          %s252 = ssub.s32 16, 16
          %253 = vsyncadd [#allocation9], %s252
          %s255 = sshll.u32 %s2, 4
          %s256 = int_to_ptr.vmem [resolvable:$true] %s255
          %258 = dma.vmem_to_smem %s256, 16, [#allocation8], [#allocation9]
        $region24: #{tpu_custom_call.1} parent=11 // pred_fallthru
          _
        // Predicated region
        $region25: #{tpu_custom_call.1} parent=11 // pred_check
          %p259 = pneg %p109
        $region26: #{tpu_custom_call.1} parent=11 // pred_check_branch
          %261 = sbr.rel (%p259) target = $region28
        $region27: #{tpu_custom_call.1} parent=11 // pred_region
          %s263 = ssub.s32 16, 16
          %264 = vsyncadd [#allocation9], %s263
          %s266 = sshll.u32 %s3, 4
          %s267 = int_to_ptr.vmem [resolvable:$true] %s266
          %269 = dma.vmem_to_smem %s267, 16, [#allocation10], [#allocation9]
        $region28: #{tpu_custom_call.1} parent=11 // pred_fallthru
          _
      $region12: #{tpu_custom_call.1} parent=5 // pred_fallthru
        _
      %p270 = scmp.lt.s32.totalorder %s25, 2
      // Predicated region
      $region29: #{tpu_custom_call.1} parent=5 // pred_check
        %p271 = pneg %p270
      $region30: #{tpu_custom_call.1} parent=5 // pred_check_branch
        %273 = sbr.rel (%p271) target = $region32
      $region31: #{tpu_custom_call.1} parent=5 // pred_region
        // Predicated region
        $region33: #{tpu_custom_call.1} parent=31 // pred_check
          %p274 = pneg %p129
        $region34: #{tpu_custom_call.1} parent=31 // pred_check_branch
          %276 = sbr.rel (%p274) target = $region36
        $region35: #{tpu_custom_call.1} parent=31 // pred_region
          %s277 = sand.u32 %s119, 1
          %s278 = scalar_lea.sflag [#allocation3], %s277
          %s279 = sand.u32 %s119, 1
          %s280 = smul.addr %s279, 88
          %s281 = scalar_lea.vmem [#allocation11], %s280
          %s283 = ssub.s32 1408, 1408
          %284 = vsyncadd %s278, %s283
          %s285 = smul.addr %s25, 128
          %s286 = scalar_lea.hbm %s4, %s285
          %s287 = sshll.u32 %s281, 4
          %s288 = int_to_ptr.vmem [resolvable:$true] %s287
          %293 = dma.hbm_to_vmem [thread:$0]  %s286, 1408, %s288, %s278, 256, 128, 8
        $region36: #{tpu_custom_call.1} parent=31 // pred_fallthru
          _
        // Predicated region
        $region37: #{tpu_custom_call.1} parent=31 // pred_check
          %p294 = pneg %p155
        $region38: #{tpu_custom_call.1} parent=31 // pred_check_branch
          %296 = sbr.rel (%p294) target = $region40
        $region39: #{tpu_custom_call.1} parent=31 // pred_region
          %s297 = sand.u32 %s25, 1
          %s298 = scalar_lea.sflag [#allocation13], %s297
          %s299 = sand.u32 %s145, 1
          %s300 = smul.addr %s299, 80
          %s301 = scalar_lea.vmem [#allocation12], %s300
          %s303 = ssub.s32 1280, 1280
          %304 = vsyncadd %s298, %s303
          %s305 = smul.addr %s25, 128
          %s306 = scalar_lea.hbm %s5, %s305
          %s307 = sshll.u32 %s301, 4
          %s308 = int_to_ptr.vmem [resolvable:$true] %s307
          %313 = dma.hbm_to_vmem [thread:$0]  %s306, 1280, %s308, %s298, 256, 128, 8
        $region40: #{tpu_custom_call.1} parent=31 // pred_fallthru
          _
        // Predicated region
        $region41: #{tpu_custom_call.1} parent=31 // pred_check
          %p314 = pneg %p181
        $region42: #{tpu_custom_call.1} parent=31 // pred_check_branch
          %316 = sbr.rel (%p314) target = $region44
        $region43: #{tpu_custom_call.1} parent=31 // pred_region
          %s317 = sand.u32 %s25, 1
          %s318 = scalar_lea.sflag [#allocation13], %s317
          %s319 = sand.u32 %s171, 1
          %s320 = smul.addr %s319, 8
          %s321 = scalar_lea.vmem [#allocation14], %s320
          %s323 = ssub.s32 128, 128
          %324 = vsyncadd %s318, %s323
          %s325 = smul.addr %s25, 128
          %s326 = scalar_lea.hbm %s6, %s325
          %s328 = sshll.u32 %s321, 4
          %s329 = int_to_ptr.vmem [resolvable:$true] %s328
          %331 = dma.hbm_to_vmem [thread:$0]  %s326, 128, %s329, %s318
        $region44: #{tpu_custom_call.1} parent=31 // pred_fallthru
          _
      $region32: #{tpu_custom_call.1} parent=5 // pred_fallthru
        _
      %p332 = scmp.le.s32.totalorder 1, %s25
      %p333 = scmp.lt.s32.totalorder %s25, 3
      %p334 = pnand %p332, %p333
      %p335 = pneg %p334
      // Predicated region
      $region45: #{tpu_custom_call.1} parent=5 // pred_check
        _
      $region46: #{tpu_custom_call.1} parent=5 // pred_check_branch
        %337 = sbr.rel (%p334) target = $region48
      $region47: #{tpu_custom_call.1} parent=5 // pred_region
        %s338 = ssub.s32 %s25, 1
        // Predicated region
        $region49: #{tpu_custom_call.1} parent=47 // pred_check
          %p339 = pneg %p46
        $region50: #{tpu_custom_call.1} parent=47 // pred_check_branch
          %341 = sbr.rel (%p339) target = $region52
        $region51: #{tpu_custom_call.1} parent=47 // pred_region
          %342 = dma.done [#allocation5], 16
        $region52: #{tpu_custom_call.1} parent=47 // pred_fallthru
          _
        // Predicated region
        $region53: #{tpu_custom_call.1} parent=47 // pred_check
          %p343 = pneg %p67
        $region54: #{tpu_custom_call.1} parent=47 // pred_check_branch
          %345 = sbr.rel (%p343) target = $region56
        $region55: #{tpu_custom_call.1} parent=47 // pred_region
          %346 = dma.done [#allocation6], 16
        $region56: #{tpu_custom_call.1} parent=47 // pred_fallthru
          _
        // Predicated region
        $region57: #{tpu_custom_call.1} parent=47 // pred_check
          %p347 = pneg %p88
        $region58: #{tpu_custom_call.1} parent=47 // pred_check_branch
          %349 = sbr.rel (%p347) target = $region60
        $region59: #{tpu_custom_call.1} parent=47 // pred_region
          %350 = dma.done [#allocation9], 16
        $region60: #{tpu_custom_call.1} parent=47 // pred_fallthru
          _
        // Predicated region
        $region61: #{tpu_custom_call.1} parent=47 // pred_check
          %p351 = pneg %p109
        $region62: #{tpu_custom_call.1} parent=47 // pred_check_branch
          %353 = sbr.rel (%p351) target = $region64
        $region63: #{tpu_custom_call.1} parent=47 // pred_region
          %354 = dma.done [#allocation9], 16
        $region64: #{tpu_custom_call.1} parent=47 // pred_fallthru
          _
        %s355 = sand.u32 %s122, 1
        %s356 = scalar_lea.sflag [#allocation3], %s355
        %s357 = sand.u32 %s122, 1
        %s358 = smul.addr %s357, 88
        %s359 = scalar_lea.vmem [#allocation11], %s358
        // Predicated region
        $region65: #{tpu_custom_call.1} parent=47 // pred_check
          %p360 = pneg %p135
        $region66: #{tpu_custom_call.1} parent=47 // pred_check_branch
          %362 = sbr.rel (%p360) target = $region68
        $region67: #{tpu_custom_call.1} parent=47 // pred_region
          %363 = dma.done %s356, 1408
        $region68: #{tpu_custom_call.1} parent=47 // pred_fallthru
          _
        %s364 = sand.u32 %s30, 1
        %s365 = scalar_lea.sflag [#allocation13], %s364
        %s366 = sand.u32 %s148, 1
        %s367 = smul.addr %s366, 80
        %s368 = scalar_lea.vmem [#allocation12], %s367
        // Predicated region
        $region69: #{tpu_custom_call.1} parent=47 // pred_check
          %p369 = pneg %p161
        $region70: #{tpu_custom_call.1} parent=47 // pred_check_branch
          %371 = sbr.rel (%p369) target = $region72
        $region71: #{tpu_custom_call.1} parent=47 // pred_region
          %372 = dma.done %s365, 1280
        $region72: #{tpu_custom_call.1} parent=47 // pred_fallthru
          _
        %s373 = sand.u32 %s30, 1
        %s374 = scalar_lea.sflag [#allocation13], %s373
        %s375 = sand.u32 %s174, 1
        %s376 = smul.addr %s375, 8
        %s377 = scalar_lea.vmem [#allocation14], %s376
        // Predicated region
        $region73: #{tpu_custom_call.1} parent=47 // pred_check
          %p378 = pneg %p187
        $region74: #{tpu_custom_call.1} parent=47 // pred_check_branch
          %380 = sbr.rel (%p378) target = $region76
        $region75: #{tpu_custom_call.1} parent=47 // pred_region
          %381 = dma.done %s374, 128
        $region76: #{tpu_custom_call.1} parent=47 // pred_fallthru
          _
        %382 = sfence
        %p383 = pneg %p46
        %p384 = pneg %p43
        %p385 = pneg %p67
        %p386 = pneg %p64
        %p387 = pneg %p88
        %p388 = pneg %p85
        %p389 = pneg %p109
        %p390 = pneg %p106
        %s391 = sand.u32 %s122, 1
        %s392 = scalar_lea.sflag [#allocation3], %s391
        %s393 = sand.u32 %s122, 1
        %s394 = smul.addr %s393, 88
        %s395 = scalar_lea.vmem [#allocation11], %s394
        %p396 = pneg %p135
        %p397 = pneg %p132
        %s398 = sand.u32 %s30, 1
        %s399 = scalar_lea.sflag [#allocation13], %s398
        %s400 = sand.u32 %s148, 1
        %s401 = smul.addr %s400, 80
        %s402 = scalar_lea.vmem [#allocation12], %s401
        %p403 = pneg %p161
        %p404 = pneg %p158
        %s405 = sand.u32 %s30, 1
        %s406 = scalar_lea.sflag [#allocation13], %s405
        %s407 = sand.u32 %s174, 1
        %s408 = smul.addr %s407, 8
        %s409 = scalar_lea.vmem [#allocation14], %s408
        %p410 = pneg %p187
        %p411 = pneg %p184
        %p412 = pneg %p213
        %p413 = pneg %p210
        %s414 = sand.u32 %s200, 1
        %s415 = scalar_lea.sflag [#allocation4], %s414
        %s416 = sand.u32 %s200, 1
        %s417 = smul.addr %s416, 8
        %s418 = scalar_lea.vmem [#allocation15], %s417
        %v419 = vld [vmem:[%s368] sm:$0xff]
        %v420 = vld [vmem:[%s359] sm:$0xff]
        %s421 = sld [smem:[#allocation2]]
        %v422 = vstv %s421
        %v423 = vmul.f32 %v419, %v422
        %s424 = sld [smem:[#allocation7]]
        %v425 = vstv %s424
        %v426 = vadd.f32 %v423, %v425
        %v427 = vmax.f32 %v426, 0.0
        %s428 = sld [smem:[#allocation8]]
        %v429 = vstv %s428
        %v430 = vmul.f32 %v427, %v429
        %v431 = vadd.f32 %v430, 0.0
        %s432 = sld [smem:[#allocation2 + $0x1]]
        %v433 = vstv %s432
        %v434 = vmul.f32 %v419, %v433
        %s435 = sld [smem:[#allocation7 + $0x1]]
        %v436 = vstv %s435
        %v437 = vadd.f32 %v434, %v436
        %v438 = vmax.f32 %v437, 0.0
        %s439 = sld [smem:[#allocation8 + $0x1]]
        %v440 = vstv %s439
        %v441 = vmul.f32 %v438, %v440
        %v442 = vadd.f32 %v431, %v441
        %s443 = sld [smem:[#allocation2 + $0x2]]
        %v444 = vstv %s443
        %v445 = vmul.f32 %v419, %v444
        %s446 = sld [smem:[#allocation7 + $0x2]]
        %v447 = vstv %s446
        %v448 = vadd.f32 %v445, %v447
        %v449 = vmax.f32 %v448, 0.0
        %s450 = sld [smem:[#allocation8 + $0x2]]
        %v451 = vstv %s450
        %v452 = vmul.f32 %v449, %v451
        %v453 = vadd.f32 %v442, %v452
        %s454 = sld [smem:[#allocation2 + $0x3]]
        %v455 = vstv %s454
        %v456 = vmul.f32 %v419, %v455
        %s457 = sld [smem:[#allocation7 + $0x3]]
        %v458 = vstv %s457
        %v459 = vadd.f32 %v456, %v458
        %v460 = vmax.f32 %v459, 0.0
        %s461 = sld [smem:[#allocation8 + $0x3]]
        %v462 = vstv %s461
        %v463 = vmul.f32 %v460, %v462
        %v464 = vadd.f32 %v453, %v463
        %s465 = sld [smem:[#allocation2 + $0x4]]
        %v466 = vstv %s465
        %v467 = vmul.f32 %v419, %v466
        %s468 = sld [smem:[#allocation7 + $0x4]]
        %v469 = vstv %s468
        %v470 = vadd.f32 %v467, %v469
        %v471 = vmax.f32 %v470, 0.0
        %s472 = sld [smem:[#allocation8 + $0x4]]
        %v473 = vstv %s472
        %v474 = vmul.f32 %v471, %v473
        %v475 = vadd.f32 %v464, %v474
        %s476 = sld [smem:[#allocation2 + $0x5]]
        %v477 = vstv %s476
        %v478 = vmul.f32 %v419, %v477
        %s479 = sld [smem:[#allocation7 + $0x5]]
        %v480 = vstv %s479
        %v481 = vadd.f32 %v478, %v480
        %v482 = vmax.f32 %v481, 0.0
        %s483 = sld [smem:[#allocation8 + $0x5]]
        %v484 = vstv %s483
        %v485 = vmul.f32 %v482, %v484
        %v486 = vadd.f32 %v475, %v485
        %s487 = sld [smem:[#allocation2 + $0x6]]
        %v488 = vstv %s487
        %v489 = vmul.f32 %v419, %v488
        %s490 = sld [smem:[#allocation7 + $0x6]]
        %v491 = vstv %s490
        %v492 = vadd.f32 %v489, %v491
        %v493 = vmax.f32 %v492, 0.0
        %s494 = sld [smem:[#allocation8 + $0x6]]
        %v495 = vstv %s494
        %v496 = vmul.f32 %v493, %v495
        %v497 = vadd.f32 %v486, %v496
        %s498 = sld [smem:[#allocation2 + $0x7]]
        %v499 = vstv %s498
        %v500 = vmul.f32 %v419, %v499
        %s501 = sld [smem:[#allocation7 + $0x7]]
        %v502 = vstv %s501
        %v503 = vadd.f32 %v500, %v502
        %v504 = vmax.f32 %v503, 0.0
        %s505 = sld [smem:[#allocation8 + $0x7]]
        %v506 = vstv %s505
        %v507 = vmul.f32 %v504, %v506
        %v508 = vadd.f32 %v497, %v507
        %s509 = sld [smem:[#allocation2 + $0x8]]
        %v510 = vstv %s509
        %v511 = vmul.f32 %v419, %v510
        %s512 = sld [smem:[#allocation7 + $0x8]]
        %v513 = vstv %s512
        %v514 = vadd.f32 %v511, %v513
        %v515 = vmax.f32 %v514, 0.0
        %s516 = sld [smem:[#allocation8 + $0x8]]
        %v517 = vstv %s516
        %v518 = vmul.f32 %v515, %v517
        %v519 = vadd.f32 %v508, %v518
        %s520 = sld [smem:[#allocation2 + $0x9]]
        %v521 = vstv %s520
        %v522 = vmul.f32 %v419, %v521
        %s523 = sld [smem:[#allocation7 + $0x9]]
        %v524 = vstv %s523
        %v525 = vadd.f32 %v522, %v524
        %v526 = vmax.f32 %v525, 0.0
        %s527 = sld [smem:[#allocation8 + $0x9]]
        %v528 = vstv %s527
        %v529 = vmul.f32 %v526, %v528
        %v530 = vadd.f32 %v519, %v529
        %s531 = sld [smem:[#allocation10]]
        %v532 = vstv %s531
        %v533 = vadd.f32 %v530, %v532
        %v534 = vmul.f32 %v533, %v420
        %v535 = vsub.f32 0.0, %v534
        %s536 = scalar_lea.vmem %s368, 8 [#allocation12]
        %v537 = vld [vmem:[%s536] sm:$0xff]
        %s538 = scalar_lea.vmem %s359, 8 [#allocation11]
        %v539 = vld [vmem:[%s538] sm:$0xff]
        %s540 = sld [smem:[#allocation2 + $0xa]]
        %v541 = vstv %s540
        %v542 = vmul.f32 %v537, %v541
        %s543 = sld [smem:[#allocation7 + $0xa]]
        %v544 = vstv %s543
        %v545 = vadd.f32 %v542, %v544
        %v546 = vmax.f32 %v545, 0.0
        %s547 = sld [smem:[#allocation8 + $0xa]]
        %v548 = vstv %s547
        %v549 = vmul.f32 %v546, %v548
        %v550 = vadd.f32 %v549, 0.0
        %s551 = sld [smem:[#allocation2 + $0xb]]
        %v552 = vstv %s551
        %v553 = vmul.f32 %v537, %v552
        %s554 = sld [smem:[#allocation7 + $0xb]]
        %v555 = vstv %s554
        %v556 = vadd.f32 %v553, %v555
        %v557 = vmax.f32 %v556, 0.0
        %s558 = sld [smem:[#allocation8 + $0xb]]
        %v559 = vstv %s558
        %v560 = vmul.f32 %v557, %v559
        %v561 = vadd.f32 %v550, %v560
        %s562 = sld [smem:[#allocation2 + $0xc]]
        %v563 = vstv %s562
        %v564 = vmul.f32 %v537, %v563
        %s565 = sld [smem:[#allocation7 + $0xc]]
        %v566 = vstv %s565
        %v567 = vadd.f32 %v564, %v566
        %v568 = vmax.f32 %v567, 0.0
        %s569 = sld [smem:[#allocation8 + $0xc]]
        %v570 = vstv %s569
        %v571 = vmul.f32 %v568, %v570
        %v572 = vadd.f32 %v561, %v571
        %s573 = sld [smem:[#allocation2 + $0xd]]
        %v574 = vstv %s573
        %v575 = vmul.f32 %v537, %v574
        %s576 = sld [smem:[#allocation7 + $0xd]]
        %v577 = vstv %s576
        %v578 = vadd.f32 %v575, %v577
        %v579 = vmax.f32 %v578, 0.0
        %s580 = sld [smem:[#allocation8 + $0xd]]
        %v581 = vstv %s580
        %v582 = vmul.f32 %v579, %v581
        %v583 = vadd.f32 %v572, %v582
        %s584 = sld [smem:[#allocation2 + $0xe]]
        %v585 = vstv %s584
        %v586 = vmul.f32 %v537, %v585
        %s587 = sld [smem:[#allocation7 + $0xe]]
        %v588 = vstv %s587
        %v589 = vadd.f32 %v586, %v588
        %v590 = vmax.f32 %v589, 0.0
        %s591 = sld [smem:[#allocation8 + $0xe]]
        %v592 = vstv %s591
        %v593 = vmul.f32 %v590, %v592
        %v594 = vadd.f32 %v583, %v593
        %s595 = sld [smem:[#allocation2 + $0xf]]
        %v596 = vstv %s595
        %v597 = vmul.f32 %v537, %v596
        %s598 = sld [smem:[#allocation7 + $0xf]]
        %v599 = vstv %s598
        %v600 = vadd.f32 %v597, %v599
        %v601 = vmax.f32 %v600, 0.0
        %s602 = sld [smem:[#allocation8 + $0xf]]
        %v603 = vstv %s602
        %v604 = vmul.f32 %v601, %v603
        %v605 = vadd.f32 %v594, %v604
        %s606 = sld [smem:[#allocation2 + $0x10]]
        %v607 = vstv %s606
        %v608 = vmul.f32 %v537, %v607
        %s609 = sld [smem:[#allocation7 + $0x10]]
        %v610 = vstv %s609
        %v611 = vadd.f32 %v608, %v610
        %v612 = vmax.f32 %v611, 0.0
        %s613 = sld [smem:[#allocation8 + $0x10]]
        %v614 = vstv %s613
        %v615 = vmul.f32 %v612, %v614
        %v616 = vadd.f32 %v605, %v615
        %s617 = sld [smem:[#allocation2 + $0x11]]
        %v618 = vstv %s617
        %v619 = vmul.f32 %v537, %v618
        %s620 = sld [smem:[#allocation7 + $0x11]]
        %v621 = vstv %s620
        %v622 = vadd.f32 %v619, %v621
        %v623 = vmax.f32 %v622, 0.0
        %s624 = sld [smem:[#allocation8 + $0x11]]
        %v625 = vstv %s624
        %v626 = vmul.f32 %v623, %v625
        %v627 = vadd.f32 %v616, %v626
        %s628 = sld [smem:[#allocation2 + $0x12]]
        %v629 = vstv %s628
        %v630 = vmul.f32 %v537, %v629
        %s631 = sld [smem:[#allocation7 + $0x12]]
        %v632 = vstv %s631
        %v633 = vadd.f32 %v630, %v632
        %v634 = vmax.f32 %v633, 0.0
        %s635 = sld [smem:[#allocation8 + $0x12]]
        %v636 = vstv %s635
        %v637 = vmul.f32 %v634, %v636
        %v638 = vadd.f32 %v627, %v637
        %s639 = sld [smem:[#allocation2 + $0x13]]
        %v640 = vstv %s639
        %v641 = vmul.f32 %v537, %v640
        %s642 = sld [smem:[#allocation7 + $0x13]]
        %v643 = vstv %s642
        %v644 = vadd.f32 %v641, %v643
        %v645 = vmax.f32 %v644, 0.0
        %s646 = sld [smem:[#allocation8 + $0x13]]
        %v647 = vstv %s646
        %v648 = vmul.f32 %v645, %v647
        %v649 = vadd.f32 %v638, %v648
        %s650 = sld [smem:[#allocation10 + $0x1]]
        %v651 = vstv %s650
        %v652 = vadd.f32 %v649, %v651
        %v653 = vsub.f32 %v652, %v533
        %v654 = vmul.f32 %v653, %v539
        %v655 = vsub.f32 %v535, %v654
        %s656 = scalar_lea.vmem %s368, 16 [#allocation12]
        %v657 = vld [vmem:[%s656] sm:$0xff]
        %s658 = scalar_lea.vmem %s359, 16 [#allocation11]
        %v659 = vld [vmem:[%s658] sm:$0xff]
        %s660 = sld [smem:[#allocation2 + $0x14]]
        %v661 = vstv %s660
        %v662 = vmul.f32 %v657, %v661
        %s663 = sld [smem:[#allocation7 + $0x14]]
        %v664 = vstv %s663
        %v665 = vadd.f32 %v662, %v664
        %v666 = vmax.f32 %v665, 0.0
        %s667 = sld [smem:[#allocation8 + $0x14]]
        %v668 = vstv %s667
        %v669 = vmul.f32 %v666, %v668
        %v670 = vadd.f32 %v669, 0.0
        %s671 = sld [smem:[#allocation2 + $0x15]]
        %v672 = vstv %s671
        %v673 = vmul.f32 %v657, %v672
        %s674 = sld [smem:[#allocation7 + $0x15]]
        %v675 = vstv %s674
        %v676 = vadd.f32 %v673, %v675
        %v677 = vmax.f32 %v676, 0.0
        %s678 = sld [smem:[#allocation8 + $0x15]]
        %v679 = vstv %s678
        %v680 = vmul.f32 %v677, %v679
        %v681 = vadd.f32 %v670, %v680
        %s682 = sld [smem:[#allocation2 + $0x16]]
        %v683 = vstv %s682
        %v684 = vmul.f32 %v657, %v683
        %s685 = sld [smem:[#allocation7 + $0x16]]
        %v686 = vstv %s685
        %v687 = vadd.f32 %v684, %v686
        %v688 = vmax.f32 %v687, 0.0
        %s689 = sld [smem:[#allocation8 + $0x16]]
        %v690 = vstv %s689
        %v691 = vmul.f32 %v688, %v690
        %v692 = vadd.f32 %v681, %v691
        %s693 = sld [smem:[#allocation2 + $0x17]]
        %v694 = vstv %s693
        %v695 = vmul.f32 %v657, %v694
        %s696 = sld [smem:[#allocation7 + $0x17]]
        %v697 = vstv %s696
        %v698 = vadd.f32 %v695, %v697
        %v699 = vmax.f32 %v698, 0.0
        %s700 = sld [smem:[#allocation8 + $0x17]]
        %v701 = vstv %s700
        %v702 = vmul.f32 %v699, %v701
        %v703 = vadd.f32 %v692, %v702
        %s704 = sld [smem:[#allocation2 + $0x18]]
        %v705 = vstv %s704
        %v706 = vmul.f32 %v657, %v705
        %s707 = sld [smem:[#allocation7 + $0x18]]
        %v708 = vstv %s707
        %v709 = vadd.f32 %v706, %v708
        %v710 = vmax.f32 %v709, 0.0
        %s711 = sld [smem:[#allocation8 + $0x18]]
        %v712 = vstv %s711
        %v713 = vmul.f32 %v710, %v712
        %v714 = vadd.f32 %v703, %v713
        %s715 = sld [smem:[#allocation2 + $0x19]]
        %v716 = vstv %s715
        %v717 = vmul.f32 %v657, %v716
        %s718 = sld [smem:[#allocation7 + $0x19]]
        %v719 = vstv %s718
        %v720 = vadd.f32 %v717, %v719
        %v721 = vmax.f32 %v720, 0.0
        %s722 = sld [smem:[#allocation8 + $0x19]]
        %v723 = vstv %s722
        %v724 = vmul.f32 %v721, %v723
        %v725 = vadd.f32 %v714, %v724
        %s726 = sld [smem:[#allocation2 + $0x1a]]
        %v727 = vstv %s726
        %v728 = vmul.f32 %v657, %v727
        %s729 = sld [smem:[#allocation7 + $0x1a]]
        %v730 = vstv %s729
        %v731 = vadd.f32 %v728, %v730
        %v732 = vmax.f32 %v731, 0.0
        %s733 = sld [smem:[#allocation8 + $0x1a]]
        %v734 = vstv %s733
        %v735 = vmul.f32 %v732, %v734
        %v736 = vadd.f32 %v725, %v735
        %s737 = sld [smem:[#allocation2 + $0x1b]]
        %v738 = vstv %s737
        %v739 = vmul.f32 %v657, %v738
        %s740 = sld [smem:[#allocation7 + $0x1b]]
        %v741 = vstv %s740
        %v742 = vadd.f32 %v739, %v741
        %v743 = vmax.f32 %v742, 0.0
        %s744 = sld [smem:[#allocation8 + $0x1b]]
        %v745 = vstv %s744
        %v746 = vmul.f32 %v743, %v745
        %v747 = vadd.f32 %v736, %v746
        %s748 = sld [smem:[#allocation2 + $0x1c]]
        %v749 = vstv %s748
        %v750 = vmul.f32 %v657, %v749
        %s751 = sld [smem:[#allocation7 + $0x1c]]
        %v752 = vstv %s751
        %v753 = vadd.f32 %v750, %v752
        %v754 = vmax.f32 %v753, 0.0
        %s755 = sld [smem:[#allocation8 + $0x1c]]
        %v756 = vstv %s755
        %v757 = vmul.f32 %v754, %v756
        %v758 = vadd.f32 %v747, %v757
        %s759 = sld [smem:[#allocation2 + $0x1d]]
        %v760 = vstv %s759
        %v761 = vmul.f32 %v657, %v760
        %s762 = sld [smem:[#allocation7 + $0x1d]]
        %v763 = vstv %s762
        %v764 = vadd.f32 %v761, %v763
        %v765 = vmax.f32 %v764, 0.0
        %s766 = sld [smem:[#allocation8 + $0x1d]]
        %v767 = vstv %s766
        %v768 = vmul.f32 %v765, %v767
        %v769 = vadd.f32 %v758, %v768
        %s770 = sld [smem:[#allocation10 + $0x2]]
        %v771 = vstv %s770
        %v772 = vadd.f32 %v769, %v771
        %v773 = vsub.f32 %v772, %v652
        %v774 = vmul.f32 %v773, %v659
        %v775 = vsub.f32 %v655, %v774
        %s776 = scalar_lea.vmem %s368, 24 [#allocation12]
        %v777 = vld [vmem:[%s776] sm:$0xff]
        %s778 = scalar_lea.vmem %s359, 24 [#allocation11]
        %v779 = vld [vmem:[%s778] sm:$0xff]
        %s780 = sld [smem:[#allocation2 + $0x1e]]
        %v781 = vstv %s780
        %v782 = vmul.f32 %v777, %v781
        %s783 = sld [smem:[#allocation7 + $0x1e]]
        %v784 = vstv %s783
        %v785 = vadd.f32 %v782, %v784
        %v786 = vmax.f32 %v785, 0.0
        %s787 = sld [smem:[#allocation8 + $0x1e]]
        %v788 = vstv %s787
        %v789 = vmul.f32 %v786, %v788
        %v790 = vadd.f32 %v789, 0.0
        %s791 = sld [smem:[#allocation2 + $0x1f]]
        %v792 = vstv %s791
        %v793 = vmul.f32 %v777, %v792
        %s794 = sld [smem:[#allocation7 + $0x1f]]
        %v795 = vstv %s794
        %v796 = vadd.f32 %v793, %v795
        %v797 = vmax.f32 %v796, 0.0
        %s798 = sld [smem:[#allocation8 + $0x1f]]
        %v799 = vstv %s798
        %v800 = vmul.f32 %v797, %v799
        %v801 = vadd.f32 %v790, %v800
        %s802 = sld [smem:[#allocation2 + $0x20]]
        %v803 = vstv %s802
        %v804 = vmul.f32 %v777, %v803
        %s805 = sld [smem:[#allocation7 + $0x20]]
        %v806 = vstv %s805
        %v807 = vadd.f32 %v804, %v806
        %v808 = vmax.f32 %v807, 0.0
        %s809 = sld [smem:[#allocation8 + $0x20]]
        %v810 = vstv %s809
        %v811 = vmul.f32 %v808, %v810
        %v812 = vadd.f32 %v801, %v811
        %s813 = sld [smem:[#allocation2 + $0x21]]
        %v814 = vstv %s813
        %v815 = vmul.f32 %v777, %v814
        %s816 = sld [smem:[#allocation7 + $0x21]]
        %v817 = vstv %s816
        %v818 = vadd.f32 %v815, %v817
        %v819 = vmax.f32 %v818, 0.0
        %s820 = sld [smem:[#allocation8 + $0x21]]
        %v821 = vstv %s820
        %v822 = vmul.f32 %v819, %v821
        %v823 = vadd.f32 %v812, %v822
        %s824 = sld [smem:[#allocation2 + $0x22]]
        %v825 = vstv %s824
        %v826 = vmul.f32 %v777, %v825
        %s827 = sld [smem:[#allocation7 + $0x22]]
        %v828 = vstv %s827
        %v829 = vadd.f32 %v826, %v828
        %v830 = vmax.f32 %v829, 0.0
        %s831 = sld [smem:[#allocation8 + $0x22]]
        %v832 = vstv %s831
        %v833 = vmul.f32 %v830, %v832
        %v834 = vadd.f32 %v823, %v833
        %s835 = sld [smem:[#allocation2 + $0x23]]
        %v836 = vstv %s835
        %v837 = vmul.f32 %v777, %v836
        %s838 = sld [smem:[#allocation7 + $0x23]]
        %v839 = vstv %s838
        %v840 = vadd.f32 %v837, %v839
        %v841 = vmax.f32 %v840, 0.0
        %s842 = sld [smem:[#allocation8 + $0x23]]
        %v843 = vstv %s842
        %v844 = vmul.f32 %v841, %v843
        %v845 = vadd.f32 %v834, %v844
        %s846 = sld [smem:[#allocation2 + $0x24]]
        %v847 = vstv %s846
        %v848 = vmul.f32 %v777, %v847
        %s849 = sld [smem:[#allocation7 + $0x24]]
        %v850 = vstv %s849
        %v851 = vadd.f32 %v848, %v850
        %v852 = vmax.f32 %v851, 0.0
        %s853 = sld [smem:[#allocation8 + $0x24]]
        %v854 = vstv %s853
        %v855 = vmul.f32 %v852, %v854
        %v856 = vadd.f32 %v845, %v855
        %s857 = sld [smem:[#allocation2 + $0x25]]
        %v858 = vstv %s857
        %v859 = vmul.f32 %v777, %v858
        %s860 = sld [smem:[#allocation7 + $0x25]]
        %v861 = vstv %s860
        %v862 = vadd.f32 %v859, %v861
        %v863 = vmax.f32 %v862, 0.0
        %s864 = sld [smem:[#allocation8 + $0x25]]
        %v865 = vstv %s864
        %v866 = vmul.f32 %v863, %v865
        %v867 = vadd.f32 %v856, %v866
        %s868 = sld [smem:[#allocation2 + $0x26]]
        %v869 = vstv %s868
        %v870 = vmul.f32 %v777, %v869
        %s871 = sld [smem:[#allocation7 + $0x26]]
        %v872 = vstv %s871
        %v873 = vadd.f32 %v870, %v872
        %v874 = vmax.f32 %v873, 0.0
        %s875 = sld [smem:[#allocation8 + $0x26]]
        %v876 = vstv %s875
        %v877 = vmul.f32 %v874, %v876
        %v878 = vadd.f32 %v867, %v877
        %s879 = sld [smem:[#allocation2 + $0x27]]
        %v880 = vstv %s879
        %v881 = vmul.f32 %v777, %v880
        %s882 = sld [smem:[#allocation7 + $0x27]]
        %v883 = vstv %s882
        %v884 = vadd.f32 %v881, %v883
        %v885 = vmax.f32 %v884, 0.0
        %s886 = sld [smem:[#allocation8 + $0x27]]
        %v887 = vstv %s886
        %v888 = vmul.f32 %v885, %v887
        %v889 = vadd.f32 %v878, %v888
        %s890 = sld [smem:[#allocation10 + $0x3]]
        %v891 = vstv %s890
        %v892 = vadd.f32 %v889, %v891
        %v893 = vsub.f32 %v892, %v772
        %v894 = vmul.f32 %v893, %v779
        %v895 = vsub.f32 %v775, %v894
        %s896 = scalar_lea.vmem %s368, 32 [#allocation12]
        %v897 = vld [vmem:[%s896] sm:$0xff]
        %s898 = scalar_lea.vmem %s359, 32 [#allocation11]
        %v899 = vld [vmem:[%s898] sm:$0xff]
        %s900 = sld [smem:[#allocation2 + $0x28]]
        %v901 = vstv %s900
        %v902 = vmul.f32 %v897, %v901
        %s903 = sld [smem:[#allocation7 + $0x28]]
        %v904 = vstv %s903
        %v905 = vadd.f32 %v902, %v904
        %v906 = vmax.f32 %v905, 0.0
        %s907 = sld [smem:[#allocation8 + $0x28]]
        %v908 = vstv %s907
        %v909 = vmul.f32 %v906, %v908
        %v910 = vadd.f32 %v909, 0.0
        %s911 = sld [smem:[#allocation2 + $0x29]]
        %v912 = vstv %s911
        %v913 = vmul.f32 %v897, %v912
        %s914 = sld [smem:[#allocation7 + $0x29]]
        %v915 = vstv %s914
        %v916 = vadd.f32 %v913, %v915
        %v917 = vmax.f32 %v916, 0.0
        %s918 = sld [smem:[#allocation8 + $0x29]]
        %v919 = vstv %s918
        %v920 = vmul.f32 %v917, %v919
        %v921 = vadd.f32 %v910, %v920
        %s922 = sld [smem:[#allocation2 + $0x2a]]
        %v923 = vstv %s922
        %v924 = vmul.f32 %v897, %v923
        %s925 = sld [smem:[#allocation7 + $0x2a]]
        %v926 = vstv %s925
        %v927 = vadd.f32 %v924, %v926
        %v928 = vmax.f32 %v927, 0.0
        %s929 = sld [smem:[#allocation8 + $0x2a]]
        %v930 = vstv %s929
        %v931 = vmul.f32 %v928, %v930
        %v932 = vadd.f32 %v921, %v931
        %s933 = sld [smem:[#allocation2 + $0x2b]]
        %v934 = vstv %s933
        %v935 = vmul.f32 %v897, %v934
        %s936 = sld [smem:[#allocation7 + $0x2b]]
        %v937 = vstv %s936
        %v938 = vadd.f32 %v935, %v937
        %v939 = vmax.f32 %v938, 0.0
        %s940 = sld [smem:[#allocation8 + $0x2b]]
        %v941 = vstv %s940
        %v942 = vmul.f32 %v939, %v941
        %v943 = vadd.f32 %v932, %v942
        %s944 = sld [smem:[#allocation2 + $0x2c]]
        %v945 = vstv %s944
        %v946 = vmul.f32 %v897, %v945
        %s947 = sld [smem:[#allocation7 + $0x2c]]
        %v948 = vstv %s947
        %v949 = vadd.f32 %v946, %v948
        %v950 = vmax.f32 %v949, 0.0
        %s951 = sld [smem:[#allocation8 + $0x2c]]
        %v952 = vstv %s951
        %v953 = vmul.f32 %v950, %v952
        %v954 = vadd.f32 %v943, %v953
        %s955 = sld [smem:[#allocation2 + $0x2d]]
        %v956 = vstv %s955
        %v957 = vmul.f32 %v897, %v956
        %s958 = sld [smem:[#allocation7 + $0x2d]]
        %v959 = vstv %s958
        %v960 = vadd.f32 %v957, %v959
        %v961 = vmax.f32 %v960, 0.0
        %s962 = sld [smem:[#allocation8 + $0x2d]]
        %v963 = vstv %s962
        %v964 = vmul.f32 %v961, %v963
        %v965 = vadd.f32 %v954, %v964
        %s966 = sld [smem:[#allocation2 + $0x2e]]
        %v967 = vstv %s966
        %v968 = vmul.f32 %v897, %v967
        %s969 = sld [smem:[#allocation7 + $0x2e]]
        %v970 = vstv %s969
        %v971 = vadd.f32 %v968, %v970
        %v972 = vmax.f32 %v971, 0.0
        %s973 = sld [smem:[#allocation8 + $0x2e]]
        %v974 = vstv %s973
        %v975 = vmul.f32 %v972, %v974
        %v976 = vadd.f32 %v965, %v975
        %s977 = sld [smem:[#allocation2 + $0x2f]]
        %v978 = vstv %s977
        %v979 = vmul.f32 %v897, %v978
        %s980 = sld [smem:[#allocation7 + $0x2f]]
        %v981 = vstv %s980
        %v982 = vadd.f32 %v979, %v981
        %v983 = vmax.f32 %v982, 0.0
        %s984 = sld [smem:[#allocation8 + $0x2f]]
        %v985 = vstv %s984
        %v986 = vmul.f32 %v983, %v985
        %v987 = vadd.f32 %v976, %v986
        %s988 = sld [smem:[#allocation2 + $0x30]]
        %v989 = vstv %s988
        %v990 = vmul.f32 %v897, %v989
        %s991 = sld [smem:[#allocation7 + $0x30]]
        %v992 = vstv %s991
        %v993 = vadd.f32 %v990, %v992
        %v994 = vmax.f32 %v993, 0.0
        %s995 = sld [smem:[#allocation8 + $0x30]]
        %v996 = vstv %s995
        %v997 = vmul.f32 %v994, %v996
        %v998 = vadd.f32 %v987, %v997
        %s999 = sld [smem:[#allocation2 + $0x31]]
        %v1000 = vstv %s999
        %v1001 = vmul.f32 %v897, %v1000
        %s1002 = sld [smem:[#allocation7 + $0x31]]
        %v1003 = vstv %s1002
        %v1004 = vadd.f32 %v1001, %v1003
        %v1005 = vmax.f32 %v1004, 0.0
        %s1006 = sld [smem:[#allocation8 + $0x31]]
        %v1007 = vstv %s1006
        %v1008 = vmul.f32 %v1005, %v1007
        %v1009 = vadd.f32 %v998, %v1008
        %s1010 = sld [smem:[#allocation10 + $0x4]]
        %v1011 = vstv %s1010
        %v1012 = vadd.f32 %v1009, %v1011
        %v1013 = vsub.f32 %v1012, %v892
        %v1014 = vmul.f32 %v1013, %v899
        %v1015 = vsub.f32 %v895, %v1014
        %s1016 = scalar_lea.vmem %s368, 40 [#allocation12]
        %v1017 = vld [vmem:[%s1016] sm:$0xff]
        %s1018 = scalar_lea.vmem %s359, 40 [#allocation11]
        %v1019 = vld [vmem:[%s1018] sm:$0xff]
        %s1020 = sld [smem:[#allocation2 + $0x32]]
        %v1021 = vstv %s1020
        %v1022 = vmul.f32 %v1017, %v1021
        %s1023 = sld [smem:[#allocation7 + $0x32]]
        %v1024 = vstv %s1023
        %v1025 = vadd.f32 %v1022, %v1024
        %v1026 = vmax.f32 %v1025, 0.0
        %s1027 = sld [smem:[#allocation8 + $0x32]]
        %v1028 = vstv %s1027
        %v1029 = vmul.f32 %v1026, %v1028
        %v1030 = vadd.f32 %v1029, 0.0
        %s1031 = sld [smem:[#allocation2 + $0x33]]
        %v1032 = vstv %s1031
        %v1033 = vmul.f32 %v1017, %v1032
        %s1034 = sld [smem:[#allocation7 + $0x33]]
        %v1035 = vstv %s1034
        %v1036 = vadd.f32 %v1033, %v1035
        %v1037 = vmax.f32 %v1036, 0.0
        %s1038 = sld [smem:[#allocation8 + $0x33]]
        %v1039 = vstv %s1038
        %v1040 = vmul.f32 %v1037, %v1039
        %v1041 = vadd.f32 %v1030, %v1040
        %s1042 = sld [smem:[#allocation2 + $0x34]]
        %v1043 = vstv %s1042
        %v1044 = vmul.f32 %v1017, %v1043
        %s1045 = sld [smem:[#allocation7 + $0x34]]
        %v1046 = vstv %s1045
        %v1047 = vadd.f32 %v1044, %v1046
        %v1048 = vmax.f32 %v1047, 0.0
        %s1049 = sld [smem:[#allocation8 + $0x34]]
        %v1050 = vstv %s1049
        %v1051 = vmul.f32 %v1048, %v1050
        %v1052 = vadd.f32 %v1041, %v1051
        %s1053 = sld [smem:[#allocation2 + $0x35]]
        %v1054 = vstv %s1053
        %v1055 = vmul.f32 %v1017, %v1054
        %s1056 = sld [smem:[#allocation7 + $0x35]]
        %v1057 = vstv %s1056
        %v1058 = vadd.f32 %v1055, %v1057
        %v1059 = vmax.f32 %v1058, 0.0
        %s1060 = sld [smem:[#allocation8 + $0x35]]
        %v1061 = vstv %s1060
        %v1062 = vmul.f32 %v1059, %v1061
        %v1063 = vadd.f32 %v1052, %v1062
        %s1064 = sld [smem:[#allocation2 + $0x36]]
        %v1065 = vstv %s1064
        %v1066 = vmul.f32 %v1017, %v1065
        %s1067 = sld [smem:[#allocation7 + $0x36]]
        %v1068 = vstv %s1067
        %v1069 = vadd.f32 %v1066, %v1068
        %v1070 = vmax.f32 %v1069, 0.0
        %s1071 = sld [smem:[#allocation8 + $0x36]]
        %v1072 = vstv %s1071
        %v1073 = vmul.f32 %v1070, %v1072
        %v1074 = vadd.f32 %v1063, %v1073
        %s1075 = sld [smem:[#allocation2 + $0x37]]
        %v1076 = vstv %s1075
        %v1077 = vmul.f32 %v1017, %v1076
        %s1078 = sld [smem:[#allocation7 + $0x37]]
        %v1079 = vstv %s1078
        %v1080 = vadd.f32 %v1077, %v1079
        %v1081 = vmax.f32 %v1080, 0.0
        %s1082 = sld [smem:[#allocation8 + $0x37]]
        %v1083 = vstv %s1082
        %v1084 = vmul.f32 %v1081, %v1083
        %v1085 = vadd.f32 %v1074, %v1084
        %s1086 = sld [smem:[#allocation2 + $0x38]]
        %v1087 = vstv %s1086
        %v1088 = vmul.f32 %v1017, %v1087
        %s1089 = sld [smem:[#allocation7 + $0x38]]
        %v1090 = vstv %s1089
        %v1091 = vadd.f32 %v1088, %v1090
        %v1092 = vmax.f32 %v1091, 0.0
        %s1093 = sld [smem:[#allocation8 + $0x38]]
        %v1094 = vstv %s1093
        %v1095 = vmul.f32 %v1092, %v1094
        %v1096 = vadd.f32 %v1085, %v1095
        %s1097 = sld [smem:[#allocation2 + $0x39]]
        %v1098 = vstv %s1097
        %v1099 = vmul.f32 %v1017, %v1098
        %s1100 = sld [smem:[#allocation7 + $0x39]]
        %v1101 = vstv %s1100
        %v1102 = vadd.f32 %v1099, %v1101
        %v1103 = vmax.f32 %v1102, 0.0
        %s1104 = sld [smem:[#allocation8 + $0x39]]
        %v1105 = vstv %s1104
        %v1106 = vmul.f32 %v1103, %v1105
        %v1107 = vadd.f32 %v1096, %v1106
        %s1108 = sld [smem:[#allocation2 + $0x3a]]
        %v1109 = vstv %s1108
        %v1110 = vmul.f32 %v1017, %v1109
        %s1111 = sld [smem:[#allocation7 + $0x3a]]
        %v1112 = vstv %s1111
        %v1113 = vadd.f32 %v1110, %v1112
        %v1114 = vmax.f32 %v1113, 0.0
        %s1115 = sld [smem:[#allocation8 + $0x3a]]
        %v1116 = vstv %s1115
        %v1117 = vmul.f32 %v1114, %v1116
        %v1118 = vadd.f32 %v1107, %v1117
        %s1119 = sld [smem:[#allocation2 + $0x3b]]
        %v1120 = vstv %s1119
        %v1121 = vmul.f32 %v1017, %v1120
        %s1122 = sld [smem:[#allocation7 + $0x3b]]
        %v1123 = vstv %s1122
        %v1124 = vadd.f32 %v1121, %v1123
        %v1125 = vmax.f32 %v1124, 0.0
        %s1126 = sld [smem:[#allocation8 + $0x3b]]
        %v1127 = vstv %s1126
        %v1128 = vmul.f32 %v1125, %v1127
        %v1129 = vadd.f32 %v1118, %v1128
        %s1130 = sld [smem:[#allocation10 + $0x5]]
        %v1131 = vstv %s1130
        %v1132 = vadd.f32 %v1129, %v1131
        %v1133 = vsub.f32 %v1132, %v1012
        %v1134 = vmul.f32 %v1133, %v1019
        %v1135 = vsub.f32 %v1015, %v1134
        %s1136 = scalar_lea.vmem %s368, 48 [#allocation12]
        %v1137 = vld [vmem:[%s1136] sm:$0xff]
        %s1138 = scalar_lea.vmem %s359, 48 [#allocation11]
        %v1139 = vld [vmem:[%s1138] sm:$0xff]
        %s1140 = sld [smem:[#allocation2 + $0x3c]]
        %v1141 = vstv %s1140
        %v1142 = vmul.f32 %v1137, %v1141
        %s1143 = sld [smem:[#allocation7 + $0x3c]]
        %v1144 = vstv %s1143
        %v1145 = vadd.f32 %v1142, %v1144
        %v1146 = vmax.f32 %v1145, 0.0
        %s1147 = sld [smem:[#allocation8 + $0x3c]]
        %v1148 = vstv %s1147
        %v1149 = vmul.f32 %v1146, %v1148
        %v1150 = vadd.f32 %v1149, 0.0
        %s1151 = sld [smem:[#allocation2 + $0x3d]]
        %v1152 = vstv %s1151
        %v1153 = vmul.f32 %v1137, %v1152
        %s1154 = sld [smem:[#allocation7 + $0x3d]]
        %v1155 = vstv %s1154
        %v1156 = vadd.f32 %v1153, %v1155
        %v1157 = vmax.f32 %v1156, 0.0
        %s1158 = sld [smem:[#allocation8 + $0x3d]]
        %v1159 = vstv %s1158
        %v1160 = vmul.f32 %v1157, %v1159
        %v1161 = vadd.f32 %v1150, %v1160
        %s1162 = sld [smem:[#allocation2 + $0x3e]]
        %v1163 = vstv %s1162
        %v1164 = vmul.f32 %v1137, %v1163
        %s1165 = sld [smem:[#allocation7 + $0x3e]]
        %v1166 = vstv %s1165
        %v1167 = vadd.f32 %v1164, %v1166
        %v1168 = vmax.f32 %v1167, 0.0
        %s1169 = sld [smem:[#allocation8 + $0x3e]]
        %v1170 = vstv %s1169
        %v1171 = vmul.f32 %v1168, %v1170
        %v1172 = vadd.f32 %v1161, %v1171
        %s1173 = sld [smem:[#allocation2 + $0x3f]]
        %v1174 = vstv %s1173
        %v1175 = vmul.f32 %v1137, %v1174
        %s1176 = sld [smem:[#allocation7 + $0x3f]]
        %v1177 = vstv %s1176
        %v1178 = vadd.f32 %v1175, %v1177
        %v1179 = vmax.f32 %v1178, 0.0
        %s1180 = sld [smem:[#allocation8 + $0x3f]]
        %v1181 = vstv %s1180
        %v1182 = vmul.f32 %v1179, %v1181
        %v1183 = vadd.f32 %v1172, %v1182
        %s1184 = sld [smem:[#allocation2 + $0x40]]
        %v1185 = vstv %s1184
        %v1186 = vmul.f32 %v1137, %v1185
        %s1187 = sld [smem:[#allocation7 + $0x40]]
        %v1188 = vstv %s1187
        %v1189 = vadd.f32 %v1186, %v1188
        %v1190 = vmax.f32 %v1189, 0.0
        %s1191 = sld [smem:[#allocation8 + $0x40]]
        %v1192 = vstv %s1191
        %v1193 = vmul.f32 %v1190, %v1192
        %v1194 = vadd.f32 %v1183, %v1193
        %s1195 = sld [smem:[#allocation2 + $0x41]]
        %v1196 = vstv %s1195
        %v1197 = vmul.f32 %v1137, %v1196
        %s1198 = sld [smem:[#allocation7 + $0x41]]
        %v1199 = vstv %s1198
        %v1200 = vadd.f32 %v1197, %v1199
        %v1201 = vmax.f32 %v1200, 0.0
        %s1202 = sld [smem:[#allocation8 + $0x41]]
        %v1203 = vstv %s1202
        %v1204 = vmul.f32 %v1201, %v1203
        %v1205 = vadd.f32 %v1194, %v1204
        %s1206 = sld [smem:[#allocation2 + $0x42]]
        %v1207 = vstv %s1206
        %v1208 = vmul.f32 %v1137, %v1207
        %s1209 = sld [smem:[#allocation7 + $0x42]]
        %v1210 = vstv %s1209
        %v1211 = vadd.f32 %v1208, %v1210
        %v1212 = vmax.f32 %v1211, 0.0
        %s1213 = sld [smem:[#allocation8 + $0x42]]
        %v1214 = vstv %s1213
        %v1215 = vmul.f32 %v1212, %v1214
        %v1216 = vadd.f32 %v1205, %v1215
        %s1217 = sld [smem:[#allocation2 + $0x43]]
        %v1218 = vstv %s1217
        %v1219 = vmul.f32 %v1137, %v1218
        %s1220 = sld [smem:[#allocation7 + $0x43]]
        %v1221 = vstv %s1220
        %v1222 = vadd.f32 %v1219, %v1221
        %v1223 = vmax.f32 %v1222, 0.0
        %s1224 = sld [smem:[#allocation8 + $0x43]]
        %v1225 = vstv %s1224
        %v1226 = vmul.f32 %v1223, %v1225
        %v1227 = vadd.f32 %v1216, %v1226
        %s1228 = sld [smem:[#allocation2 + $0x44]]
        %v1229 = vstv %s1228
        %v1230 = vmul.f32 %v1137, %v1229
        %s1231 = sld [smem:[#allocation7 + $0x44]]
        %v1232 = vstv %s1231
        %v1233 = vadd.f32 %v1230, %v1232
        %v1234 = vmax.f32 %v1233, 0.0
        %s1235 = sld [smem:[#allocation8 + $0x44]]
        %v1236 = vstv %s1235
        %v1237 = vmul.f32 %v1234, %v1236
        %v1238 = vadd.f32 %v1227, %v1237
        %s1239 = sld [smem:[#allocation2 + $0x45]]
        %v1240 = vstv %s1239
        %v1241 = vmul.f32 %v1137, %v1240
        %s1242 = sld [smem:[#allocation7 + $0x45]]
        %v1243 = vstv %s1242
        %v1244 = vadd.f32 %v1241, %v1243
        %v1245 = vmax.f32 %v1244, 0.0
        %s1246 = sld [smem:[#allocation8 + $0x45]]
        %v1247 = vstv %s1246
        %v1248 = vmul.f32 %v1245, %v1247
        %v1249 = vadd.f32 %v1238, %v1248
        %s1250 = sld [smem:[#allocation10 + $0x6]]
        %v1251 = vstv %s1250
        %v1252 = vadd.f32 %v1249, %v1251
        %v1253 = vsub.f32 %v1252, %v1132
        %v1254 = vmul.f32 %v1253, %v1139
        %v1255 = vsub.f32 %v1135, %v1254
        %s1256 = scalar_lea.vmem %s368, 56 [#allocation12]
        %v1257 = vld [vmem:[%s1256] sm:$0xff]
        %s1258 = scalar_lea.vmem %s359, 56 [#allocation11]
        %v1259 = vld [vmem:[%s1258] sm:$0xff]
        %s1260 = sld [smem:[#allocation2 + $0x46]]
        %v1261 = vstv %s1260
        %v1262 = vmul.f32 %v1257, %v1261
        %s1263 = sld [smem:[#allocation7 + $0x46]]
        %v1264 = vstv %s1263
        %v1265 = vadd.f32 %v1262, %v1264
        %v1266 = vmax.f32 %v1265, 0.0
        %s1267 = sld [smem:[#allocation8 + $0x46]]
        %v1268 = vstv %s1267
        %v1269 = vmul.f32 %v1266, %v1268
        %v1270 = vadd.f32 %v1269, 0.0
        %s1271 = sld [smem:[#allocation2 + $0x47]]
        %v1272 = vstv %s1271
        %v1273 = vmul.f32 %v1257, %v1272
        %s1274 = sld [smem:[#allocation7 + $0x47]]
        %v1275 = vstv %s1274
        %v1276 = vadd.f32 %v1273, %v1275
        %v1277 = vmax.f32 %v1276, 0.0
        %s1278 = sld [smem:[#allocation8 + $0x47]]
        %v1279 = vstv %s1278
        %v1280 = vmul.f32 %v1277, %v1279
        %v1281 = vadd.f32 %v1270, %v1280
        %s1282 = sld [smem:[#allocation2 + $0x48]]
        %v1283 = vstv %s1282
        %v1284 = vmul.f32 %v1257, %v1283
        %s1285 = sld [smem:[#allocation7 + $0x48]]
        %v1286 = vstv %s1285
        %v1287 = vadd.f32 %v1284, %v1286
        %v1288 = vmax.f32 %v1287, 0.0
        %s1289 = sld [smem:[#allocation8 + $0x48]]
        %v1290 = vstv %s1289
        %v1291 = vmul.f32 %v1288, %v1290
        %v1292 = vadd.f32 %v1281, %v1291
        %s1293 = sld [smem:[#allocation2 + $0x49]]
        %v1294 = vstv %s1293
        %v1295 = vmul.f32 %v1257, %v1294
        %s1296 = sld [smem:[#allocation7 + $0x49]]
        %v1297 = vstv %s1296
        %v1298 = vadd.f32 %v1295, %v1297
        %v1299 = vmax.f32 %v1298, 0.0
        %s1300 = sld [smem:[#allocation8 + $0x49]]
        %v1301 = vstv %s1300
        %v1302 = vmul.f32 %v1299, %v1301
        %v1303 = vadd.f32 %v1292, %v1302
        %s1304 = sld [smem:[#allocation2 + $0x4a]]
        %v1305 = vstv %s1304
        %v1306 = vmul.f32 %v1257, %v1305
        %s1307 = sld [smem:[#allocation7 + $0x4a]]
        %v1308 = vstv %s1307
        %v1309 = vadd.f32 %v1306, %v1308
        %v1310 = vmax.f32 %v1309, 0.0
        %s1311 = sld [smem:[#allocation8 + $0x4a]]
        %v1312 = vstv %s1311
        %v1313 = vmul.f32 %v1310, %v1312
        %v1314 = vadd.f32 %v1303, %v1313
        %s1315 = sld [smem:[#allocation2 + $0x4b]]
        %v1316 = vstv %s1315
        %v1317 = vmul.f32 %v1257, %v1316
        %s1318 = sld [smem:[#allocation7 + $0x4b]]
        %v1319 = vstv %s1318
        %v1320 = vadd.f32 %v1317, %v1319
        %v1321 = vmax.f32 %v1320, 0.0
        %s1322 = sld [smem:[#allocation8 + $0x4b]]
        %v1323 = vstv %s1322
        %v1324 = vmul.f32 %v1321, %v1323
        %v1325 = vadd.f32 %v1314, %v1324
        %s1326 = sld [smem:[#allocation2 + $0x4c]]
        %v1327 = vstv %s1326
        %v1328 = vmul.f32 %v1257, %v1327
        %s1329 = sld [smem:[#allocation7 + $0x4c]]
        %v1330 = vstv %s1329
        %v1331 = vadd.f32 %v1328, %v1330
        %v1332 = vmax.f32 %v1331, 0.0
        %s1333 = sld [smem:[#allocation8 + $0x4c]]
        %v1334 = vstv %s1333
        %v1335 = vmul.f32 %v1332, %v1334
        %v1336 = vadd.f32 %v1325, %v1335
        %s1337 = sld [smem:[#allocation2 + $0x4d]]
        %v1338 = vstv %s1337
        %v1339 = vmul.f32 %v1257, %v1338
        %s1340 = sld [smem:[#allocation7 + $0x4d]]
        %v1341 = vstv %s1340
        %v1342 = vadd.f32 %v1339, %v1341
        %v1343 = vmax.f32 %v1342, 0.0
        %s1344 = sld [smem:[#allocation8 + $0x4d]]
        %v1345 = vstv %s1344
        %v1346 = vmul.f32 %v1343, %v1345
        %v1347 = vadd.f32 %v1336, %v1346
        %s1348 = sld [smem:[#allocation2 + $0x4e]]
        %v1349 = vstv %s1348
        %v1350 = vmul.f32 %v1257, %v1349
        %s1351 = sld [smem:[#allocation7 + $0x4e]]
        %v1352 = vstv %s1351
        %v1353 = vadd.f32 %v1350, %v1352
        %v1354 = vmax.f32 %v1353, 0.0
        %s1355 = sld [smem:[#allocation8 + $0x4e]]
        %v1356 = vstv %s1355
        %v1357 = vmul.f32 %v1354, %v1356
        %v1358 = vadd.f32 %v1347, %v1357
        %s1359 = sld [smem:[#allocation2 + $0x4f]]
        %v1360 = vstv %s1359
        %v1361 = vmul.f32 %v1257, %v1360
        %s1362 = sld [smem:[#allocation7 + $0x4f]]
        %v1363 = vstv %s1362
        %v1364 = vadd.f32 %v1361, %v1363
        %v1365 = vmax.f32 %v1364, 0.0
        %s1366 = sld [smem:[#allocation8 + $0x4f]]
        %v1367 = vstv %s1366
        %v1368 = vmul.f32 %v1365, %v1367
        %v1369 = vadd.f32 %v1358, %v1368
        %s1370 = sld [smem:[#allocation10 + $0x7]]
        %v1371 = vstv %s1370
        %v1372 = vadd.f32 %v1369, %v1371
        %v1373 = vsub.f32 %v1372, %v1252
        %v1374 = vmul.f32 %v1373, %v1259
        %v1375 = vsub.f32 %v1255, %v1374
        %s1376 = scalar_lea.vmem %s368, 64 [#allocation12]
        %v1377 = vld [vmem:[%s1376] sm:$0xff]
        %s1378 = scalar_lea.vmem %s359, 64 [#allocation11]
        %v1379 = vld [vmem:[%s1378] sm:$0xff]
        %s1380 = sld [smem:[#allocation2 + $0x50]]
        %v1381 = vstv %s1380
        %v1382 = vmul.f32 %v1377, %v1381
        %s1383 = sld [smem:[#allocation7 + $0x50]]
        %v1384 = vstv %s1383
        %v1385 = vadd.f32 %v1382, %v1384
        %v1386 = vmax.f32 %v1385, 0.0
        %s1387 = sld [smem:[#allocation8 + $0x50]]
        %v1388 = vstv %s1387
        %v1389 = vmul.f32 %v1386, %v1388
        %v1390 = vadd.f32 %v1389, 0.0
        %s1391 = sld [smem:[#allocation2 + $0x51]]
        %v1392 = vstv %s1391
        %v1393 = vmul.f32 %v1377, %v1392
        %s1394 = sld [smem:[#allocation7 + $0x51]]
        %v1395 = vstv %s1394
        %v1396 = vadd.f32 %v1393, %v1395
        %v1397 = vmax.f32 %v1396, 0.0
        %s1398 = sld [smem:[#allocation8 + $0x51]]
        %v1399 = vstv %s1398
        %v1400 = vmul.f32 %v1397, %v1399
        %v1401 = vadd.f32 %v1390, %v1400
        %s1402 = sld [smem:[#allocation2 + $0x52]]
        %v1403 = vstv %s1402
        %v1404 = vmul.f32 %v1377, %v1403
        %s1405 = sld [smem:[#allocation7 + $0x52]]
        %v1406 = vstv %s1405
        %v1407 = vadd.f32 %v1404, %v1406
        %v1408 = vmax.f32 %v1407, 0.0
        %s1409 = sld [smem:[#allocation8 + $0x52]]
        %v1410 = vstv %s1409
        %v1411 = vmul.f32 %v1408, %v1410
        %v1412 = vadd.f32 %v1401, %v1411
        %s1413 = sld [smem:[#allocation2 + $0x53]]
        %v1414 = vstv %s1413
        %v1415 = vmul.f32 %v1377, %v1414
        %s1416 = sld [smem:[#allocation7 + $0x53]]
        %v1417 = vstv %s1416
        %v1418 = vadd.f32 %v1415, %v1417
        %v1419 = vmax.f32 %v1418, 0.0
        %s1420 = sld [smem:[#allocation8 + $0x53]]
        %v1421 = vstv %s1420
        %v1422 = vmul.f32 %v1419, %v1421
        %v1423 = vadd.f32 %v1412, %v1422
        %s1424 = sld [smem:[#allocation2 + $0x54]]
        %v1425 = vstv %s1424
        %v1426 = vmul.f32 %v1377, %v1425
        %s1427 = sld [smem:[#allocation7 + $0x54]]
        %v1428 = vstv %s1427
        %v1429 = vadd.f32 %v1426, %v1428
        %v1430 = vmax.f32 %v1429, 0.0
        %s1431 = sld [smem:[#allocation8 + $0x54]]
        %v1432 = vstv %s1431
        %v1433 = vmul.f32 %v1430, %v1432
        %v1434 = vadd.f32 %v1423, %v1433
        %s1435 = sld [smem:[#allocation2 + $0x55]]
        %v1436 = vstv %s1435
        %v1437 = vmul.f32 %v1377, %v1436
        %s1438 = sld [smem:[#allocation7 + $0x55]]
        %v1439 = vstv %s1438
        %v1440 = vadd.f32 %v1437, %v1439
        %v1441 = vmax.f32 %v1440, 0.0
        %s1442 = sld [smem:[#allocation8 + $0x55]]
        %v1443 = vstv %s1442
        %v1444 = vmul.f32 %v1441, %v1443
        %v1445 = vadd.f32 %v1434, %v1444
        %s1446 = sld [smem:[#allocation2 + $0x56]]
        %v1447 = vstv %s1446
        %v1448 = vmul.f32 %v1377, %v1447
        %s1449 = sld [smem:[#allocation7 + $0x56]]
        %v1450 = vstv %s1449
        %v1451 = vadd.f32 %v1448, %v1450
        %v1452 = vmax.f32 %v1451, 0.0
        %s1453 = sld [smem:[#allocation8 + $0x56]]
        %v1454 = vstv %s1453
        %v1455 = vmul.f32 %v1452, %v1454
        %v1456 = vadd.f32 %v1445, %v1455
        %s1457 = sld [smem:[#allocation2 + $0x57]]
        %v1458 = vstv %s1457
        %v1459 = vmul.f32 %v1377, %v1458
        %s1460 = sld [smem:[#allocation7 + $0x57]]
        %v1461 = vstv %s1460
        %v1462 = vadd.f32 %v1459, %v1461
        %v1463 = vmax.f32 %v1462, 0.0
        %s1464 = sld [smem:[#allocation8 + $0x57]]
        %v1465 = vstv %s1464
        %v1466 = vmul.f32 %v1463, %v1465
        %v1467 = vadd.f32 %v1456, %v1466
        %s1468 = sld [smem:[#allocation2 + $0x58]]
        %v1469 = vstv %s1468
        %v1470 = vmul.f32 %v1377, %v1469
        %s1471 = sld [smem:[#allocation7 + $0x58]]
        %v1472 = vstv %s1471
        %v1473 = vadd.f32 %v1470, %v1472
        %v1474 = vmax.f32 %v1473, 0.0
        %s1475 = sld [smem:[#allocation8 + $0x58]]
        %v1476 = vstv %s1475
        %v1477 = vmul.f32 %v1474, %v1476
        %v1478 = vadd.f32 %v1467, %v1477
        %s1479 = sld [smem:[#allocation2 + $0x59]]
        %v1480 = vstv %s1479
        %v1481 = vmul.f32 %v1377, %v1480
        %s1482 = sld [smem:[#allocation7 + $0x59]]
        %v1483 = vstv %s1482
        %v1484 = vadd.f32 %v1481, %v1483
        %v1485 = vmax.f32 %v1484, 0.0
        %s1486 = sld [smem:[#allocation8 + $0x59]]
        %v1487 = vstv %s1486
        %v1488 = vmul.f32 %v1485, %v1487
        %v1489 = vadd.f32 %v1478, %v1488
        %s1490 = sld [smem:[#allocation10 + $0x8]]
        %v1491 = vstv %s1490
        %v1492 = vadd.f32 %v1489, %v1491
        %v1493 = vsub.f32 %v1492, %v1372
        %v1494 = vmul.f32 %v1493, %v1379
        %v1495 = vsub.f32 %v1375, %v1494
        %s1496 = scalar_lea.vmem %s368, 72 [#allocation12]
        %v1497 = vld [vmem:[%s1496] sm:$0xff]
        %s1498 = scalar_lea.vmem %s359, 72 [#allocation11]
        %v1499 = vld [vmem:[%s1498] sm:$0xff]
        %s1500 = sld [smem:[#allocation2 + $0x5a]]
        %v1501 = vstv %s1500
        %v1502 = vmul.f32 %v1497, %v1501
        %s1503 = sld [smem:[#allocation7 + $0x5a]]
        %v1504 = vstv %s1503
        %v1505 = vadd.f32 %v1502, %v1504
        %v1506 = vmax.f32 %v1505, 0.0
        %s1507 = sld [smem:[#allocation8 + $0x5a]]
        %v1508 = vstv %s1507
        %v1509 = vmul.f32 %v1506, %v1508
        %v1510 = vadd.f32 %v1509, 0.0
        %s1511 = sld [smem:[#allocation2 + $0x5b]]
        %v1512 = vstv %s1511
        %v1513 = vmul.f32 %v1497, %v1512
        %s1514 = sld [smem:[#allocation7 + $0x5b]]
        %v1515 = vstv %s1514
        %v1516 = vadd.f32 %v1513, %v1515
        %v1517 = vmax.f32 %v1516, 0.0
        %s1518 = sld [smem:[#allocation8 + $0x5b]]
        %v1519 = vstv %s1518
        %v1520 = vmul.f32 %v1517, %v1519
        %v1521 = vadd.f32 %v1510, %v1520
        %s1522 = sld [smem:[#allocation2 + $0x5c]]
        %v1523 = vstv %s1522
        %v1524 = vmul.f32 %v1497, %v1523
        %s1525 = sld [smem:[#allocation7 + $0x5c]]
        %v1526 = vstv %s1525
        %v1527 = vadd.f32 %v1524, %v1526
        %v1528 = vmax.f32 %v1527, 0.0
        %s1529 = sld [smem:[#allocation8 + $0x5c]]
        %v1530 = vstv %s1529
        %v1531 = vmul.f32 %v1528, %v1530
        %v1532 = vadd.f32 %v1521, %v1531
        %s1533 = sld [smem:[#allocation2 + $0x5d]]
        %v1534 = vstv %s1533
        %v1535 = vmul.f32 %v1497, %v1534
        %s1536 = sld [smem:[#allocation7 + $0x5d]]
        %v1537 = vstv %s1536
        %v1538 = vadd.f32 %v1535, %v1537
        %v1539 = vmax.f32 %v1538, 0.0
        %s1540 = sld [smem:[#allocation8 + $0x5d]]
        %v1541 = vstv %s1540
        %v1542 = vmul.f32 %v1539, %v1541
        %v1543 = vadd.f32 %v1532, %v1542
        %s1544 = sld [smem:[#allocation2 + $0x5e]]
        %v1545 = vstv %s1544
        %v1546 = vmul.f32 %v1497, %v1545
        %s1547 = sld [smem:[#allocation7 + $0x5e]]
        %v1548 = vstv %s1547
        %v1549 = vadd.f32 %v1546, %v1548
        %v1550 = vmax.f32 %v1549, 0.0
        %s1551 = sld [smem:[#allocation8 + $0x5e]]
        %v1552 = vstv %s1551
        %v1553 = vmul.f32 %v1550, %v1552
        %v1554 = vadd.f32 %v1543, %v1553
        %s1555 = sld [smem:[#allocation2 + $0x5f]]
        %v1556 = vstv %s1555
        %v1557 = vmul.f32 %v1497, %v1556
        %s1558 = sld [smem:[#allocation7 + $0x5f]]
        %v1559 = vstv %s1558
        %v1560 = vadd.f32 %v1557, %v1559
        %v1561 = vmax.f32 %v1560, 0.0
        %s1562 = sld [smem:[#allocation8 + $0x5f]]
        %v1563 = vstv %s1562
        %v1564 = vmul.f32 %v1561, %v1563
        %v1565 = vadd.f32 %v1554, %v1564
        %s1566 = sld [smem:[#allocation2 + $0x60]]
        %v1567 = vstv %s1566
        %v1568 = vmul.f32 %v1497, %v1567
        %s1569 = sld [smem:[#allocation7 + $0x60]]
        %v1570 = vstv %s1569
        %v1571 = vadd.f32 %v1568, %v1570
        %v1572 = vmax.f32 %v1571, 0.0
        %s1573 = sld [smem:[#allocation8 + $0x60]]
        %v1574 = vstv %s1573
        %v1575 = vmul.f32 %v1572, %v1574
        %v1576 = vadd.f32 %v1565, %v1575
        %s1577 = sld [smem:[#allocation2 + $0x61]]
        %v1578 = vstv %s1577
        %v1579 = vmul.f32 %v1497, %v1578
        %s1580 = sld [smem:[#allocation7 + $0x61]]
        %v1581 = vstv %s1580
        %v1582 = vadd.f32 %v1579, %v1581
        %v1583 = vmax.f32 %v1582, 0.0
        %s1584 = sld [smem:[#allocation8 + $0x61]]
        %v1585 = vstv %s1584
        %v1586 = vmul.f32 %v1583, %v1585
        %v1587 = vadd.f32 %v1576, %v1586
        %s1588 = sld [smem:[#allocation2 + $0x62]]
        %v1589 = vstv %s1588
        %v1590 = vmul.f32 %v1497, %v1589
        %s1591 = sld [smem:[#allocation7 + $0x62]]
        %v1592 = vstv %s1591
        %v1593 = vadd.f32 %v1590, %v1592
        %v1594 = vmax.f32 %v1593, 0.0
        %s1595 = sld [smem:[#allocation8 + $0x62]]
        %v1596 = vstv %s1595
        %v1597 = vmul.f32 %v1594, %v1596
        %v1598 = vadd.f32 %v1587, %v1597
        %s1599 = sld [smem:[#allocation2 + $0x63]]
        %v1600 = vstv %s1599
        %v1601 = vmul.f32 %v1497, %v1600
        %s1602 = sld [smem:[#allocation7 + $0x63]]
        %v1603 = vstv %s1602
        %v1604 = vadd.f32 %v1601, %v1603
        %v1605 = vmax.f32 %v1604, 0.0
        %s1606 = sld [smem:[#allocation8 + $0x63]]
        %v1607 = vstv %s1606
        %v1608 = vmul.f32 %v1605, %v1607
        %v1609 = vadd.f32 %v1598, %v1608
        %s1610 = sld [smem:[#allocation10 + $0x9]]
        %v1611 = vstv %s1610
        %v1612 = vadd.f32 %v1609, %v1611
        %v1613 = vsub.f32 %v1612, %v1492
        %v1614 = vmul.f32 %v1613, %v1499
        %v1615 = vsub.f32 %v1495, %v1614
        %s1616 = scalar_lea.vmem %s359, 80 [#allocation11]
        %v1617 = vld [vmem:[%s1616] sm:$0xff]
        %v1618 = vmul.f32 %v1612, %v1617
        %v1619 = vadd.f32 %v1615, %v1618
        %v1620 = vld [vmem:[%s377] sm:$0xff]
        %v1621 = vadd.f32 %v1619, %v1620
        %1622 = vst [vmem:[%s418] sm:$0xff] %v1621
        %s1623 = sand.u32 %s200, 1
        %s1624 = scalar_lea.sflag [#allocation4], %s1623
        %s1625 = sand.u32 %s200, 1
        %s1626 = smul.addr %s1625, 8
        %s1627 = scalar_lea.vmem [#allocation15], %s1626
        // Predicated region
        $region77: #{tpu_custom_call.1} parent=47 // pred_check
          %p1628 = pneg %p210
        $region78: #{tpu_custom_call.1} parent=47 // pred_check_branch
          %1630 = sbr.rel (%p1628) target = $region80
        $region79: #{tpu_custom_call.1} parent=47 // pred_region
          %s1632 = ssub.s32 128, 128
          %1633 = vsyncadd %s1624, %s1632
          %s1634 = smul.addr %s30, 128
          %s1635 = scalar_lea.hbm %s7, %s1634
          %s1637 = sshll.u32 %s1627, 4
          %s1638 = int_to_ptr.vmem [resolvable:$true] %s1637
          %1640 = dma.vmem_to_hbm [thread:$0]  %s1638, 128, %s1635, %s1624
        $region80: #{tpu_custom_call.1} parent=47 // pred_fallthru
          _
      $region48: #{tpu_custom_call.1} parent=5 // pred_fallthru
        _
      %p1641 = scmp.le.s32.totalorder 2, %s25
      // Predicated region
      $region81: #{tpu_custom_call.1} parent=5 // pred_check
        %p1642 = pneg %p1641
      $region82: #{tpu_custom_call.1} parent=5 // pred_check_branch
        %1644 = sbr.rel (%p1642) target = $region84
      $region83: #{tpu_custom_call.1} parent=5 // pred_region
        %s1645 = ssub.s32 %s25, 2
        // Predicated region
        $region85: #{tpu_custom_call.1} parent=83 // pred_check
          %p1646 = pneg %p216
        $region86: #{tpu_custom_call.1} parent=83 // pred_check_branch
          %1648 = sbr.rel (%p1646) target = $region88
        $region87: #{tpu_custom_call.1} parent=83 // pred_region
          %s1649 = sand.u32 %s201, 1
          %s1650 = scalar_lea.sflag [#allocation4], %s1649
          %s1651 = sand.u32 %s201, 1
          %s1652 = smul.addr %s1651, 8
          %s1653 = scalar_lea.vmem [#allocation15], %s1652
          %1654 = dma.done %s1650, 128
        $region88: #{tpu_custom_call.1} parent=83 // pred_fallthru
          _
      $region84: #{tpu_custom_call.1} parent=5 // pred_fallthru
        _
    $region6: #{tpu_custom_call.1} parent=1 // loop_footer
      %s29 = sadd.s32 1, %s25
    $region7: #{tpu_custom_call.1} parent=1 // loop_footer_branch
      %24 = sbr.rel target = $region3
    $region8: #{tpu_custom_call.1} parent=1 // loop_exit
      _
    %1655 = vsyncpa [#allocation3], 1
    %s1656 = scalar_lea.sflag [#allocation3], 1
    %1657 = vsyncpa %s1656, 1
    %1658 = vsyncpa [#allocation13], 1
    %s1659 = scalar_lea.sflag [#allocation13], 1
    %1660 = vsyncpa %s1659, 1
    %1661 = vsyncpa [#allocation4], 1
    %s1662 = scalar_lea.sflag [#allocation4], 1
    %1663 = vsyncpa %s1662, 1
    %1664 = vsyncpa [#allocation5], 1
    %s1665 = scalar_lea.sflag [#allocation5], 1
    %1666 = vsyncpa %s1665, 1
    %1667 = vsyncpa [#allocation6], 1
    %s1668 = scalar_lea.sflag [#allocation6], 1
    %1669 = vsyncpa %s1668, 1
    %1670 = vsyncpa [#allocation9], 1

</llo_original>
